<compile_context>
chip_gen: v6e
topology: v6e:2x2x1
jax: 0.10.0
libtpu: 0.0.40
codegen_flags: <defaults>
</compile_context>

<pallas_src>
import jax
import jax.numpy as jnp
from jax.experimental import pallas as pl
from jax.experimental.pallas import tpu as pltpu

BN_EPS = 1e-5
SUM_CHUNK = 32          # sublane slab size for the f32-accumulated avg-pool sum


def _round_up(n, m):
    return -(-n // m) * m


# --------------------------------------------------------------------------
# Kernel
# --------------------------------------------------------------------------
def effnet_head_kernel(x_ref, w1a_ref, w1b_ref, b1_ref, w2_ref, b2_ref, out_ref):
    x = x_ref[...]                                    # (tb, HW, C) bf16, no upcast
    tb, hw, c = x.shape

    # AdaptiveMaxPool2d((1,1)): exact on bf16 (monotone), bf16 VALU path.
    max_f = jnp.max(x, axis=1)                        # (tb, C) bf16

    # AdaptiveAvgPool2d((1,1)): f32-accumulated sum over SUM_CHUNK-sublane
    # slabs (no full-tile f32 temp). The 1/HW scale is folded into w1a.
    sum_f = jnp.zeros((tb, c), jnp.float32)
    for s0 in range(0, hw, SUM_CHUNK):                # hw is static -> unrolled
        sz = min(SUM_CHUNK, hw - s0)
        sum_f = sum_f + jnp.sum(x[:, s0:s0 + sz, :].astype(jnp.float32), axis=1)

    # cat([avg, max]) @ W1 as two bf16 MXU matmuls (f32 accumulation) on the
    # split, BN1-folded, 1/HW-scaled weight; the concat never materializes.
    # Dropout = identity at inference.
    h = (jnp.dot(sum_f.astype(jnp.bfloat16), w1a_ref[...],
                 preferred_element_type=jnp.float32)
         + jnp.dot(max_f, w1b_ref[...], preferred_element_type=jnp.float32)
         + b1_ref[...])
    h = jnp.maximum(h, 0.0)                           # ReLU

    # Second linear with BN2 folded in; output lane-padded to 128 columns.
    out_ref[...] = (jnp.dot(h.astype(jnp.bfloat16), w2_ref[...],
                            preferred_element_type=jnp.float32)
                    + b2_ref[...]).astype(out_ref.dtype)


# --------------------------------------------------------------------------
# Parameter folding (eval-mode BN -> linear), bf16 weights, f32 biases
# --------------------------------------------------------------------------
def fold_head_params(params, hw):
    """Fold eval-mode BN1/BN2 into the bias-free linears.

    BN(x) @ W = x @ (a * W) + c @ W   with a = g*rsqrt(v+eps), c = b - m*a.
    The 1/HW of the average pool is folded into the avg half of W1.
    Returns (w1_avg bf16, w1_max bf16, bias1 f32, w2 bf16, bias2 f32).
    """
    (g1, b1, m1, v1, w1, g2, b2, m2, v2, w2) = params
    a1 = g1 * jax.lax.rsqrt(v1 + BN_EPS)              # (1, 2C)
    c1 = b1 - m1 * a1                                 # (1, 2C)
    w1f = w1 * a1.reshape(-1, 1)                      # (2C, F)
    bias1 = c1 @ w1                                   # (1, F)  f32

    a2 = g2 * jax.lax.rsqrt(v2 + BN_EPS)              # (1, F)
    c2 = b2 - m2 * a2                                 # (1, F)
    w2f = w2 * a2.reshape(-1, 1)                      # (F, num_classes)
    bias2 = c2 @ w2                                   # (1, num_classes) f32

    C = w1.shape[0] // 2
    w1a = (w1f[:C] * (1.0 / hw)).astype(jnp.bfloat16)  # avg half, 1/HW folded in
    w1b = w1f[C:].astype(jnp.bfloat16)                 # max half
    return w1a, w1b, bias1, w2f.astype(jnp.bfloat16), bias2


def _pad_cols(a, to_cols):
    pad = to_cols - a.shape[-1]
    if pad == 0:
        return a
    return jnp.pad(a, ((0, 0), (0, pad)))


# --------------------------------------------------------------------------
# VMEM budgeting / tiling (generation-aware)
# --------------------------------------------------------------------------
def _vmem_budget_bytes():
    """~70% of the physical per-core VMEM (headroom for compiler temps)."""
    try:
        cap = int(pltpu.get_tpu_info().vmem_capacity_bytes)
    except Exception:
        cap = 64 << 20                                # conservative v7x-sized default
    return int(cap * 0.7)


def _pick_batch_tile(B, per_row_bytes, resident_bytes, vmem_budget):
    """Largest divisor of B whose double-buffered feature slab (+ temps) fits
    next to the resident weights, capped so the grid has >=2 steps (keeps both
    v7x TensorCores busy; harmless on single-TC v5e/v6e)."""
    avail = max(vmem_budget - resident_bytes - (4 << 20), 1 << 20)
    cap = max(1, avail // per_row_bytes)
    cap = min(cap, max(1, B // 2))
    divs = [d for d in range(1, B + 1) if B % d == 0 and d <= cap]
    mult8 = [d for d in divs if d % 8 == 0]
    return max(mult8) if mult8 else max(divs)


# --------------------------------------------------------------------------
# pallas_call builder + forward
# --------------------------------------------------------------------------
def _build_call(B, batch_tile, HW, C, F, nc_pad, vmem_limit, single_buffer_weights):
    const2d = lambda i: (0, 0)                        # weights stay VMEM-resident

    def wspec(shape):
        if single_buffer_weights:
            # Constant index_map -> never needs a second pipeline buffer.
            return pl.BlockSpec(shape, const2d, pipeline_mode=pl.Buffered(1))
        return pl.BlockSpec(shape, const2d)

    return pl.pallas_call(
        effnet_head_kernel,
        out_shape=jax.ShapeDtypeStruct((B, nc_pad), jnp.float32),
        grid=(B // batch_tile,),
        in_specs=[
            pl.BlockSpec((batch_tile, HW, C), lambda i: (i, 0, 0)),   # feature map
            wspec((C, F)),                                            # w1 (avg half)
            wspec((C, F)),                                            # w1 (max half)
            wspec((1, F)),                                            # folded bias1
            wspec((F, nc_pad)),                                       # w2 (lane-padded)
            wspec((1, nc_pad)),                                       # folded bias2
        ],
        out_specs=pl.BlockSpec((batch_tile, nc_pad), lambda i: (i, 0)),
        compiler_params=pltpu.CompilerParams(
            dimension_semantics=("parallel",),        # shard batch over v7x's 2 TCs
            vmem_limit_bytes=int(vmem_limit)),
    )


def effnet_forward(feat_nhwc, params, num_classes, *, batch_tile=None):
    """feat_nhwc: (B, H, W, C) channels-last backbone feature map (bf16/f32)."""
    B, H, W, C = feat_nhwc.shape
    HW = H * W
    x = feat_nhwc.reshape(B, HW, C)                   # metadata-only reshape
    if x.dtype != jnp.bfloat16:
        x = x.astype(jnp.bfloat16)

    w1a, w1b, bias1, w2f, bias2 = fold_head_params(params, HW)
    F = w1a.shape[1]
    nc_pad = _round_up(num_classes, 128)              # lane-dense output
    w2p = _pad_cols(w2f, nc_pad)
    b2p = _pad_cols(bias2, nc_pad)

    # --- VMEM accounting (includes bf16 sublane padding + in-kernel f32 temps)
    c_pad = _round_up(C, 128)
    f_pad = _round_up(F, 128)
    hw_pad = _round_up(HW, 16)                        # bf16 packs 16 sublanes
    per_row_x = hw_pad * c_pad * 2                    # bf16 feature slab per batch row
    per_row_tmp = (SUM_CHUNK + 4) * c_pad * 4 + 4 * f_pad * 4 + 2 * nc_pad * 4
    per_row = 2 * per_row_x + per_row_tmp + 2 * nc_pad * 4
    resident = 2 * (2 * c_pad * f_pad * 2 + f_pad * nc_pad * 2   # bf16 weights
                    + 8 * f_pad * 4 + 8 * nc_pad * 4)            # f32 biases

    budget = _vmem_budget_bytes()                     # generation-aware
    vmem_limit = int(min(max(budget, 32 << 20), 100 << 20))

    if batch_tile is None:
        batch_tile = _pick_batch_tile(B, per_row, resident, vmem_limit)
    assert B % batch_tile == 0, "batch_tile must divide B"

    args = (x, w1a, w1b, bias1, w2p, b2p)
    try:
        out_pad = _build_call(B, batch_tile, HW, C, F, nc_pad, vmem_limit,
                              single_buffer_weights=True)(*args)
    except Exception:
        # Fallback if pipeline_mode=pl.Buffered(1) is rejected by this JAX build.
        out_pad = _build_call(B, batch_tile, HW, C, F, nc_pad, vmem_limit,
                              single_buffer_weights=False)(*args)
    return out_pad[:, :num_classes]


# --------------------------------------------------------------------------
# Pure-JAX reference + parameter construction
# --------------------------------------------------------------------------
def effnet_forward_ref(feat_nhwc, params):
    """Pure-JAX f32 reference (unfolded BN math)."""
    (g1, b1, m1, v1, w1, g2, b2, m2, v2, w2) = params
    B, H, W, C = feat_nhwc.shape
    x = feat_nhwc.astype(jnp.float32).reshape(B, H * W, C)
    avg_f = jnp.mean(x, axis=1)
    max_f = jnp.max(x, axis=1)
    feat = jnp.concatenate([avg_f, max_f], axis=1)
    h = (feat - m1) * jax.lax.rsqrt(v1 + BN_EPS) * g1 + b1
    h = jnp.maximum(h @ w1, 0.0)
    h = (h - m2) * jax.lax.rsqrt(v2 + BN_EPS) * g2 + b2
    return h @ w2


def make_params(key, num_ftrs, num_classes):
    ks = jax.random.split(key, 10)
    twoF = 2 * num_ftrs
    g1 = jax.random.uniform(ks[0], (1, twoF), jnp.float32, 0.5, 1.5)
    b1 = 0.1 * jax.random.normal(ks[1], (1, twoF), jnp.float32)
    m1 = 0.1 * jax.random.normal(ks[2], (1, twoF), jnp.float32)
    v1 = jax.random.uniform(ks[3], (1, twoF), jnp.float32, 0.5, 1.5)
    w1 = 0.05 * jax.random.normal(ks[4], (twoF, num_ftrs), jnp.float32)
    g2 = jax.random.uniform(ks[5], (1, num_ftrs), jnp.float32, 0.5, 1.5)
    b2 = 0.1 * jax.random.normal(ks[6], (1, num_ftrs), jnp.float32)
    m2 = 0.1 * jax.random.normal(ks[7], (1, num_ftrs), jnp.float32)
    v2 = jax.random.uniform(ks[8], (1, num_ftrs), jnp.float32, 0.5, 1.5)
    w2 = 0.05 * jax.random.normal(ks[9], (num_ftrs, num_classes), jnp.float32)
    return (g1, b1, m1, v1, w1, g2, b2, m2, v2, w2)


if __name__ == "__main__":
    key = jax.random.PRNGKey(0)
    k_feat, k_par = jax.random.split(key)

    # Small lane-aligned stand-in for b0's (B, 7, 7, 1280) feature map.
    B, num_ftrs, H, W = 16, 128, 16, 16
    num_classes = 9

    # Backbone output emitted channels-last (NHWC) in bf16 — the layout/dtype
    # the kernel wants, so the wrapper never transposes or re-casts in HBM.
    feat_nhwc = jax.random.normal(
        k_feat, (B, H, W, num_ftrs), jnp.float32).astype(jnp.bfloat16)
    params = make_params(k_par, num_ftrs, num_classes)

    out = effnet_forward(feat_nhwc, params, num_classes)
    out = jax.block_until_ready(out)

    ref = effnet_forward_ref(feat_nhwc, params)
    assert out.shape == (B, num_classes)
    # bf16 weights / bf16 MXU inputs (f32 accumulation) vs. the all-f32 reference.
    assert jnp.allclose(out, ref, atol=2e-2, rtol=2e-2), "mismatch vs reference"

    print("KERNEL_OK")
</pallas_src>

<mosaic_0001>
module attributes {stable_mosaic.version = 11 : i64} {
  func.func @effnet_head_kernel(%arg0: i32, %arg1: memref<8x256x128xbf16, #tpu.memory_space<vmem>>, %arg2: memref<128x128xbf16, #tpu.memory_space<vmem>>, %arg3: memref<128x128xbf16, #tpu.memory_space<vmem>>, %arg4: memref<1x128xf32, #tpu.memory_space<vmem>>, %arg5: memref<128x128xbf16, #tpu.memory_space<vmem>>, %arg6: memref<1x128xf32, #tpu.memory_space<vmem>>, %arg7: memref<8x128xf32, #tpu.memory_space<vmem>>) attributes {dimension_semantics = [#tpu.dimension_semantics<parallel>], iteration_bounds = array<i64: 2>, scalar_prefetch = 0 : i64, scratch_operands = 0 : i64, tpu.core_type = #tpu.core_type<tc>, window_params = [{transform_indices = @transform_0, window_bounds = array<i64: 8, 256, 128>}, {pipeline_mode = #tpu.pipeline_mode<synchronous>, transform_indices = @transform_1, window_bounds = array<i64: 128, 128>}, {pipeline_mode = #tpu.pipeline_mode<synchronous>, transform_indices = @transform_2, window_bounds = array<i64: 128, 128>}, {pipeline_mode = #tpu.pipeline_mode<synchronous>, transform_indices = @transform_3, window_bounds = array<i64: 1, 128>}, {pipeline_mode = #tpu.pipeline_mode<synchronous>, transform_indices = @transform_4, window_bounds = array<i64: 128, 128>}, {pipeline_mode = #tpu.pipeline_mode<synchronous>, transform_indices = @transform_5, window_bounds = array<i64: 1, 128>}, {transform_indices = @transform_6, window_bounds = array<i64: 8, 128>}]} {
    %c0 = arith.constant 0 : index
    %c0_0 = arith.constant 0 : index
    %c0_1 = arith.constant 0 : index
    %0 = vector.load %arg1[%c0, %c0_0, %c0_1] : memref<8x256x128xbf16, #tpu.memory_space<vmem>>, vector<8x256x128xbf16>
    %cst = arith.constant dense<0xFF80> : vector<8x128xbf16>
    %1 = vector.multi_reduction <maximumf>, %0, %cst [1] : vector<8x256x128xbf16> to vector<8x128xbf16>
    %cst_2 = arith.constant 0.000000e+00 : f32
    %2 = vector.broadcast %cst_2 : f32 to vector<8x128xf32>
    %3 = vector.extract_strided_slice %0 {offsets = [0, 0, 0], sizes = [8, 32, 128], strides = [1, 1, 1]} : vector<8x256x128xbf16> to vector<8x32x128xbf16>
    %4 = arith.extf %3 : vector<8x32x128xbf16> to vector<8x32x128xf32>
    %cst_3 = arith.constant dense<0.000000e+00> : vector<8x128xf32>
    %5 = vector.multi_reduction <add>, %4, %cst_3 [1] : vector<8x32x128xf32> to vector<8x128xf32>
    %6 = arith.addf %2, %5 : vector<8x128xf32>
    %7 = vector.extract_strided_slice %0 {offsets = [0, 32, 0], sizes = [8, 32, 128], strides = [1, 1, 1]} : vector<8x256x128xbf16> to vector<8x32x128xbf16>
    %8 = arith.extf %7 : vector<8x32x128xbf16> to vector<8x32x128xf32>
    %cst_4 = arith.constant dense<0.000000e+00> : vector<8x128xf32>
    %9 = vector.multi_reduction <add>, %8, %cst_4 [1] : vector<8x32x128xf32> to vector<8x128xf32>
    %10 = arith.addf %6, %9 : vector<8x128xf32>
    %11 = vector.extract_strided_slice %0 {offsets = [0, 64, 0], sizes = [8, 32, 128], strides = [1, 1, 1]} : vector<8x256x128xbf16> to vector<8x32x128xbf16>
    %12 = arith.extf %11 : vector<8x32x128xbf16> to vector<8x32x128xf32>
    %cst_5 = arith.constant dense<0.000000e+00> : vector<8x128xf32>
    %13 = vector.multi_reduction <add>, %12, %cst_5 [1] : vector<8x32x128xf32> to vector<8x128xf32>
    %14 = arith.addf %10, %13 : vector<8x128xf32>
    %15 = vector.extract_strided_slice %0 {offsets = [0, 96, 0], sizes = [8, 32, 128], strides = [1, 1, 1]} : vector<8x256x128xbf16> to vector<8x32x128xbf16>
    %16 = arith.extf %15 : vector<8x32x128xbf16> to vector<8x32x128xf32>
    %cst_6 = arith.constant dense<0.000000e+00> : vector<8x128xf32>
    %17 = vector.multi_reduction <add>, %16, %cst_6 [1] : vector<8x32x128xf32> to vector<8x128xf32>
    %18 = arith.addf %14, %17 : vector<8x128xf32>
    %19 = vector.extract_strided_slice %0 {offsets = [0, 128, 0], sizes = [8, 32, 128], strides = [1, 1, 1]} : vector<8x256x128xbf16> to vector<8x32x128xbf16>
    %20 = arith.extf %19 : vector<8x32x128xbf16> to vector<8x32x128xf32>
    %cst_7 = arith.constant dense<0.000000e+00> : vector<8x128xf32>
    %21 = vector.multi_reduction <add>, %20, %cst_7 [1] : vector<8x32x128xf32> to vector<8x128xf32>
    %22 = arith.addf %18, %21 : vector<8x128xf32>
    %23 = vector.extract_strided_slice %0 {offsets = [0, 160, 0], sizes = [8, 32, 128], strides = [1, 1, 1]} : vector<8x256x128xbf16> to vector<8x32x128xbf16>
    %24 = arith.extf %23 : vector<8x32x128xbf16> to vector<8x32x128xf32>
    %cst_8 = arith.constant dense<0.000000e+00> : vector<8x128xf32>
    %25 = vector.multi_reduction <add>, %24, %cst_8 [1] : vector<8x32x128xf32> to vector<8x128xf32>
    %26 = arith.addf %22, %25 : vector<8x128xf32>
    %27 = vector.extract_strided_slice %0 {offsets = [0, 192, 0], sizes = [8, 32, 128], strides = [1, 1, 1]} : vector<8x256x128xbf16> to vector<8x32x128xbf16>
    %28 = arith.extf %27 : vector<8x32x128xbf16> to vector<8x32x128xf32>
    %cst_9 = arith.constant dense<0.000000e+00> : vector<8x128xf32>
    %29 = vector.multi_reduction <add>, %28, %cst_9 [1] : vector<8x32x128xf32> to vector<8x128xf32>
    %30 = arith.addf %26, %29 : vector<8x128xf32>
    %31 = vector.extract_strided_slice %0 {offsets = [0, 224, 0], sizes = [8, 32, 128], strides = [1, 1, 1]} : vector<8x256x128xbf16> to vector<8x32x128xbf16>
    %32 = arith.extf %31 : vector<8x32x128xbf16> to vector<8x32x128xf32>
    %cst_10 = arith.constant dense<0.000000e+00> : vector<8x128xf32>
    %33 = vector.multi_reduction <add>, %32, %cst_10 [1] : vector<8x32x128xf32> to vector<8x128xf32>
    %34 = arith.addf %30, %33 : vector<8x128xf32>
    %35 = arith.truncf %34 : vector<8x128xf32> to vector<8x128xbf16>
    %c0_11 = arith.constant 0 : index
    %c0_12 = arith.constant 0 : index
    %36 = vector.load %arg2[%c0_11, %c0_12] : memref<128x128xbf16, #tpu.memory_space<vmem>>, vector<128x128xbf16>
    %cst_13 = arith.constant dense<0.000000e+00> : vector<8x128xf32>
    %37 = tpu.matmul %35, %36, %cst_13 {dimension_numbers = #tpu.dot_dimension_numbers<[1], [0], [0], [1], [0, 0, 1, 1], [], []>} : vector<8x128xbf16>, vector<128x128xbf16>, vector<8x128xf32> -> vector<8x128xf32>
    %c0_14 = arith.constant 0 : index
    %c0_15 = arith.constant 0 : index
    %38 = vector.load %arg3[%c0_14, %c0_15] : memref<128x128xbf16, #tpu.memory_space<vmem>>, vector<128x128xbf16>
    %cst_16 = arith.constant dense<0.000000e+00> : vector<8x128xf32>
    %39 = tpu.matmul %1, %38, %cst_16 {dimension_numbers = #tpu.dot_dimension_numbers<[1], [0], [0], [1], [0, 0, 1, 1], [], []>} : vector<8x128xbf16>, vector<128x128xbf16>, vector<8x128xf32> -> vector<8x128xf32>
    %40 = arith.addf %37, %39 : vector<8x128xf32>
    %c0_17 = arith.constant 0 : index
    %c0_18 = arith.constant 0 : index
    %41 = vector.load %arg4[%c0_17, %c0_18] : memref<1x128xf32, #tpu.memory_space<vmem>>, vector<1x128xf32>
    %42 = vector.broadcast %41 : vector<1x128xf32> to vector<8x128xf32>
    %43 = arith.addf %40, %42 : vector<8x128xf32>
    %cst_19 = arith.constant 0.000000e+00 : f32
    %44 = vector.broadcast %cst_19 : f32 to vector<8x128xf32>
    %45 = arith.maximumf %43, %44 : vector<8x128xf32>
    %46 = arith.truncf %45 : vector<8x128xf32> to vector<8x128xbf16>
    %c0_20 = arith.constant 0 : index
    %c0_21 = arith.constant 0 : index
    %47 = vector.load %arg5[%c0_20, %c0_21] : memref<128x128xbf16, #tpu.memory_space<vmem>>, vector<128x128xbf16>
    %cst_22 = arith.constant dense<0.000000e+00> : vector<8x128xf32>
    %48 = tpu.matmul %46, %47, %cst_22 {dimension_numbers = #tpu.dot_dimension_numbers<[1], [0], [0], [1], [0, 0, 1, 1], [], []>} : vector<8x128xbf16>, vector<128x128xbf16>, vector<8x128xf32> -> vector<8x128xf32>
    %c0_23 = arith.constant 0 : index
    %c0_24 = arith.constant 0 : index
    %49 = vector.load %arg6[%c0_23, %c0_24] : memref<1x128xf32, #tpu.memory_space<vmem>>, vector<1x128xf32>
    %50 = vector.broadcast %49 : vector<1x128xf32> to vector<8x128xf32>
    %51 = arith.addf %48, %50 : vector<8x128xf32>
    %c0_25 = arith.constant 0 : index
    %c0_26 = arith.constant 0 : index
    %52 = vector.load %arg7[%c0_25, %c0_26] : memref<8x128xf32, #tpu.memory_space<vmem>>, vector<8x128xf32>
    tpu.vector_store %arg7[%c0_25, %c0_26], %51 {strides = array<i32>} : memref<8x128xf32, #tpu.memory_space<vmem>>, vector<8x128xf32>,
    return
  }
  func.func @transform_0(%arg0: i32) -> (i32, i32, i32) {
    %c0_i32 = arith.constant 0 : i32
    %c0_i32_0 = arith.constant 0 : i32
    %c0_i32_1 = arith.constant 0 : i32
    return %arg0, %c0_i32, %c0_i32_0 : i32, i32, i32
  }
  func.func @transform_1(%arg0: i32) -> (i32, i32) {
    %c0_i32 = arith.constant 0 : i32
    %c0_i32_0 = arith.constant 0 : i32
    %c0_i32_1 = arith.constant 0 : i32
    return %c0_i32, %c0_i32_0 : i32, i32
  }
  func.func @transform_2(%arg0: i32) -> (i32, i32) {
    %c0_i32 = arith.constant 0 : i32
    %c0_i32_0 = arith.constant 0 : i32
    %c0_i32_1 = arith.constant 0 : i32
    return %c0_i32, %c0_i32_0 : i32, i32
  }
  func.func @transform_3(%arg0: i32) -> (i32, i32) {
    %c0_i32 = arith.constant 0 : i32
    %c0_i32_0 = arith.constant 0 : i32
    %c0_i32_1 = arith.constant 0 : i32
    return %c0_i32, %c0_i32_0 : i32, i32
  }
  func.func @transform_4(%arg0: i32) -> (i32, i32) {
    %c0_i32 = arith.constant 0 : i32
    %c0_i32_0 = arith.constant 0 : i32
    %c0_i32_1 = arith.constant 0 : i32
    return %c0_i32, %c0_i32_0 : i32, i32
  }
  func.func @transform_5(%arg0: i32) -> (i32, i32) {
    %c0_i32 = arith.constant 0 : i32
    %c0_i32_0 = arith.constant 0 : i32
    %c0_i32_1 = arith.constant 0 : i32
    return %c0_i32, %c0_i32_0 : i32, i32
  }
  func.func @transform_6(%arg0: i32) -> (i32, i32) {
    %c0_i32 = arith.constant 0 : i32
    %c0_i32_0 = arith.constant 0 : i32
    return %arg0, %c0_i32 : i32, i32
  }
}

module attributes {stable_mosaic.version = 11 : i64} {
  func.func @effnet_head_kernel(%arg0: i32, %arg1: memref<8x256x128xbf16, #tpu.memory_space<vmem>>, %arg2: memref<128x128xbf16, #tpu.memory_space<vmem>>, %arg3: memref<128x128xbf16, #tpu.memory_space<vmem>>, %arg4: memref<1x128xf32, #tpu.memory_space<vmem>>, %arg5: memref<128x128xbf16, #tpu.memory_space<vmem>>, %arg6: memref<1x128xf32, #tpu.memory_space<vmem>>, %arg7: memref<8x128xf32, #tpu.memory_space<vmem>>) attributes {dimension_semantics = [#tpu.dimension_semantics<parallel>], iteration_bounds = array<i64: 2>, scalar_prefetch = 0 : i64, scratch_operands = 0 : i64, tpu.core_type = #tpu.core_type<tc>, window_params = [{transform_indices = @transform_0, window_bounds = array<i64: 8, 256, 128>}, {pipeline_mode = #tpu.pipeline_mode<synchronous>, transform_indices = @transform_1, window_bounds = array<i64: 128, 128>}, {pipeline_mode = #tpu.pipeline_mode<synchronous>, transform_indices = @transform_2, window_bounds = array<i64: 128, 128>}, {pipeline_mode = #tpu.pipeline_mode<synchronous>, transform_indices = @transform_3, window_bounds = array<i64: 1, 128>}, {pipeline_mode = #tpu.pipeline_mode<synchronous>, transform_indices = @transform_4, window_bounds = array<i64: 128, 128>}, {pipeline_mode = #tpu.pipeline_mode<synchronous>, transform_indices = @transform_5, window_bounds = array<i64: 1, 128>}, {transform_indices = @transform_6, window_bounds = array<i64: 8, 128>}]} {
    %c0 = arith.constant 0 : index
    %c0_0 = arith.constant 0 : index
    %c0_1 = arith.constant 0 : index
    %0 = vector.load %arg1[%c0, %c0_0, %c0_1] : memref<8x256x128xbf16, #tpu.memory_space<vmem>>, vector<8x256x128xbf16>
    %cst = arith.constant dense<0xFF80> : vector<8x128xbf16>
    %1 = vector.multi_reduction <maximumf>, %0, %cst [1] : vector<8x256x128xbf16> to vector<8x128xbf16>
    %cst_2 = arith.constant 0.000000e+00 : f32
    %2 = vector.broadcast %cst_2 : f32 to vector<8x128xf32>
    %3 = vector.extract_strided_slice %0 {offsets = [0, 0, 0], sizes = [8, 32, 128], strides = [1, 1, 1]} : vector<8x256x128xbf16> to vector<8x32x128xbf16>
    %4 = arith.extf %3 : vector<8x32x128xbf16> to vector<8x32x128xf32>
    %cst_3 = arith.constant dense<0.000000e+00> : vector<8x128xf32>
    %5 = vector.multi_reduction <add>, %4, %cst_3 [1] : vector<8x32x128xf32> to vector<8x128xf32>
    %6 = arith.addf %2, %5 : vector<8x128xf32>
    %7 = vector.extract_strided_slice %0 {offsets = [0, 32, 0], sizes = [8, 32, 128], strides = [1, 1, 1]} : vector<8x256x128xbf16> to vector<8x32x128xbf16>
    %8 = arith.extf %7 : vector<8x32x128xbf16> to vector<8x32x128xf32>
    %cst_4 = arith.constant dense<0.000000e+00> : vector<8x128xf32>
    %9 = vector.multi_reduction <add>, %8, %cst_4 [1] : vector<8x32x128xf32> to vector<8x128xf32>
    %10 = arith.addf %6, %9 : vector<8x128xf32>
    %11 = vector.extract_strided_slice %0 {offsets = [0, 64, 0], sizes = [8, 32, 128], strides = [1, 1, 1]} : vector<8x256x128xbf16> to vector<8x32x128xbf16>
    %12 = arith.extf %11 : vector<8x32x128xbf16> to vector<8x32x128xf32>
    %cst_5 = arith.constant dense<0.000000e+00> : vector<8x128xf32>
    %13 = vector.multi_reduction <add>, %12, %cst_5 [1] : vector<8x32x128xf32> to vector<8x128xf32>
    %14 = arith.addf %10, %13 : vector<8x128xf32>
    %15 = vector.extract_strided_slice %0 {offsets = [0, 96, 0], sizes = [8, 32, 128], strides = [1, 1, 1]} : vector<8x256x128xbf16> to vector<8x32x128xbf16>
    %16 = arith.extf %15 : vector<8x32x128xbf16> to vector<8x32x128xf32>
    %cst_6 = arith.constant dense<0.000000e+00> : vector<8x128xf32>
    %17 = vector.multi_reduction <add>, %16, %cst_6 [1] : vector<8x32x128xf32> to vector<8x128xf32>
    %18 = arith.addf %14, %17 : vector<8x128xf32>
    %19 = vector.extract_strided_slice %0 {offsets = [0, 128, 0], sizes = [8, 32, 128], strides = [1, 1, 1]} : vector<8x256x128xbf16> to vector<8x32x128xbf16>
    %20 = arith.extf %19 : vector<8x32x128xbf16> to vector<8x32x128xf32>
    %cst_7 = arith.constant dense<0.000000e+00> : vector<8x128xf32>
    %21 = vector.multi_reduction <add>, %20, %cst_7 [1] : vector<8x32x128xf32> to vector<8x128xf32>
    %22 = arith.addf %18, %21 : vector<8x128xf32>
    %23 = vector.extract_strided_slice %0 {offsets = [0, 160, 0], sizes = [8, 32, 128], strides = [1, 1, 1]} : vector<8x256x128xbf16> to vector<8x32x128xbf16>
    %24 = arith.extf %23 : vector<8x32x128xbf16> to vector<8x32x128xf32>
    %cst_8 = arith.constant dense<0.000000e+00> : vector<8x128xf32>
    %25 = vector.multi_reduction <add>, %24, %cst_8 [1] : vector<8x32x128xf32> to vector<8x128xf32>
    %26 = arith.addf %22, %25 : vector<8x128xf32>
    %27 = vector.extract_strided_slice %0 {offsets = [0, 192, 0], sizes = [8, 32, 128], strides = [1, 1, 1]} : vector<8x256x128xbf16> to vector<8x32x128xbf16>
    %28 = arith.extf %27 : vector<8x32x128xbf16> to vector<8x32x128xf32>
    %cst_9 = arith.constant dense<0.000000e+00> : vector<8x128xf32>
    %29 = vector.multi_reduction <add>, %28, %cst_9 [1] : vector<8x32x128xf32> to vector<8x128xf32>
    %30 = arith.addf %26, %29 : vector<8x128xf32>
    %31 = vector.extract_strided_slice %0 {offsets = [0, 224, 0], sizes = [8, 32, 128], strides = [1, 1, 1]} : vector<8x256x128xbf16> to vector<8x32x128xbf16>
    %32 = arith.extf %31 : vector<8x32x128xbf16> to vector<8x32x128xf32>
    %cst_10 = arith.constant dense<0.000000e+00> : vector<8x128xf32>
    %33 = vector.multi_reduction <add>, %32, %cst_10 [1] : vector<8x32x128xf32> to vector<8x128xf32>
    %34 = arith.addf %30, %33 : vector<8x128xf32>
    %35 = arith.truncf %34 : vector<8x128xf32> to vector<8x128xbf16>
    %c0_11 = arith.constant 0 : index
    %c0_12 = arith.constant 0 : index
    %36 = vector.load %arg2[%c0_11, %c0_12] : memref<128x128xbf16, #tpu.memory_space<vmem>>, vector<128x128xbf16>
    %cst_13 = arith.constant dense<0.000000e+00> : vector<8x128xf32>
    %37 = tpu.matmul %35, %36, %cst_13 {dimension_numbers = #tpu.dot_dimension_numbers<[1], [0], [0], [1], [0, 0, 1, 1], [], []>} : vector<8x128xbf16>, vector<128x128xbf16>, vector<8x128xf32> -> vector<8x128xf32>
    %c0_14 = arith.constant 0 : index
    %c0_15 = arith.constant 0 : index
    %38 = vector.load %arg3[%c0_14, %c0_15] : memref<128x128xbf16, #tpu.memory_space<vmem>>, vector<128x128xbf16>
    %cst_16 = arith.constant dense<0.000000e+00> : vector<8x128xf32>
    %39 = tpu.matmul %1, %38, %cst_16 {dimension_numbers = #tpu.dot_dimension_numbers<[1], [0], [0], [1], [0, 0, 1, 1], [], []>} : vector<8x128xbf16>, vector<128x128xbf16>, vector<8x128xf32> -> vector<8x128xf32>
    %40 = arith.addf %37, %39 : vector<8x128xf32>
    %c0_17 = arith.constant 0 : index
    %c0_18 = arith.constant 0 : index
    %41 = vector.load %arg4[%c0_17, %c0_18] : memref<1x128xf32, #tpu.memory_space<vmem>>, vector<1x128xf32>
    %42 = vector.broadcast %41 : vector<1x128xf32> to vector<8x128xf32>
    %43 = arith.addf %40, %42 : vector<8x128xf32>
    %cst_19 = arith.constant 0.000000e+00 : f32
    %44 = vector.broadcast %cst_19 : f32 to vector<8x128xf32>
    %45 = arith.maximumf %43, %44 : vector<8x128xf32>
    %46 = arith.truncf %45 : vector<8x128xf32> to vector<8x128xbf16>
    %c0_20 = arith.constant 0 : index
    %c0_21 = arith.constant 0 : index
    %47 = vector.load %arg5[%c0_20, %c0_21] : memref<128x128xbf16, #tpu.memory_space<vmem>>, vector<128x128xbf16>
    %cst_22 = arith.constant dense<0.000000e+00> : vector<8x128xf32>
    %48 = tpu.matmul %46, %47, %cst_22 {dimension_numbers = #tpu.dot_dimension_numbers<[1], [0], [0], [1], [0, 0, 1, 1], [], []>} : vector<8x128xbf16>, vector<128x128xbf16>, vector<8x128xf32> -> vector<8x128xf32>
    %c0_23 = arith.constant 0 : index
    %c0_24 = arith.constant 0 : index
    %49 = vector.load %arg6[%c0_23, %c0_24] : memref<1x128xf32, #tpu.memory_space<vmem>>, vector<1x128xf32>
    %50 = vector.broadcast %49 : vector<1x128xf32> to vector<8x128xf32>
    %51 = arith.addf %48, %50 : vector<8x128xf32>
    %c0_25 = arith.constant 0 : index
    %c0_26 = arith.constant 0 : index
    %52 = vector.load %arg7[%c0_25, %c0_26] : memref<8x128xf32, #tpu.memory_space<vmem>>, vector<8x128xf32>
    tpu.vector_store %arg7[%c0_25, %c0_26], %51 {strides = array<i32>} : memref<8x128xf32, #tpu.memory_space<vmem>>, vector<8x128xf32>,
    return
  }
  func.func @transform_0(%arg0: i32) -> (i32, i32, i32) {
    %c0_i32 = arith.constant 0 : i32
    %c0_i32_0 = arith.constant 0 : i32
    %c0_i32_1 = arith.constant 0 : i32
    return %arg0, %c0_i32, %c0_i32_0 : i32, i32, i32
  }
  func.func @transform_1(%arg0: i32) -> (i32, i32) {
    %c0_i32 = arith.constant 0 : i32
    %c0_i32_0 = arith.constant 0 : i32
    %c0_i32_1 = arith.constant 0 : i32
    return %c0_i32, %c0_i32_0 : i32, i32
  }
  func.func @transform_2(%arg0: i32) -> (i32, i32) {
    %c0_i32 = arith.constant 0 : i32
    %c0_i32_0 = arith.constant 0 : i32
    %c0_i32_1 = arith.constant 0 : i32
    return %c0_i32, %c0_i32_0 : i32, i32
  }
  func.func @transform_3(%arg0: i32) -> (i32, i32) {
    %c0_i32 = arith.constant 0 : i32
    %c0_i32_0 = arith.constant 0 : i32
    %c0_i32_1 = arith.constant 0 : i32
    return %c0_i32, %c0_i32_0 : i32, i32
  }
  func.func @transform_4(%arg0: i32) -> (i32, i32) {
    %c0_i32 = arith.constant 0 : i32
    %c0_i32_0 = arith.constant 0 : i32
    %c0_i32_1 = arith.constant 0 : i32
    return %c0_i32, %c0_i32_0 : i32, i32
  }
  func.func @transform_5(%arg0: i32) -> (i32, i32) {
    %c0_i32 = arith.constant 0 : i32
    %c0_i32_0 = arith.constant 0 : i32
    %c0_i32_1 = arith.constant 0 : i32
    return %c0_i32, %c0_i32_0 : i32, i32
  }
  func.func @transform_6(%arg0: i32) -> (i32, i32) {
    %c0_i32 = arith.constant 0 : i32
    %c0_i32_0 = arith.constant 0 : i32
    return %arg0, %c0_i32 : i32, i32
  }
}

</mosaic_0001>

<llo_original>
// kernel: tpu_custom_call.1
$region0: #{tpu_custom_call.1}
  #allocation0 [shape = 'u32[]', space=smem, size = 0x4, offset = 0x4, fixed_abs, tag = 'smem constant byte address 0x4 - core index']
  #allocation1 [shape = 'u32[144,128]{1,0:T(1,128)}', space=vmem, size = 0x12000, scoped, tag = 'internal scratch']
  %s0 = inlined_call_operand.hbm [shape: bf16[16,256,128], index: 0, kind: input, shape index: {}]
  %s1 = inlined_call_operand.hbm [shape: bf16[128,128], index: 1, kind: input, shape index: {}]
  %s2 = inlined_call_operand.hbm [shape: bf16[128,128], index: 2, kind: input, shape index: {}]
  %s3 = inlined_call_operand.vmem [shape: f32[1,128], index: 3, kind: input, shape index: {}]
  %s4 = inlined_call_operand.hbm [shape: bf16[128,128], index: 4, kind: input, shape index: {}]
  %s5 = inlined_call_operand.vmem [shape: f32[1,128], index: 5, kind: input, shape index: {}]
  %s6 = inlined_call_operand.hbm [shape: f32[16,128], index: 6, kind: output, shape index: {}]
  %s7 = sld [smem:[#allocation0]]
  $region73: #{tpu_custom_call.1} parent=0
    _
  %s9 = ssub.s32 1, %s7
  %s10 = scalar_select 0, %s9, %s7
  $region1: #{tpu_custom_call.1} parent=0
    #allocation2 [shape = 'u8[1048576]{0}', space=vmem, size = 0x100000, scoped, tag = 'input window, operand 0']
    #allocation3 [shape = 's32[2]{0}', space=sflag, size = 0x8, scoped, tag = 'scoped memory for tpu_custom_call.1']
    #allocation4 [shape = 's32[2]{0}', space=sflag, size = 0x8, scoped, tag = 'scoped memory for tpu_custom_call.1']
    #allocation5 [shape = 'u8[32768]{0}', space=vmem, size = 0x8000, scoped, tag = 'input window, operand 1, single buffered']
    #allocation6 [shape = 's32[1]{0}', space=sflag, size = 0x4, scoped, tag = 'scoped memory for tpu_custom_call.1']
    #allocation7 [shape = 'u8[32768]{0}', space=vmem, size = 0x8000, scoped, tag = 'input window, operand 2, single buffered']
    #allocation8 [shape = 'u8[32768]{0}', space=vmem, size = 0x8000, scoped, tag = 'input window, operand 4, single buffered']
    #allocation9 [shape = 's32[1]{0}', space=sflag, size = 0x4, scoped, tag = 'scoped memory for tpu_custom_call.1']
    #allocation10 [shape = 'u8[8192]{0}', space=vmem, size = 0x2000, scoped, tag = 'output window, operand 0']
    %11 = vsyncpa [#allocation3], 0
    %s12 = scalar_lea.sflag [#allocation3], 1
    %13 = vsyncpa %s12, 0
    %14 = vsyncpa [#allocation6], 0
    %15 = vsyncpa [#allocation9], 0
    %16 = vsyncpa [#allocation4], 0
    %s17 = scalar_lea.sflag [#allocation4], 1
    %18 = vsyncpa %s17, 0
    loop: start=0, step=1, limit=4
    $region2: #{tpu_custom_call.1} parent=1 // loop_pre_header
      _
    $region3: #{tpu_custom_call.1} parent=1 // loop_header
      %s20 = sphi 0, %s24
      %p21 = scmp.ge.s32.totalorder %s20, 4
      %s30 = sphi 0, %s32
      %s33 = sphi 0, %s30
      %s34 = sphi 0, %s33
      %s50 = sphi 0, %s34
      %s54 = sphi 0, %s54
      %s56 = sphi 0, %s54
      %s57 = sphi 0, %s56
      %s71 = sphi 0, %s57
      %s75 = sphi 0, %s75
      %s77 = sphi 0, %s75
      %s78 = sphi 0, %s77
      %s92 = sphi 0, %s78
      %s96 = sphi 0, %s96
      %s98 = sphi 0, %s96
      %s99 = sphi 0, %s98
      %s113 = sphi 0, %s99
      %s117 = sphi 0, %s117
      %s119 = sphi 0, %s117
      %s120 = sphi 0, %s119
      %s134 = sphi 0, %s120
      %s138 = sphi 0, %s138
      %s140 = sphi 0, %s138
      %s141 = sphi 0, %s140
      %s155 = sphi 0, %s141
      %s161 = sphi 0, %s163
      %s164 = sphi 0, %s161
      %s165 = sphi 0, %s164
      %s181 = sphi 0, %s165
    $region4: #{tpu_custom_call.1} parent=1 // loop_header_branch
      %23 = sbr.rel (%p21) target = $region8
    $region5: #{tpu_custom_call.1} parent=1 // loop_body
      %s25 = ssub.s32 %s20, 1
      %s26 = ssub.s32 %s20, 2
      %s27 = sadd.s32 %s20, 1
      %s28 = ssub.s32 %s20, %s27
      %p29 = scmp.eq.s32.totalorder %s28, 0
      %s31 = sadd.s32 %s30, 1
      %s32 = scalar_select %p29, %s30, %s31
      %p35 = pneg %p29
      %p36 = scmp.eq.s32.totalorder %s20, 1
      %p37 = por %p35, %p36
      %p38 = scmp.ne.s32.totalorder %s30, %s33
      %p39 = scmp.eq.s32.totalorder %s20, 0
      %p40 = por %p38, %p39
      %p41 = scmp.ne.s32.totalorder %s30, %s33
      %p42 = scmp.eq.s32.totalorder %s25, 1
      %p43 = por %p41, %p42
      %p44 = scmp.ne.s32.totalorder %s33, %s34
      %p45 = scmp.eq.s32.totalorder %s25, 0
      %p46 = por %p44, %p45
      %p47 = scmp.ne.s32.totalorder %s33, %s34
      %p48 = scmp.eq.s32.totalorder %s26, 1
      %p49 = por %p47, %p48
      %p51 = scmp.ne.s32.totalorder %s34, %s50
      %p52 = scmp.eq.s32.totalorder %s26, 0
      %p53 = por %p51, %p52
      %s55 = sadd.s32 %s54, 1
      %p58 = scmp.eq.s32.totalorder %s20, 1
      %p59 = scmp.ne.s32.totalorder %s54, %s56
      %p60 = scmp.eq.s32.totalorder %s20, 0
      %p61 = por %p59, %p60
      %p62 = scmp.ne.s32.totalorder %s54, %s56
      %p63 = scmp.eq.s32.totalorder %s25, 1
      %p64 = por %p62, %p63
      %p65 = scmp.ne.s32.totalorder %s56, %s57
      %p66 = scmp.eq.s32.totalorder %s25, 0
      %p67 = por %p65, %p66
      %p68 = scmp.ne.s32.totalorder %s56, %s57
      %p69 = scmp.eq.s32.totalorder %s26, 1
      %p70 = por %p68, %p69
      %p72 = scmp.ne.s32.totalorder %s57, %s71
      %p73 = scmp.eq.s32.totalorder %s26, 0
      %p74 = por %p72, %p73
      %s76 = sadd.s32 %s75, 1
      %p79 = scmp.eq.s32.totalorder %s20, 1
      %p80 = scmp.ne.s32.totalorder %s75, %s77
      %p81 = scmp.eq.s32.totalorder %s20, 0
      %p82 = por %p80, %p81
      %p83 = scmp.ne.s32.totalorder %s75, %s77
      %p84 = scmp.eq.s32.totalorder %s25, 1
      %p85 = por %p83, %p84
      %p86 = scmp.ne.s32.totalorder %s77, %s78
      %p87 = scmp.eq.s32.totalorder %s25, 0
      %p88 = por %p86, %p87
      %p89 = scmp.ne.s32.totalorder %s77, %s78
      %p90 = scmp.eq.s32.totalorder %s26, 1
      %p91 = por %p89, %p90
      %p93 = scmp.ne.s32.totalorder %s78, %s92
      %p94 = scmp.eq.s32.totalorder %s26, 0
      %p95 = por %p93, %p94
      %s97 = sadd.s32 %s96, 1
      %p100 = scmp.eq.s32.totalorder %s20, 1
      %p101 = scmp.ne.s32.totalorder %s96, %s98
      %p102 = scmp.eq.s32.totalorder %s20, 0
      %p103 = por %p101, %p102
      %p104 = scmp.ne.s32.totalorder %s96, %s98
      %p105 = scmp.eq.s32.totalorder %s25, 1
      %p106 = por %p104, %p105
      %p107 = scmp.ne.s32.totalorder %s98, %s99
      %p108 = scmp.eq.s32.totalorder %s25, 0
      %p109 = por %p107, %p108
      %p110 = scmp.ne.s32.totalorder %s98, %s99
      %p111 = scmp.eq.s32.totalorder %s26, 1
      %p112 = por %p110, %p111
      %p114 = scmp.ne.s32.totalorder %s99, %s113
      %p115 = scmp.eq.s32.totalorder %s26, 0
      %p116 = por %p114, %p115
      %s118 = sadd.s32 %s117, 1
      %p121 = scmp.eq.s32.totalorder %s20, 1
      %p122 = scmp.ne.s32.totalorder %s117, %s119
      %p123 = scmp.eq.s32.totalorder %s20, 0
      %p124 = por %p122, %p123
      %p125 = scmp.ne.s32.totalorder %s117, %s119
      %p126 = scmp.eq.s32.totalorder %s25, 1
      %p127 = por %p125, %p126
      %p128 = scmp.ne.s32.totalorder %s119, %s120
      %p129 = scmp.eq.s32.totalorder %s25, 0
      %p130 = por %p128, %p129
      %p131 = scmp.ne.s32.totalorder %s119, %s120
      %p132 = scmp.eq.s32.totalorder %s26, 1
      %p133 = por %p131, %p132
      %p135 = scmp.ne.s32.totalorder %s120, %s134
      %p136 = scmp.eq.s32.totalorder %s26, 0
      %p137 = por %p135, %p136
      %s139 = sadd.s32 %s138, 1
      %p142 = scmp.eq.s32.totalorder %s20, 1
      %p143 = scmp.ne.s32.totalorder %s138, %s140
      %p144 = scmp.eq.s32.totalorder %s20, 0
      %p145 = por %p143, %p144
      %p146 = scmp.ne.s32.totalorder %s138, %s140
      %p147 = scmp.eq.s32.totalorder %s25, 1
      %p148 = por %p146, %p147
      %p149 = scmp.ne.s32.totalorder %s140, %s141
      %p150 = scmp.eq.s32.totalorder %s25, 0
      %p151 = por %p149, %p150
      %p152 = scmp.ne.s32.totalorder %s140, %s141
      %p153 = scmp.eq.s32.totalorder %s26, 1
      %p154 = por %p152, %p153
      %p156 = scmp.ne.s32.totalorder %s141, %s155
      %p157 = scmp.eq.s32.totalorder %s26, 0
      %p158 = por %p156, %p157
      %s159 = ssub.s32 %s20, %s27
      %p160 = scmp.eq.s32.totalorder %s159, 0
      %s162 = sadd.s32 %s161, 1
      %s163 = scalar_select %p160, %s161, %s162
      %p166 = pneg %p160
      %p167 = scmp.eq.s32.totalorder %s20, 1
      %p168 = por %p166, %p167
      %p169 = scmp.ne.s32.totalorder %s161, %s164
      %p170 = scmp.eq.s32.totalorder %s20, 0
      %p171 = por %p169, %p170
      %p172 = scmp.ne.s32.totalorder %s161, %s164
      %p173 = scmp.eq.s32.totalorder %s25, 1
      %p174 = por %p172, %p173
      %p175 = scmp.ne.s32.totalorder %s164, %s165
      %p176 = scmp.eq.s32.totalorder %s25, 0
      %p177 = por %p175, %p176
      %p178 = scmp.ne.s32.totalorder %s164, %s165
      %p179 = scmp.eq.s32.totalorder %s26, 1
      %p180 = por %p178, %p179
      %p182 = scmp.ne.s32.totalorder %s165, %s181
      %p183 = scmp.eq.s32.totalorder %s26, 0
      %p184 = por %p182, %p183
      %p185 = scmp.le.s32.totalorder 1, %s20
      %p186 = scmp.lt.s32.totalorder %s20, 3
      %p187 = pnand %p185, %p186
      %p188 = pneg %p187
      // Predicated region
      $region9: #{tpu_custom_call.1} parent=5 // pred_check
        _
      $region10: #{tpu_custom_call.1} parent=5 // pred_check_branch
        %190 = sbr.rel (%p187) target = $region12
      $region11: #{tpu_custom_call.1} parent=5 // pred_region
        %s191 = ssub.s32 %s20, 1
        // Predicated region
        $region13: #{tpu_custom_call.1} parent=11 // pred_check
          %p192 = pneg %p67
        $region14: #{tpu_custom_call.1} parent=11 // pred_check_branch
          %194 = sbr.rel (%p192) target = $region16
        $region15: #{tpu_custom_call.1} parent=11 // pred_region
          %s196 = ssub.s32 1024, 1024
          %197 = vsyncadd [#allocation6], %s196
          %s198 = sshll.u32 [#allocation5], 4
          %s199 = int_to_ptr.vmem [resolvable:$true] %s198
          %204 = dma.hbm_to_vmem [thread:$0]  %s1, 1024, %s199, [#allocation6], 64, 64, 4
        $region16: #{tpu_custom_call.1} parent=11 // pred_fallthru
          _
        // Predicated region
        $region17: #{tpu_custom_call.1} parent=11 // pred_check
          %p205 = pneg %p88
        $region18: #{tpu_custom_call.1} parent=11 // pred_check_branch
          %207 = sbr.rel (%p205) target = $region20
        $region19: #{tpu_custom_call.1} parent=11 // pred_region
          %s209 = ssub.s32 1024, 1024
          %210 = vsyncadd [#allocation6], %s209
          %s211 = sshll.u32 [#allocation7], 4
          %s212 = int_to_ptr.vmem [resolvable:$true] %s211
          %217 = dma.hbm_to_vmem [thread:$0]  %s2, 1024, %s212, [#allocation6], 64, 64, 4
        $region20: #{tpu_custom_call.1} parent=11 // pred_fallthru
          _
        // Predicated region
        $region21: #{tpu_custom_call.1} parent=11 // pred_check
          %p218 = pneg %p109
        $region22: #{tpu_custom_call.1} parent=11 // pred_check_branch
          %220 = sbr.rel (%p218) target = $region24
        $region23: #{tpu_custom_call.1} parent=11 // pred_region
          _
        $region24: #{tpu_custom_call.1} parent=11 // pred_fallthru
          _
        // Predicated region
        $region25: #{tpu_custom_call.1} parent=11 // pred_check
          %p221 = pneg %p130
        $region26: #{tpu_custom_call.1} parent=11 // pred_check_branch
          %223 = sbr.rel (%p221) target = $region28
        $region27: #{tpu_custom_call.1} parent=11 // pred_region
          %s225 = ssub.s32 1024, 1024
          %226 = vsyncadd [#allocation9], %s225
          %s227 = sshll.u32 [#allocation8], 4
          %s228 = int_to_ptr.vmem [resolvable:$true] %s227
          %233 = dma.hbm_to_vmem [thread:$0]  %s4, 1024, %s228, [#allocation9], 64, 64, 4
        $region28: #{tpu_custom_call.1} parent=11 // pred_fallthru
          _
        // Predicated region
        $region29: #{tpu_custom_call.1} parent=11 // pred_check
          %p234 = pneg %p151
        $region30: #{tpu_custom_call.1} parent=11 // pred_check_branch
          %236 = sbr.rel (%p234) target = $region32
        $region31: #{tpu_custom_call.1} parent=11 // pred_region
          _
        $region32: #{tpu_custom_call.1} parent=11 // pred_fallthru
          _
      $region12: #{tpu_custom_call.1} parent=5 // pred_fallthru
        _
      %p237 = scmp.lt.s32.totalorder %s20, 2
      // Predicated region
      $region33: #{tpu_custom_call.1} parent=5 // pred_check
        %p238 = pneg %p237
      $region34: #{tpu_custom_call.1} parent=5 // pred_check_branch
        %240 = sbr.rel (%p238) target = $region36
      $region35: #{tpu_custom_call.1} parent=5 // pred_region
        // Predicated region
        $region37: #{tpu_custom_call.1} parent=35 // pred_check
          %p241 = pneg %p40
        $region38: #{tpu_custom_call.1} parent=35 // pred_check_branch
          %243 = sbr.rel (%p241) target = $region40
        $region39: #{tpu_custom_call.1} parent=35 // pred_region
          %s244 = sand.u32 %s30, 1
          %s245 = scalar_lea.sflag [#allocation3], %s244
          %s246 = sand.u32 %s30, 1
          %s247 = smul.addr %s246, 1024
          %s248 = scalar_lea.vmem [#allocation2], %s247
          %s249 = smul.u32 8, %s20
          %s251 = ssub.s32 16384, 16384
          %252 = vsyncadd %s245, %s251
          %s253 = smul.addr %s249, 32
          %s254 = smul.addr %s253, 64
          %s255 = scalar_lea.hbm %s0, %s254
          %s256 = sshll.u32 %s248, 4
          %s257 = int_to_ptr.vmem [resolvable:$true] %s256
          %262 = dma.hbm_to_vmem [thread:$0]  %s255, 16384, %s257, %s245, 64, 64, 4
        $region40: #{tpu_custom_call.1} parent=35 // pred_fallthru
          _
      $region36: #{tpu_custom_call.1} parent=5 // pred_fallthru
        _
      %p263 = scmp.le.s32.totalorder 1, %s20
      %p264 = scmp.lt.s32.totalorder %s20, 3
      %p265 = pnand %p263, %p264
      %p266 = pneg %p265
      // Predicated region
      $region41: #{tpu_custom_call.1} parent=5 // pred_check
        _
      $region42: #{tpu_custom_call.1} parent=5 // pred_check_branch
        %268 = sbr.rel (%p265) target = $region44
      $region43: #{tpu_custom_call.1} parent=5 // pred_region
        %s269 = ssub.s32 %s20, 1
        %s270 = sand.u32 %s33, 1
        %s271 = scalar_lea.sflag [#allocation3], %s270
        %s272 = sand.u32 %s33, 1
        %s273 = smul.addr %s272, 1024
        %s274 = scalar_lea.vmem [#allocation2], %s273
        // Predicated region
        $region45: #{tpu_custom_call.1} parent=43 // pred_check
          %p275 = pneg %p46
        $region46: #{tpu_custom_call.1} parent=43 // pred_check_branch
          %277 = sbr.rel (%p275) target = $region48
        $region47: #{tpu_custom_call.1} parent=43 // pred_region
          %278 = dma.done %s271, 16384
        $region48: #{tpu_custom_call.1} parent=43 // pred_fallthru
          _
        // Predicated region
        $region49: #{tpu_custom_call.1} parent=43 // pred_check
          %p279 = pneg %p67
        $region50: #{tpu_custom_call.1} parent=43 // pred_check_branch
          %281 = sbr.rel (%p279) target = $region52
        $region51: #{tpu_custom_call.1} parent=43 // pred_region
          %282 = dma.done [#allocation6], 1024
        $region52: #{tpu_custom_call.1} parent=43 // pred_fallthru
          _
        // Predicated region
        $region53: #{tpu_custom_call.1} parent=43 // pred_check
          %p283 = pneg %p88
        $region54: #{tpu_custom_call.1} parent=43 // pred_check_branch
          %285 = sbr.rel (%p283) target = $region56
        $region55: #{tpu_custom_call.1} parent=43 // pred_region
          %286 = dma.done [#allocation6], 1024
        $region56: #{tpu_custom_call.1} parent=43 // pred_fallthru
          _
        // Predicated region
        $region57: #{tpu_custom_call.1} parent=43 // pred_check
          %p287 = pneg %p130
        $region58: #{tpu_custom_call.1} parent=43 // pred_check_branch
          %289 = sbr.rel (%p287) target = $region60
        $region59: #{tpu_custom_call.1} parent=43 // pred_region
          %290 = dma.done [#allocation9], 1024
        $region60: #{tpu_custom_call.1} parent=43 // pred_fallthru
          _
        %s291 = sand.u32 %s33, 1
        %s292 = scalar_lea.sflag [#allocation3], %s291
        %s293 = sand.u32 %s33, 1
        %s294 = smul.addr %s293, 1024
        %s295 = scalar_lea.vmem [#allocation2], %s294
        %p296 = pneg %p46
        %p297 = pneg %p43
        %p298 = pneg %p67
        %p299 = pneg %p64
        %p300 = pneg %p88
        %p301 = pneg %p85
        %p302 = pneg %p109
        %p303 = pneg %p106
        %p304 = pneg %p130
        %p305 = pneg %p127
        %p306 = pneg %p151
        %p307 = pneg %p148
        %p308 = pneg %p177
        %p309 = pneg %p174
        %s310 = sand.u32 %s164, 1
        %s311 = scalar_lea.sflag [#allocation4], %s310
        %s312 = sand.u32 %s164, 1
        %s313 = smul.addr %s312, 8
        %s314 = scalar_lea.vmem [#allocation10], %s313
        %s315 = smul.u32 8, %s25
        %v317 = vld [vmem:[%s274] sm:$0xf]
        %v318 = vld [vmem:[%s274 + $0x4] sm:$0xf]
        %v319 = vld [vmem:[%s274 + $0x8] sm:$0xf]
        %v320 = vld [vmem:[%s274 + $0xc] sm:$0xf]
        %v321 = vld [vmem:[%s274 + $0x10] sm:$0xf]
        %v322 = vld [vmem:[%s274 + $0x14] sm:$0xf]
        %v323 = vld [vmem:[%s274 + $0x18] sm:$0xf]
        %v324 = vld [vmem:[%s274 + $0x1c] sm:$0xf]
        %v325 = vld [vmem:[%s274 + $0x20] sm:$0xf]
        %v326 = vld [vmem:[%s274 + $0x24] sm:$0xf]
        %v327 = vld [vmem:[%s274 + $0x28] sm:$0xf]
        %v328 = vld [vmem:[%s274 + $0x2c] sm:$0xf]
        %v329 = vld [vmem:[%s274 + $0x30] sm:$0xf]
        %v330 = vld [vmem:[%s274 + $0x34] sm:$0xf]
        %v331 = vld [vmem:[%s274 + $0x38] sm:$0xf]
        %v332 = vld [vmem:[%s274 + $0x3c] sm:$0xf]
        %v333 = vld [vmem:[%s274 + $0x40] sm:$0xf]
        %v334 = vld [vmem:[%s274 + $0x44] sm:$0xf]
        %v335 = vld [vmem:[%s274 + $0x48] sm:$0xf]
        %v336 = vld [vmem:[%s274 + $0x4c] sm:$0xf]
        %v337 = vld [vmem:[%s274 + $0x50] sm:$0xf]
        %v338 = vld [vmem:[%s274 + $0x54] sm:$0xf]
        %v339 = vld [vmem:[%s274 + $0x58] sm:$0xf]
        %v340 = vld [vmem:[%s274 + $0x5c] sm:$0xf]
        %v341 = vld [vmem:[%s274 + $0x60] sm:$0xf]
        %v342 = vld [vmem:[%s274 + $0x64] sm:$0xf]
        %v343 = vld [vmem:[%s274 + $0x68] sm:$0xf]
        %v344 = vld [vmem:[%s274 + $0x6c] sm:$0xf]
        %v345 = vld [vmem:[%s274 + $0x70] sm:$0xf]
        %v346 = vld [vmem:[%s274 + $0x74] sm:$0xf]
        %v347 = vld [vmem:[%s274 + $0x78] sm:$0xf]
        %v348 = vld [vmem:[%s274 + $0x7c] sm:$0xf]
        %v349 = vld [vmem:[%s274 + $0x80] sm:$0xf]
        %v350 = vld [vmem:[%s274 + $0x84] sm:$0xf]
        %v351 = vld [vmem:[%s274 + $0x88] sm:$0xf]
        %v352 = vld [vmem:[%s274 + $0x8c] sm:$0xf]
        %v353 = vld [vmem:[%s274 + $0x90] sm:$0xf]
        %v354 = vld [vmem:[%s274 + $0x94] sm:$0xf]
        %v355 = vld [vmem:[%s274 + $0x98] sm:$0xf]
        %v356 = vld [vmem:[%s274 + $0x9c] sm:$0xf]
        %v357 = vld [vmem:[%s274 + $0xa0] sm:$0xf]
        %v358 = vld [vmem:[%s274 + $0xa4] sm:$0xf]
        %v359 = vld [vmem:[%s274 + $0xa8] sm:$0xf]
        %v360 = vld [vmem:[%s274 + $0xac] sm:$0xf]
        %v361 = vld [vmem:[%s274 + $0xb0] sm:$0xf]
        %v362 = vld [vmem:[%s274 + $0xb4] sm:$0xf]
        %v363 = vld [vmem:[%s274 + $0xb8] sm:$0xf]
        %v364 = vld [vmem:[%s274 + $0xbc] sm:$0xf]
        %v365 = vld [vmem:[%s274 + $0xc0] sm:$0xf]
        %v366 = vld [vmem:[%s274 + $0xc4] sm:$0xf]
        %v367 = vld [vmem:[%s274 + $0xc8] sm:$0xf]
        %v368 = vld [vmem:[%s274 + $0xcc] sm:$0xf]
        %v369 = vld [vmem:[%s274 + $0xd0] sm:$0xf]
        %v370 = vld [vmem:[%s274 + $0xd4] sm:$0xf]
        %v371 = vld [vmem:[%s274 + $0xd8] sm:$0xf]
        %v372 = vld [vmem:[%s274 + $0xdc] sm:$0xf]
        %v373 = vld [vmem:[%s274 + $0xe0] sm:$0xf]
        %v374 = vld [vmem:[%s274 + $0xe4] sm:$0xf]
        %v375 = vld [vmem:[%s274 + $0xe8] sm:$0xf]
        %v376 = vld [vmem:[%s274 + $0xec] sm:$0xf]
        %v377 = vld [vmem:[%s274 + $0xf0] sm:$0xf]
        %v378 = vld [vmem:[%s274 + $0xf4] sm:$0xf]
        %v379 = vld [vmem:[%s274 + $0xf8] sm:$0xf]
        %v380 = vld [vmem:[%s274 + $0xfc] sm:$0xf]
        %v381 = vld [vmem:[%s274 + $0x100] sm:$0xf]
        %v382 = vld [vmem:[%s274 + $0x104] sm:$0xf]
        %v383 = vld [vmem:[%s274 + $0x108] sm:$0xf]
        %v384 = vld [vmem:[%s274 + $0x10c] sm:$0xf]
        %v385 = vld [vmem:[%s274 + $0x110] sm:$0xf]
        %v386 = vld [vmem:[%s274 + $0x114] sm:$0xf]
        %v387 = vld [vmem:[%s274 + $0x118] sm:$0xf]
        %v388 = vld [vmem:[%s274 + $0x11c] sm:$0xf]
        %v389 = vld [vmem:[%s274 + $0x120] sm:$0xf]
        %v390 = vld [vmem:[%s274 + $0x124] sm:$0xf]
        %v391 = vld [vmem:[%s274 + $0x128] sm:$0xf]
        %v392 = vld [vmem:[%s274 + $0x12c] sm:$0xf]
        %v393 = vld [vmem:[%s274 + $0x130] sm:$0xf]
        %v394 = vld [vmem:[%s274 + $0x134] sm:$0xf]
        %v395 = vld [vmem:[%s274 + $0x138] sm:$0xf]
        %v396 = vld [vmem:[%s274 + $0x13c] sm:$0xf]
        %v397 = vld [vmem:[%s274 + $0x140] sm:$0xf]
        %v398 = vld [vmem:[%s274 + $0x144] sm:$0xf]
        %v399 = vld [vmem:[%s274 + $0x148] sm:$0xf]
        %v400 = vld [vmem:[%s274 + $0x14c] sm:$0xf]
        %v401 = vld [vmem:[%s274 + $0x150] sm:$0xf]
        %v402 = vld [vmem:[%s274 + $0x154] sm:$0xf]
        %v403 = vld [vmem:[%s274 + $0x158] sm:$0xf]
        %v404 = vld [vmem:[%s274 + $0x15c] sm:$0xf]
        %v405 = vld [vmem:[%s274 + $0x160] sm:$0xf]
        %v406 = vld [vmem:[%s274 + $0x164] sm:$0xf]
        %v407 = vld [vmem:[%s274 + $0x168] sm:$0xf]
        %v408 = vld [vmem:[%s274 + $0x16c] sm:$0xf]
        %v409 = vld [vmem:[%s274 + $0x170] sm:$0xf]
        %v410 = vld [vmem:[%s274 + $0x174] sm:$0xf]
        %v411 = vld [vmem:[%s274 + $0x178] sm:$0xf]
        %v412 = vld [vmem:[%s274 + $0x17c] sm:$0xf]
        %v413 = vld [vmem:[%s274 + $0x180] sm:$0xf]
        %v414 = vld [vmem:[%s274 + $0x184] sm:$0xf]
        %v415 = vld [vmem:[%s274 + $0x188] sm:$0xf]
        %v416 = vld [vmem:[%s274 + $0x18c] sm:$0xf]
        %v417 = vld [vmem:[%s274 + $0x190] sm:$0xf]
        %v418 = vld [vmem:[%s274 + $0x194] sm:$0xf]
        %v419 = vld [vmem:[%s274 + $0x198] sm:$0xf]
        %v420 = vld [vmem:[%s274 + $0x19c] sm:$0xf]
        %v421 = vld [vmem:[%s274 + $0x1a0] sm:$0xf]
        %v422 = vld [vmem:[%s274 + $0x1a4] sm:$0xf]
        %v423 = vld [vmem:[%s274 + $0x1a8] sm:$0xf]
        %v424 = vld [vmem:[%s274 + $0x1ac] sm:$0xf]
        %v425 = vld [vmem:[%s274 + $0x1b0] sm:$0xf]
        %v426 = vld [vmem:[%s274 + $0x1b4] sm:$0xf]
        %v427 = vld [vmem:[%s274 + $0x1b8] sm:$0xf]
        %v428 = vld [vmem:[%s274 + $0x1bc] sm:$0xf]
        %v429 = vld [vmem:[%s274 + $0x1c0] sm:$0xf]
        %v430 = vld [vmem:[%s274 + $0x1c4] sm:$0xf]
        %v431 = vld [vmem:[%s274 + $0x1c8] sm:$0xf]
        %v432 = vld [vmem:[%s274 + $0x1cc] sm:$0xf]
        %v433 = vld [vmem:[%s274 + $0x1d0] sm:$0xf]
        %v434 = vld [vmem:[%s274 + $0x1d4] sm:$0xf]
        %v435 = vld [vmem:[%s274 + $0x1d8] sm:$0xf]
        %v436 = vld [vmem:[%s274 + $0x1dc] sm:$0xf]
        %v437 = vld [vmem:[%s274 + $0x1e0] sm:$0xf]
        %v438 = vld [vmem:[%s274 + $0x1e4] sm:$0xf]
        %v439 = vld [vmem:[%s274 + $0x1e8] sm:$0xf]
        %v440 = vld [vmem:[%s274 + $0x1ec] sm:$0xf]
        %v441 = vld [vmem:[%s274 + $0x1f0] sm:$0xf]
        %v442 = vld [vmem:[%s274 + $0x1f4] sm:$0xf]
        %v443 = vld [vmem:[%s274 + $0x1f8] sm:$0xf]
        %v444 = vld [vmem:[%s274 + $0x1fc] sm:$0xf]
        %v445 = vld [vmem:[%s274 + $0x200] sm:$0xf]
        %v446 = vld [vmem:[%s274 + $0x204] sm:$0xf]
        %v447 = vld [vmem:[%s274 + $0x208] sm:$0xf]
        %v448 = vld [vmem:[%s274 + $0x20c] sm:$0xf]
        %v449 = vld [vmem:[%s274 + $0x210] sm:$0xf]
        %v450 = vld [vmem:[%s274 + $0x214] sm:$0xf]
        %v451 = vld [vmem:[%s274 + $0x218] sm:$0xf]
        %v452 = vld [vmem:[%s274 + $0x21c] sm:$0xf]
        %v453 = vld [vmem:[%s274 + $0x220] sm:$0xf]
        %v454 = vld [vmem:[%s274 + $0x224] sm:$0xf]
        %v455 = vld [vmem:[%s274 + $0x228] sm:$0xf]
        %v456 = vld [vmem:[%s274 + $0x22c] sm:$0xf]
        %v457 = vld [vmem:[%s274 + $0x230] sm:$0xf]
        %v458 = vld [vmem:[%s274 + $0x234] sm:$0xf]
        %v459 = vld [vmem:[%s274 + $0x238] sm:$0xf]
        %v460 = vld [vmem:[%s274 + $0x23c] sm:$0xf]
        %v461 = vld [vmem:[%s274 + $0x240] sm:$0xf]
        %v462 = vld [vmem:[%s274 + $0x244] sm:$0xf]
        %v463 = vld [vmem:[%s274 + $0x248] sm:$0xf]
        %v464 = vld [vmem:[%s274 + $0x24c] sm:$0xf]
        %v465 = vld [vmem:[%s274 + $0x250] sm:$0xf]
        %v466 = vld [vmem:[%s274 + $0x254] sm:$0xf]
        %v467 = vld [vmem:[%s274 + $0x258] sm:$0xf]
        %v468 = vld [vmem:[%s274 + $0x25c] sm:$0xf]
        %v469 = vld [vmem:[%s274 + $0x260] sm:$0xf]
        %v470 = vld [vmem:[%s274 + $0x264] sm:$0xf]
        %v471 = vld [vmem:[%s274 + $0x268] sm:$0xf]
        %v472 = vld [vmem:[%s274 + $0x26c] sm:$0xf]
        %v473 = vld [vmem:[%s274 + $0x270] sm:$0xf]
        %v474 = vld [vmem:[%s274 + $0x274] sm:$0xf]
        %v475 = vld [vmem:[%s274 + $0x278] sm:$0xf]
        %v476 = vld [vmem:[%s274 + $0x27c] sm:$0xf]
        %v477 = vld [vmem:[%s274 + $0x280] sm:$0xf]
        %v478 = vld [vmem:[%s274 + $0x284] sm:$0xf]
        %v479 = vld [vmem:[%s274 + $0x288] sm:$0xf]
        %v480 = vld [vmem:[%s274 + $0x28c] sm:$0xf]
        %v481 = vld [vmem:[%s274 + $0x290] sm:$0xf]
        %v482 = vld [vmem:[%s274 + $0x294] sm:$0xf]
        %v483 = vld [vmem:[%s274 + $0x298] sm:$0xf]
        %v484 = vld [vmem:[%s274 + $0x29c] sm:$0xf]
        %v485 = vld [vmem:[%s274 + $0x2a0] sm:$0xf]
        %v486 = vld [vmem:[%s274 + $0x2a4] sm:$0xf]
        %v487 = vld [vmem:[%s274 + $0x2a8] sm:$0xf]
        %v488 = vld [vmem:[%s274 + $0x2ac] sm:$0xf]
        %v489 = vld [vmem:[%s274 + $0x2b0] sm:$0xf]
        %v490 = vld [vmem:[%s274 + $0x2b4] sm:$0xf]
        %v491 = vld [vmem:[%s274 + $0x2b8] sm:$0xf]
        %v492 = vld [vmem:[%s274 + $0x2bc] sm:$0xf]
        %v493 = vld [vmem:[%s274 + $0x2c0] sm:$0xf]
        %v494 = vld [vmem:[%s274 + $0x2c4] sm:$0xf]
        %v495 = vld [vmem:[%s274 + $0x2c8] sm:$0xf]
        %v496 = vld [vmem:[%s274 + $0x2cc] sm:$0xf]
        %v497 = vld [vmem:[%s274 + $0x2d0] sm:$0xf]
        %v498 = vld [vmem:[%s274 + $0x2d4] sm:$0xf]
        %v499 = vld [vmem:[%s274 + $0x2d8] sm:$0xf]
        %v500 = vld [vmem:[%s274 + $0x2dc] sm:$0xf]
        %v501 = vld [vmem:[%s274 + $0x2e0] sm:$0xf]
        %v502 = vld [vmem:[%s274 + $0x2e4] sm:$0xf]
        %v503 = vld [vmem:[%s274 + $0x2e8] sm:$0xf]
        %v504 = vld [vmem:[%s274 + $0x2ec] sm:$0xf]
        %v505 = vld [vmem:[%s274 + $0x2f0] sm:$0xf]
        %v506 = vld [vmem:[%s274 + $0x2f4] sm:$0xf]
        %v507 = vld [vmem:[%s274 + $0x2f8] sm:$0xf]
        %v508 = vld [vmem:[%s274 + $0x2fc] sm:$0xf]
        %v509 = vld [vmem:[%s274 + $0x300] sm:$0xf]
        %v510 = vld [vmem:[%s274 + $0x304] sm:$0xf]
        %v511 = vld [vmem:[%s274 + $0x308] sm:$0xf]
        %v512 = vld [vmem:[%s274 + $0x30c] sm:$0xf]
        %v513 = vld [vmem:[%s274 + $0x310] sm:$0xf]
        %v514 = vld [vmem:[%s274 + $0x314] sm:$0xf]
        %v515 = vld [vmem:[%s274 + $0x318] sm:$0xf]
        %v516 = vld [vmem:[%s274 + $0x31c] sm:$0xf]
        %v517 = vld [vmem:[%s274 + $0x320] sm:$0xf]
        %v518 = vld [vmem:[%s274 + $0x324] sm:$0xf]
        %v519 = vld [vmem:[%s274 + $0x328] sm:$0xf]
        %v520 = vld [vmem:[%s274 + $0x32c] sm:$0xf]
        %v521 = vld [vmem:[%s274 + $0x330] sm:$0xf]
        %v522 = vld [vmem:[%s274 + $0x334] sm:$0xf]
        %v523 = vld [vmem:[%s274 + $0x338] sm:$0xf]
        %v524 = vld [vmem:[%s274 + $0x33c] sm:$0xf]
        %v525 = vld [vmem:[%s274 + $0x340] sm:$0xf]
        %v526 = vld [vmem:[%s274 + $0x344] sm:$0xf]
        %v527 = vld [vmem:[%s274 + $0x348] sm:$0xf]
        %v528 = vld [vmem:[%s274 + $0x34c] sm:$0xf]
        %v529 = vld [vmem:[%s274 + $0x350] sm:$0xf]
        %v530 = vld [vmem:[%s274 + $0x354] sm:$0xf]
        %v531 = vld [vmem:[%s274 + $0x358] sm:$0xf]
        %v532 = vld [vmem:[%s274 + $0x35c] sm:$0xf]
        %v533 = vld [vmem:[%s274 + $0x360] sm:$0xf]
        %v534 = vld [vmem:[%s274 + $0x364] sm:$0xf]
        %v535 = vld [vmem:[%s274 + $0x368] sm:$0xf]
        %v536 = vld [vmem:[%s274 + $0x36c] sm:$0xf]
        %v537 = vld [vmem:[%s274 + $0x370] sm:$0xf]
        %v538 = vld [vmem:[%s274 + $0x374] sm:$0xf]
        %v539 = vld [vmem:[%s274 + $0x378] sm:$0xf]
        %v540 = vld [vmem:[%s274 + $0x37c] sm:$0xf]
        %v541 = vld [vmem:[%s274 + $0x380] sm:$0xf]
        %v542 = vld [vmem:[%s274 + $0x384] sm:$0xf]
        %v543 = vld [vmem:[%s274 + $0x388] sm:$0xf]
        %v544 = vld [vmem:[%s274 + $0x38c] sm:$0xf]
        %v545 = vld [vmem:[%s274 + $0x390] sm:$0xf]
        %v546 = vld [vmem:[%s274 + $0x394] sm:$0xf]
        %v547 = vld [vmem:[%s274 + $0x398] sm:$0xf]
        %v548 = vld [vmem:[%s274 + $0x39c] sm:$0xf]
        %v549 = vld [vmem:[%s274 + $0x3a0] sm:$0xf]
        %v550 = vld [vmem:[%s274 + $0x3a4] sm:$0xf]
        %v551 = vld [vmem:[%s274 + $0x3a8] sm:$0xf]
        %v552 = vld [vmem:[%s274 + $0x3ac] sm:$0xf]
        %v553 = vld [vmem:[%s274 + $0x3b0] sm:$0xf]
        %v554 = vld [vmem:[%s274 + $0x3b4] sm:$0xf]
        %v555 = vld [vmem:[%s274 + $0x3b8] sm:$0xf]
        %v556 = vld [vmem:[%s274 + $0x3bc] sm:$0xf]
        %v557 = vld [vmem:[%s274 + $0x3c0] sm:$0xf]
        %v558 = vld [vmem:[%s274 + $0x3c4] sm:$0xf]
        %v559 = vld [vmem:[%s274 + $0x3c8] sm:$0xf]
        %v560 = vld [vmem:[%s274 + $0x3cc] sm:$0xf]
        %v561 = vld [vmem:[%s274 + $0x3d0] sm:$0xf]
        %v562 = vld [vmem:[%s274 + $0x3d4] sm:$0xf]
        %v563 = vld [vmem:[%s274 + $0x3d8] sm:$0xf]
        %v564 = vld [vmem:[%s274 + $0x3dc] sm:$0xf]
        %v565 = vld [vmem:[%s274 + $0x3e0] sm:$0xf]
        %v566 = vld [vmem:[%s274 + $0x3e4] sm:$0xf]
        %v567 = vld [vmem:[%s274 + $0x3e8] sm:$0xf]
        %v568 = vld [vmem:[%s274 + $0x3ec] sm:$0xf]
        %v569 = vld [vmem:[%s274 + $0x3f0] sm:$0xf]
        %v570 = vld [vmem:[%s274 + $0x3f4] sm:$0xf]
        %v571 = vld [vmem:[%s274 + $0x3f8] sm:$0xf]
        %v572 = vld [vmem:[%s274 + $0x3fc] sm:$0xf]
        %v829 = vunpack.c.l.b16 %v317
        %v830 = vunpack.c.l.b16 %v318
        %v831 = vunpack.c.l.b16 %v319
        %v832 = vunpack.c.l.b16 %v320
        %v833 = vunpack.c.l.b16 %v321
        %v834 = vunpack.c.l.b16 %v322
        %v835 = vunpack.c.l.b16 %v323
        %v836 = vunpack.c.l.b16 %v324
        %v837 = vunpack.c.l.b16 %v325
        %v838 = vunpack.c.l.b16 %v326
        %v839 = vunpack.c.l.b16 %v327
        %v840 = vunpack.c.l.b16 %v328
        %v841 = vunpack.c.l.b16 %v329
        %v842 = vunpack.c.l.b16 %v330
        %v843 = vunpack.c.l.b16 %v331
        %v844 = vunpack.c.l.b16 %v332
        %v845 = vunpack.c.l.b16 %v333
        %v846 = vunpack.c.l.b16 %v334
        %v847 = vunpack.c.l.b16 %v335
        %v848 = vunpack.c.l.b16 %v336
        %v849 = vunpack.c.l.b16 %v337
        %v850 = vunpack.c.l.b16 %v338
        %v851 = vunpack.c.l.b16 %v339
        %v852 = vunpack.c.l.b16 %v340
        %v853 = vunpack.c.l.b16 %v341
        %v854 = vunpack.c.l.b16 %v342
        %v855 = vunpack.c.l.b16 %v343
        %v856 = vunpack.c.l.b16 %v344
        %v857 = vunpack.c.l.b16 %v345
        %v858 = vunpack.c.l.b16 %v346
        %v859 = vunpack.c.l.b16 %v347
        %v860 = vunpack.c.l.b16 %v348
        %v861 = vunpack.c.l.b16 %v349
        %v862 = vunpack.c.l.b16 %v350
        %v863 = vunpack.c.l.b16 %v351
        %v864 = vunpack.c.l.b16 %v352
        %v865 = vunpack.c.l.b16 %v353
        %v866 = vunpack.c.l.b16 %v354
        %v867 = vunpack.c.l.b16 %v355
        %v868 = vunpack.c.l.b16 %v356
        %v869 = vunpack.c.l.b16 %v357
        %v870 = vunpack.c.l.b16 %v358
        %v871 = vunpack.c.l.b16 %v359
        %v872 = vunpack.c.l.b16 %v360
        %v873 = vunpack.c.l.b16 %v361
        %v874 = vunpack.c.l.b16 %v362
        %v875 = vunpack.c.l.b16 %v363
        %v876 = vunpack.c.l.b16 %v364
        %v877 = vunpack.c.l.b16 %v365
        %v878 = vunpack.c.l.b16 %v366
        %v879 = vunpack.c.l.b16 %v367
        %v880 = vunpack.c.l.b16 %v368
        %v881 = vunpack.c.l.b16 %v369
        %v882 = vunpack.c.l.b16 %v370
        %v883 = vunpack.c.l.b16 %v371
        %v884 = vunpack.c.l.b16 %v372
        %v885 = vunpack.c.l.b16 %v373
        %v886 = vunpack.c.l.b16 %v374
        %v887 = vunpack.c.l.b16 %v375
        %v888 = vunpack.c.l.b16 %v376
        %v889 = vunpack.c.l.b16 %v377
        %v890 = vunpack.c.l.b16 %v378
        %v891 = vunpack.c.l.b16 %v379
        %v892 = vunpack.c.l.b16 %v380
        %v893 = vunpack.c.l.b16 %v381
        %v894 = vunpack.c.l.b16 %v382
        %v895 = vunpack.c.l.b16 %v383
        %v896 = vunpack.c.l.b16 %v384
        %v897 = vunpack.c.l.b16 %v385
        %v898 = vunpack.c.l.b16 %v386
        %v899 = vunpack.c.l.b16 %v387
        %v900 = vunpack.c.l.b16 %v388
        %v901 = vunpack.c.l.b16 %v389
        %v902 = vunpack.c.l.b16 %v390
        %v903 = vunpack.c.l.b16 %v391
        %v904 = vunpack.c.l.b16 %v392
        %v905 = vunpack.c.l.b16 %v393
        %v906 = vunpack.c.l.b16 %v394
        %v907 = vunpack.c.l.b16 %v395
        %v908 = vunpack.c.l.b16 %v396
        %v909 = vunpack.c.l.b16 %v397
        %v910 = vunpack.c.l.b16 %v398
        %v911 = vunpack.c.l.b16 %v399
        %v912 = vunpack.c.l.b16 %v400
        %v913 = vunpack.c.l.b16 %v401
        %v914 = vunpack.c.l.b16 %v402
        %v915 = vunpack.c.l.b16 %v403
        %v916 = vunpack.c.l.b16 %v404
        %v917 = vunpack.c.l.b16 %v405
        %v918 = vunpack.c.l.b16 %v406
        %v919 = vunpack.c.l.b16 %v407
        %v920 = vunpack.c.l.b16 %v408
        %v921 = vunpack.c.l.b16 %v409
        %v922 = vunpack.c.l.b16 %v410
        %v923 = vunpack.c.l.b16 %v411
        %v924 = vunpack.c.l.b16 %v412
        %v925 = vunpack.c.l.b16 %v413
        %v926 = vunpack.c.l.b16 %v414
        %v927 = vunpack.c.l.b16 %v415
        %v928 = vunpack.c.l.b16 %v416
        %v929 = vunpack.c.l.b16 %v417
        %v930 = vunpack.c.l.b16 %v418
        %v931 = vunpack.c.l.b16 %v419
        %v932 = vunpack.c.l.b16 %v420
        %v933 = vunpack.c.l.b16 %v421
        %v934 = vunpack.c.l.b16 %v422
        %v935 = vunpack.c.l.b16 %v423
        %v936 = vunpack.c.l.b16 %v424
        %v937 = vunpack.c.l.b16 %v425
        %v938 = vunpack.c.l.b16 %v426
        %v939 = vunpack.c.l.b16 %v427
        %v940 = vunpack.c.l.b16 %v428
        %v941 = vunpack.c.l.b16 %v429
        %v942 = vunpack.c.l.b16 %v430
        %v943 = vunpack.c.l.b16 %v431
        %v944 = vunpack.c.l.b16 %v432
        %v945 = vunpack.c.l.b16 %v433
        %v946 = vunpack.c.l.b16 %v434
        %v947 = vunpack.c.l.b16 %v435
        %v948 = vunpack.c.l.b16 %v436
        %v949 = vunpack.c.l.b16 %v437
        %v950 = vunpack.c.l.b16 %v438
        %v951 = vunpack.c.l.b16 %v439
        %v952 = vunpack.c.l.b16 %v440
        %v953 = vunpack.c.l.b16 %v441
        %v954 = vunpack.c.l.b16 %v442
        %v955 = vunpack.c.l.b16 %v443
        %v956 = vunpack.c.l.b16 %v444
        %v957 = vunpack.c.l.b16 %v445
        %v958 = vunpack.c.l.b16 %v446
        %v959 = vunpack.c.l.b16 %v447
        %v960 = vunpack.c.l.b16 %v448
        %v961 = vunpack.c.l.b16 %v449
        %v962 = vunpack.c.l.b16 %v450
        %v963 = vunpack.c.l.b16 %v451
        %v964 = vunpack.c.l.b16 %v452
        %v965 = vunpack.c.l.b16 %v453
        %v966 = vunpack.c.l.b16 %v454
        %v967 = vunpack.c.l.b16 %v455
        %v968 = vunpack.c.l.b16 %v456
        %v969 = vunpack.c.l.b16 %v457
        %v970 = vunpack.c.l.b16 %v458
        %v971 = vunpack.c.l.b16 %v459
        %v972 = vunpack.c.l.b16 %v460
        %v973 = vunpack.c.l.b16 %v461
        %v974 = vunpack.c.l.b16 %v462
        %v975 = vunpack.c.l.b16 %v463
        %v976 = vunpack.c.l.b16 %v464
        %v977 = vunpack.c.l.b16 %v465
        %v978 = vunpack.c.l.b16 %v466
        %v979 = vunpack.c.l.b16 %v467
        %v980 = vunpack.c.l.b16 %v468
        %v981 = vunpack.c.l.b16 %v469
        %v982 = vunpack.c.l.b16 %v470
        %v983 = vunpack.c.l.b16 %v471
        %v984 = vunpack.c.l.b16 %v472
        %v985 = vunpack.c.l.b16 %v473
        %v986 = vunpack.c.l.b16 %v474
        %v987 = vunpack.c.l.b16 %v475
        %v988 = vunpack.c.l.b16 %v476
        %v989 = vunpack.c.l.b16 %v477
        %v990 = vunpack.c.l.b16 %v478
        %v991 = vunpack.c.l.b16 %v479
        %v992 = vunpack.c.l.b16 %v480
        %v993 = vunpack.c.l.b16 %v481
        %v994 = vunpack.c.l.b16 %v482
        %v995 = vunpack.c.l.b16 %v483
        %v996 = vunpack.c.l.b16 %v484
        %v997 = vunpack.c.l.b16 %v485
        %v998 = vunpack.c.l.b16 %v486
        %v999 = vunpack.c.l.b16 %v487
        %v1000 = vunpack.c.l.b16 %v488
        %v1001 = vunpack.c.l.b16 %v489
        %v1002 = vunpack.c.l.b16 %v490
        %v1003 = vunpack.c.l.b16 %v491
        %v1004 = vunpack.c.l.b16 %v492
        %v1005 = vunpack.c.l.b16 %v493
        %v1006 = vunpack.c.l.b16 %v494
        %v1007 = vunpack.c.l.b16 %v495
        %v1008 = vunpack.c.l.b16 %v496
        %v1009 = vunpack.c.l.b16 %v497
        %v1010 = vunpack.c.l.b16 %v498
        %v1011 = vunpack.c.l.b16 %v499
        %v1012 = vunpack.c.l.b16 %v500
        %v1013 = vunpack.c.l.b16 %v501
        %v1014 = vunpack.c.l.b16 %v502
        %v1015 = vunpack.c.l.b16 %v503
        %v1016 = vunpack.c.l.b16 %v504
        %v1017 = vunpack.c.l.b16 %v505
        %v1018 = vunpack.c.l.b16 %v506
        %v1019 = vunpack.c.l.b16 %v507
        %v1020 = vunpack.c.l.b16 %v508
        %v1021 = vunpack.c.l.b16 %v509
        %v1022 = vunpack.c.l.b16 %v510
        %v1023 = vunpack.c.l.b16 %v511
        %v1024 = vunpack.c.l.b16 %v512
        %v1025 = vunpack.c.l.b16 %v513
        %v1026 = vunpack.c.l.b16 %v514
        %v1027 = vunpack.c.l.b16 %v515
        %v1028 = vunpack.c.l.b16 %v516
        %v1029 = vunpack.c.l.b16 %v517
        %v1030 = vunpack.c.l.b16 %v518
        %v1031 = vunpack.c.l.b16 %v519
        %v1032 = vunpack.c.l.b16 %v520
        %v1033 = vunpack.c.l.b16 %v521
        %v1034 = vunpack.c.l.b16 %v522
        %v1035 = vunpack.c.l.b16 %v523
        %v1036 = vunpack.c.l.b16 %v524
        %v1037 = vunpack.c.l.b16 %v525
        %v1038 = vunpack.c.l.b16 %v526
        %v1039 = vunpack.c.l.b16 %v527
        %v1040 = vunpack.c.l.b16 %v528
        %v1041 = vunpack.c.l.b16 %v529
        %v1042 = vunpack.c.l.b16 %v530
        %v1043 = vunpack.c.l.b16 %v531
        %v1044 = vunpack.c.l.b16 %v532
        %v1045 = vunpack.c.l.b16 %v533
        %v1046 = vunpack.c.l.b16 %v534
        %v1047 = vunpack.c.l.b16 %v535
        %v1048 = vunpack.c.l.b16 %v536
        %v1049 = vunpack.c.l.b16 %v537
        %v1050 = vunpack.c.l.b16 %v538
        %v1051 = vunpack.c.l.b16 %v539
        %v1052 = vunpack.c.l.b16 %v540
        %v1053 = vunpack.c.l.b16 %v541
        %v1054 = vunpack.c.l.b16 %v542
        %v1055 = vunpack.c.l.b16 %v543
        %v1056 = vunpack.c.l.b16 %v544
        %v1057 = vunpack.c.l.b16 %v545
        %v1058 = vunpack.c.l.b16 %v546
        %v1059 = vunpack.c.l.b16 %v547
        %v1060 = vunpack.c.l.b16 %v548
        %v1061 = vunpack.c.l.b16 %v549
        %v1062 = vunpack.c.l.b16 %v550
        %v1063 = vunpack.c.l.b16 %v551
        %v1064 = vunpack.c.l.b16 %v552
        %v1065 = vunpack.c.l.b16 %v553
        %v1066 = vunpack.c.l.b16 %v554
        %v1067 = vunpack.c.l.b16 %v555
        %v1068 = vunpack.c.l.b16 %v556
        %v1069 = vunpack.c.l.b16 %v557
        %v1070 = vunpack.c.l.b16 %v558
        %v1071 = vunpack.c.l.b16 %v559
        %v1072 = vunpack.c.l.b16 %v560
        %v1073 = vunpack.c.l.b16 %v561
        %v1074 = vunpack.c.l.b16 %v562
        %v1075 = vunpack.c.l.b16 %v563
        %v1076 = vunpack.c.l.b16 %v564
        %v1077 = vunpack.c.l.b16 %v565
        %v1078 = vunpack.c.l.b16 %v566
        %v1079 = vunpack.c.l.b16 %v567
        %v1080 = vunpack.c.l.b16 %v568
        %v1081 = vunpack.c.l.b16 %v569
        %v1082 = vunpack.c.l.b16 %v570
        %v1083 = vunpack.c.l.b16 %v571
        %v1084 = vunpack.c.l.b16 %v572
        %v1085 = vpack.c.b16 %v830, %v829
        %v1086 = vpack.c.b16 %v832, %v831
        %v1087 = vpack.c.b16 %v834, %v833
        %v1088 = vpack.c.b16 %v836, %v835
        %v1089 = vpack.c.b16 %v838, %v837
        %v1090 = vpack.c.b16 %v840, %v839
        %v1091 = vpack.c.b16 %v842, %v841
        %v1092 = vpack.c.b16 %v844, %v843
        %v1093 = vpack.c.b16 %v846, %v845
        %v1094 = vpack.c.b16 %v848, %v847
        %v1095 = vpack.c.b16 %v850, %v849
        %v1096 = vpack.c.b16 %v852, %v851
        %v1097 = vpack.c.b16 %v854, %v853
        %v1098 = vpack.c.b16 %v856, %v855
        %v1099 = vpack.c.b16 %v858, %v857
        %v1100 = vpack.c.b16 %v860, %v859
        %v1101 = vpack.c.b16 %v862, %v861
        %v1102 = vpack.c.b16 %v864, %v863
        %v1103 = vpack.c.b16 %v866, %v865
        %v1104 = vpack.c.b16 %v868, %v867
        %v1105 = vpack.c.b16 %v870, %v869
        %v1106 = vpack.c.b16 %v872, %v871
        %v1107 = vpack.c.b16 %v874, %v873
        %v1108 = vpack.c.b16 %v876, %v875
        %v1109 = vpack.c.b16 %v878, %v877
        %v1110 = vpack.c.b16 %v880, %v879
        %v1111 = vpack.c.b16 %v882, %v881
        %v1112 = vpack.c.b16 %v884, %v883
        %v1113 = vpack.c.b16 %v886, %v885
        %v1114 = vpack.c.b16 %v888, %v887
        %v1115 = vpack.c.b16 %v890, %v889
        %v1116 = vpack.c.b16 %v892, %v891
        %v1117 = vpack.c.b16 %v894, %v893
        %v1118 = vpack.c.b16 %v896, %v895
        %v1119 = vpack.c.b16 %v898, %v897
        %v1120 = vpack.c.b16 %v900, %v899
        %v1121 = vpack.c.b16 %v902, %v901
        %v1122 = vpack.c.b16 %v904, %v903
        %v1123 = vpack.c.b16 %v906, %v905
        %v1124 = vpack.c.b16 %v908, %v907
        %v1125 = vpack.c.b16 %v910, %v909
        %v1126 = vpack.c.b16 %v912, %v911
        %v1127 = vpack.c.b16 %v914, %v913
        %v1128 = vpack.c.b16 %v916, %v915
        %v1129 = vpack.c.b16 %v918, %v917
        %v1130 = vpack.c.b16 %v920, %v919
        %v1131 = vpack.c.b16 %v922, %v921
        %v1132 = vpack.c.b16 %v924, %v923
        %v1133 = vpack.c.b16 %v926, %v925
        %v1134 = vpack.c.b16 %v928, %v927
        %v1135 = vpack.c.b16 %v930, %v929
        %v1136 = vpack.c.b16 %v932, %v931
        %v1137 = vpack.c.b16 %v934, %v933
        %v1138 = vpack.c.b16 %v936, %v935
        %v1139 = vpack.c.b16 %v938, %v937
        %v1140 = vpack.c.b16 %v940, %v939
        %v1141 = vpack.c.b16 %v942, %v941
        %v1142 = vpack.c.b16 %v944, %v943
        %v1143 = vpack.c.b16 %v946, %v945
        %v1144 = vpack.c.b16 %v948, %v947
        %v1145 = vpack.c.b16 %v950, %v949
        %v1146 = vpack.c.b16 %v952, %v951
        %v1147 = vpack.c.b16 %v954, %v953
        %v1148 = vpack.c.b16 %v956, %v955
        %v1149 = vpack.c.b16 %v958, %v957
        %v1150 = vpack.c.b16 %v960, %v959
        %v1151 = vpack.c.b16 %v962, %v961
        %v1152 = vpack.c.b16 %v964, %v963
        %v1153 = vpack.c.b16 %v966, %v965
        %v1154 = vpack.c.b16 %v968, %v967
        %v1155 = vpack.c.b16 %v970, %v969
        %v1156 = vpack.c.b16 %v972, %v971
        %v1157 = vpack.c.b16 %v974, %v973
        %v1158 = vpack.c.b16 %v976, %v975
        %v1159 = vpack.c.b16 %v978, %v977
        %v1160 = vpack.c.b16 %v980, %v979
        %v1161 = vpack.c.b16 %v982, %v981
        %v1162 = vpack.c.b16 %v984, %v983
        %v1163 = vpack.c.b16 %v986, %v985
        %v1164 = vpack.c.b16 %v988, %v987
        %v1165 = vpack.c.b16 %v990, %v989
        %v1166 = vpack.c.b16 %v992, %v991
        %v1167 = vpack.c.b16 %v994, %v993
        %v1168 = vpack.c.b16 %v996, %v995
        %v1169 = vpack.c.b16 %v998, %v997
        %v1170 = vpack.c.b16 %v1000, %v999
        %v1171 = vpack.c.b16 %v1002, %v1001
        %v1172 = vpack.c.b16 %v1004, %v1003
        %v1173 = vpack.c.b16 %v1006, %v1005
        %v1174 = vpack.c.b16 %v1008, %v1007
        %v1175 = vpack.c.b16 %v1010, %v1009
        %v1176 = vpack.c.b16 %v1012, %v1011
        %v1177 = vpack.c.b16 %v1014, %v1013
        %v1178 = vpack.c.b16 %v1016, %v1015
        %v1179 = vpack.c.b16 %v1018, %v1017
        %v1180 = vpack.c.b16 %v1020, %v1019
        %v1181 = vpack.c.b16 %v1022, %v1021
        %v1182 = vpack.c.b16 %v1024, %v1023
        %v1183 = vpack.c.b16 %v1026, %v1025
        %v1184 = vpack.c.b16 %v1028, %v1027
        %v1185 = vpack.c.b16 %v1030, %v1029
        %v1186 = vpack.c.b16 %v1032, %v1031
        %v1187 = vpack.c.b16 %v1034, %v1033
        %v1188 = vpack.c.b16 %v1036, %v1035
        %v1189 = vpack.c.b16 %v1038, %v1037
        %v1190 = vpack.c.b16 %v1040, %v1039
        %v1191 = vpack.c.b16 %v1042, %v1041
        %v1192 = vpack.c.b16 %v1044, %v1043
        %v1193 = vpack.c.b16 %v1046, %v1045
        %v1194 = vpack.c.b16 %v1048, %v1047
        %v1195 = vpack.c.b16 %v1050, %v1049
        %v1196 = vpack.c.b16 %v1052, %v1051
        %v1197 = vpack.c.b16 %v1054, %v1053
        %v1198 = vpack.c.b16 %v1056, %v1055
        %v1199 = vpack.c.b16 %v1058, %v1057
        %v1200 = vpack.c.b16 %v1060, %v1059
        %v1201 = vpack.c.b16 %v1062, %v1061
        %v1202 = vpack.c.b16 %v1064, %v1063
        %v1203 = vpack.c.b16 %v1066, %v1065
        %v1204 = vpack.c.b16 %v1068, %v1067
        %v1205 = vpack.c.b16 %v1070, %v1069
        %v1206 = vpack.c.b16 %v1072, %v1071
        %v1207 = vpack.c.b16 %v1074, %v1073
        %v1208 = vpack.c.b16 %v1076, %v1075
        %v1209 = vpack.c.b16 %v1078, %v1077
        %v1210 = vpack.c.b16 %v1080, %v1079
        %v1211 = vpack.c.b16 %v1082, %v1081
        %v1212 = vpack.c.b16 %v1084, %v1083
        %v1341 = vmax.bf16 %v1085, %v1086
        %v1342 = vmax.bf16 %v1341, %v1087
        %v1343 = vmax.bf16 %v1342, %v1088
        %v1344 = vmax.bf16 %v1343, %v1089
        %v1345 = vmax.bf16 %v1344, %v1090
        %v1346 = vmax.bf16 %v1345, %v1091
        %v1347 = vmax.bf16 %v1346, %v1092
        %v1348 = vmax.bf16 %v1347, %v1093
        %v1349 = vmax.bf16 %v1348, %v1094
        %v1350 = vmax.bf16 %v1349, %v1095
        %v1351 = vmax.bf16 %v1350, %v1096
        %v1352 = vmax.bf16 %v1351, %v1097
        %v1353 = vmax.bf16 %v1352, %v1098
        %v1354 = vmax.bf16 %v1353, %v1099
        %v1355 = vmax.bf16 %v1354, %v1100
        %v1356 = vunpack.i.l.bf16 %v1355
        %v1357 = vunpack.i.h.bf16 %v1355
        %v1358 = vmax.f32 %v1356, %v1357
        %v1359 = vrot.slane %v1358, 4
        %v1360 = vmax.f32 %v1358, %v1359
        %v1361 = vrot.slane %v1360, 2
        %v1362 = vmax.f32 %v1360, %v1361
        %v1363 = vrot.slane %v1362, 1
        %v1364 = vmax.f32 %v1362, %v1363
        %v1365 = vpack.i.bf16 %v1364, %v1364
        %v1366 = vmax.bf16 %v1101, %v1102
        %v1367 = vmax.bf16 %v1366, %v1103
        %v1368 = vmax.bf16 %v1367, %v1104
        %v1369 = vmax.bf16 %v1368, %v1105
        %v1370 = vmax.bf16 %v1369, %v1106
        %v1371 = vmax.bf16 %v1370, %v1107
        %v1372 = vmax.bf16 %v1371, %v1108
        %v1373 = vmax.bf16 %v1372, %v1109
        %v1374 = vmax.bf16 %v1373, %v1110
        %v1375 = vmax.bf16 %v1374, %v1111
        %v1376 = vmax.bf16 %v1375, %v1112
        %v1377 = vmax.bf16 %v1376, %v1113
        %v1378 = vmax.bf16 %v1377, %v1114
        %v1379 = vmax.bf16 %v1378, %v1115
        %v1380 = vmax.bf16 %v1379, %v1116
        %v1381 = vunpack.i.l.bf16 %v1380
        %v1382 = vunpack.i.h.bf16 %v1380
        %v1383 = vmax.f32 %v1381, %v1382
        %v1384 = vrot.slane %v1383, 4
        %v1385 = vmax.f32 %v1383, %v1384
        %v1386 = vrot.slane %v1385, 2
        %v1387 = vmax.f32 %v1385, %v1386
        %v1388 = vrot.slane %v1387, 1
        %v1389 = vmax.f32 %v1387, %v1388
        %v1390 = vpack.i.bf16 %v1389, %v1389
        %v1391 = vmax.bf16 %v1117, %v1118
        %v1392 = vmax.bf16 %v1391, %v1119
        %v1393 = vmax.bf16 %v1392, %v1120
        %v1394 = vmax.bf16 %v1393, %v1121
        %v1395 = vmax.bf16 %v1394, %v1122
        %v1396 = vmax.bf16 %v1395, %v1123
        %v1397 = vmax.bf16 %v1396, %v1124
        %v1398 = vmax.bf16 %v1397, %v1125
        %v1399 = vmax.bf16 %v1398, %v1126
        %v1400 = vmax.bf16 %v1399, %v1127
        %v1401 = vmax.bf16 %v1400, %v1128
        %v1402 = vmax.bf16 %v1401, %v1129
        %v1403 = vmax.bf16 %v1402, %v1130
        %v1404 = vmax.bf16 %v1403, %v1131
        %v1405 = vmax.bf16 %v1404, %v1132
        %v1406 = vunpack.i.l.bf16 %v1405
        %v1407 = vunpack.i.h.bf16 %v1405
        %v1408 = vmax.f32 %v1406, %v1407
        %v1409 = vrot.slane %v1408, 4
        %v1410 = vmax.f32 %v1408, %v1409
        %v1411 = vrot.slane %v1410, 2
        %v1412 = vmax.f32 %v1410, %v1411
        %v1413 = vrot.slane %v1412, 1
        %v1414 = vmax.f32 %v1412, %v1413
        %v1415 = vpack.i.bf16 %v1414, %v1414
        %v1416 = vmax.bf16 %v1133, %v1134
        %v1417 = vmax.bf16 %v1416, %v1135
        %v1418 = vmax.bf16 %v1417, %v1136
        %v1419 = vmax.bf16 %v1418, %v1137
        %v1420 = vmax.bf16 %v1419, %v1138
        %v1421 = vmax.bf16 %v1420, %v1139
        %v1422 = vmax.bf16 %v1421, %v1140
        %v1423 = vmax.bf16 %v1422, %v1141
        %v1424 = vmax.bf16 %v1423, %v1142
        %v1425 = vmax.bf16 %v1424, %v1143
        %v1426 = vmax.bf16 %v1425, %v1144
        %v1427 = vmax.bf16 %v1426, %v1145
        %v1428 = vmax.bf16 %v1427, %v1146
        %v1429 = vmax.bf16 %v1428, %v1147
        %v1430 = vmax.bf16 %v1429, %v1148
        %v1431 = vunpack.i.l.bf16 %v1430
        %v1432 = vunpack.i.h.bf16 %v1430
        %v1433 = vmax.f32 %v1431, %v1432
        %v1434 = vrot.slane %v1433, 4
        %v1435 = vmax.f32 %v1433, %v1434
        %v1436 = vrot.slane %v1435, 2
        %v1437 = vmax.f32 %v1435, %v1436
        %v1438 = vrot.slane %v1437, 1
        %v1439 = vmax.f32 %v1437, %v1438
        %v1440 = vpack.i.bf16 %v1439, %v1439
        %v1441 = vmax.bf16 %v1149, %v1150
        %v1442 = vmax.bf16 %v1441, %v1151
        %v1443 = vmax.bf16 %v1442, %v1152
        %v1444 = vmax.bf16 %v1443, %v1153
        %v1445 = vmax.bf16 %v1444, %v1154
        %v1446 = vmax.bf16 %v1445, %v1155
        %v1447 = vmax.bf16 %v1446, %v1156
        %v1448 = vmax.bf16 %v1447, %v1157
        %v1449 = vmax.bf16 %v1448, %v1158
        %v1450 = vmax.bf16 %v1449, %v1159
        %v1451 = vmax.bf16 %v1450, %v1160
        %v1452 = vmax.bf16 %v1451, %v1161
        %v1453 = vmax.bf16 %v1452, %v1162
        %v1454 = vmax.bf16 %v1453, %v1163
        %v1455 = vmax.bf16 %v1454, %v1164
        %v1456 = vunpack.i.l.bf16 %v1455
        %v1457 = vunpack.i.h.bf16 %v1455
        %v1458 = vmax.f32 %v1456, %v1457
        %v1459 = vrot.slane %v1458, 4
        %v1460 = vmax.f32 %v1458, %v1459
        %v1461 = vrot.slane %v1460, 2
        %v1462 = vmax.f32 %v1460, %v1461
        %v1463 = vrot.slane %v1462, 1
        %v1464 = vmax.f32 %v1462, %v1463
        %v1465 = vpack.i.bf16 %v1464, %v1464
        %v1466 = vmax.bf16 %v1165, %v1166
        %v1467 = vmax.bf16 %v1466, %v1167
        %v1468 = vmax.bf16 %v1467, %v1168
        %v1469 = vmax.bf16 %v1468, %v1169
        %v1470 = vmax.bf16 %v1469, %v1170
        %v1471 = vmax.bf16 %v1470, %v1171
        %v1472 = vmax.bf16 %v1471, %v1172
        %v1473 = vmax.bf16 %v1472, %v1173
        %v1474 = vmax.bf16 %v1473, %v1174
        %v1475 = vmax.bf16 %v1474, %v1175
        %v1476 = vmax.bf16 %v1475, %v1176
        %v1477 = vmax.bf16 %v1476, %v1177
        %v1478 = vmax.bf16 %v1477, %v1178
        %v1479 = vmax.bf16 %v1478, %v1179
        %v1480 = vmax.bf16 %v1479, %v1180
        %v1481 = vunpack.i.l.bf16 %v1480
        %v1482 = vunpack.i.h.bf16 %v1480
        %v1483 = vmax.f32 %v1481, %v1482
        %v1484 = vrot.slane %v1483, 4
        %v1485 = vmax.f32 %v1483, %v1484
        %v1486 = vrot.slane %v1485, 2
        %v1487 = vmax.f32 %v1485, %v1486
        %v1488 = vrot.slane %v1487, 1
        %v1489 = vmax.f32 %v1487, %v1488
        %v1490 = vpack.i.bf16 %v1489, %v1489
        %v1491 = vmax.bf16 %v1181, %v1182
        %v1492 = vmax.bf16 %v1491, %v1183
        %v1493 = vmax.bf16 %v1492, %v1184
        %v1494 = vmax.bf16 %v1493, %v1185
        %v1495 = vmax.bf16 %v1494, %v1186
        %v1496 = vmax.bf16 %v1495, %v1187
        %v1497 = vmax.bf16 %v1496, %v1188
        %v1498 = vmax.bf16 %v1497, %v1189
        %v1499 = vmax.bf16 %v1498, %v1190
        %v1500 = vmax.bf16 %v1499, %v1191
        %v1501 = vmax.bf16 %v1500, %v1192
        %v1502 = vmax.bf16 %v1501, %v1193
        %v1503 = vmax.bf16 %v1502, %v1194
        %v1504 = vmax.bf16 %v1503, %v1195
        %v1505 = vmax.bf16 %v1504, %v1196
        %v1506 = vunpack.i.l.bf16 %v1505
        %v1507 = vunpack.i.h.bf16 %v1505
        %v1508 = vmax.f32 %v1506, %v1507
        %v1509 = vrot.slane %v1508, 4
        %v1510 = vmax.f32 %v1508, %v1509
        %v1511 = vrot.slane %v1510, 2
        %v1512 = vmax.f32 %v1510, %v1511
        %v1513 = vrot.slane %v1512, 1
        %v1514 = vmax.f32 %v1512, %v1513
        %v1515 = vpack.i.bf16 %v1514, %v1514
        %v1516 = vmax.bf16 %v1197, %v1198
        %v1517 = vmax.bf16 %v1516, %v1199
        %v1518 = vmax.bf16 %v1517, %v1200
        %v1519 = vmax.bf16 %v1518, %v1201
        %v1520 = vmax.bf16 %v1519, %v1202
        %v1521 = vmax.bf16 %v1520, %v1203
        %v1522 = vmax.bf16 %v1521, %v1204
        %v1523 = vmax.bf16 %v1522, %v1205
        %v1524 = vmax.bf16 %v1523, %v1206
        %v1525 = vmax.bf16 %v1524, %v1207
        %v1526 = vmax.bf16 %v1525, %v1208
        %v1527 = vmax.bf16 %v1526, %v1209
        %v1528 = vmax.bf16 %v1527, %v1210
        %v1529 = vmax.bf16 %v1528, %v1211
        %v1530 = vmax.bf16 %v1529, %v1212
        %v1531 = vunpack.i.l.bf16 %v1530
        %v1532 = vunpack.i.h.bf16 %v1530
        %v1533 = vmax.f32 %v1531, %v1532
        %v1534 = vrot.slane %v1533, 4
        %v1535 = vmax.f32 %v1533, %v1534
        %v1536 = vrot.slane %v1535, 2
        %v1537 = vmax.f32 %v1535, %v1536
        %v1538 = vrot.slane %v1537, 1
        %v1539 = vmax.f32 %v1537, %v1538
        %v1540 = vpack.i.bf16 %v1539, %v1539
        %v1541 = vunpack.c.l.bf16 %v317
        %v1542 = vunpack.c.l.bf16 %v318
        %v1543 = vunpack.c.l.bf16 %v319
        %v1544 = vunpack.c.l.bf16 %v320
        %v1545 = vunpack.c.l.bf16 %v349
        %v1546 = vunpack.c.l.bf16 %v350
        %v1547 = vunpack.c.l.bf16 %v351
        %v1548 = vunpack.c.l.bf16 %v352
        %v1549 = vunpack.c.l.bf16 %v381
        %v1550 = vunpack.c.l.bf16 %v382
        %v1551 = vunpack.c.l.bf16 %v383
        %v1552 = vunpack.c.l.bf16 %v384
        %v1553 = vunpack.c.l.bf16 %v413
        %v1554 = vunpack.c.l.bf16 %v414
        %v1555 = vunpack.c.l.bf16 %v415
        %v1556 = vunpack.c.l.bf16 %v416
        %v1557 = vunpack.c.l.bf16 %v445
        %v1558 = vunpack.c.l.bf16 %v446
        %v1559 = vunpack.c.l.bf16 %v447
        %v1560 = vunpack.c.l.bf16 %v448
        %v1561 = vunpack.c.l.bf16 %v477
        %v1562 = vunpack.c.l.bf16 %v478
        %v1563 = vunpack.c.l.bf16 %v479
        %v1564 = vunpack.c.l.bf16 %v480
        %v1565 = vunpack.c.l.bf16 %v509
        %v1566 = vunpack.c.l.bf16 %v510
        %v1567 = vunpack.c.l.bf16 %v511
        %v1568 = vunpack.c.l.bf16 %v512
        %v1569 = vunpack.c.l.bf16 %v541
        %v1570 = vunpack.c.l.bf16 %v542
        %v1571 = vunpack.c.l.bf16 %v543
        %v1572 = vunpack.c.l.bf16 %v544
        %v1573 = vadd.f32 %v1541, %v1542
        %v1574 = vadd.f32 %v1573, %v1543
        %v1575 = vadd.f32 %v1574, %v1544
        %v1576 = vrot.slane %v1575, 4
        %v1577 = vadd.f32 %v1575, %v1576
        %v1578 = vrot.slane %v1577, 2
        %v1579 = vadd.f32 %v1577, %v1578
        %v1580 = vrot.slane %v1579, 1
        %v1581 = vadd.f32 %v1579, %v1580
        %v1582 = vadd.f32 %v1545, %v1546
        %v1583 = vadd.f32 %v1582, %v1547
        %v1584 = vadd.f32 %v1583, %v1548
        %v1585 = vrot.slane %v1584, 4
        %v1586 = vadd.f32 %v1584, %v1585
        %v1587 = vrot.slane %v1586, 2
        %v1588 = vadd.f32 %v1586, %v1587
        %v1589 = vrot.slane %v1588, 1
        %v1590 = vadd.f32 %v1588, %v1589
        %v1591 = vadd.f32 %v1549, %v1550
        %v1592 = vadd.f32 %v1591, %v1551
        %v1593 = vadd.f32 %v1592, %v1552
        %v1594 = vrot.slane %v1593, 4
        %v1595 = vadd.f32 %v1593, %v1594
        %v1596 = vrot.slane %v1595, 2
        %v1597 = vadd.f32 %v1595, %v1596
        %v1598 = vrot.slane %v1597, 1
        %v1599 = vadd.f32 %v1597, %v1598
        %v1600 = vadd.f32 %v1553, %v1554
        %v1601 = vadd.f32 %v1600, %v1555
        %v1602 = vadd.f32 %v1601, %v1556
        %v1603 = vrot.slane %v1602, 4
        %v1604 = vadd.f32 %v1602, %v1603
        %v1605 = vrot.slane %v1604, 2
        %v1606 = vadd.f32 %v1604, %v1605
        %v1607 = vrot.slane %v1606, 1
        %v1608 = vadd.f32 %v1606, %v1607
        %v1609 = vadd.f32 %v1557, %v1558
        %v1610 = vadd.f32 %v1609, %v1559
        %v1611 = vadd.f32 %v1610, %v1560
        %v1612 = vrot.slane %v1611, 4
        %v1613 = vadd.f32 %v1611, %v1612
        %v1614 = vrot.slane %v1613, 2
        %v1615 = vadd.f32 %v1613, %v1614
        %v1616 = vrot.slane %v1615, 1
        %v1617 = vadd.f32 %v1615, %v1616
        %v1618 = vadd.f32 %v1561, %v1562
        %v1619 = vadd.f32 %v1618, %v1563
        %v1620 = vadd.f32 %v1619, %v1564
        %v1621 = vrot.slane %v1620, 4
        %v1622 = vadd.f32 %v1620, %v1621
        %v1623 = vrot.slane %v1622, 2
        %v1624 = vadd.f32 %v1622, %v1623
        %v1625 = vrot.slane %v1624, 1
        %v1626 = vadd.f32 %v1624, %v1625
        %v1627 = vadd.f32 %v1565, %v1566
        %v1628 = vadd.f32 %v1627, %v1567
        %v1629 = vadd.f32 %v1628, %v1568
        %v1630 = vrot.slane %v1629, 4
        %v1631 = vadd.f32 %v1629, %v1630
        %v1632 = vrot.slane %v1631, 2
        %v1633 = vadd.f32 %v1631, %v1632
        %v1634 = vrot.slane %v1633, 1
        %v1635 = vadd.f32 %v1633, %v1634
        %v1636 = vadd.f32 %v1569, %v1570
        %v1637 = vadd.f32 %v1636, %v1571
        %v1638 = vadd.f32 %v1637, %v1572
        %v1639 = vrot.slane %v1638, 4
        %v1640 = vadd.f32 %v1638, %v1639
        %v1641 = vrot.slane %v1640, 2
        %v1642 = vadd.f32 %v1640, %v1641
        %v1643 = vrot.slane %v1642, 1
        %v1644 = vadd.f32 %v1642, %v1643
        %v1645 = vadd.f32 %v1581, 0.0
        %v1646 = vadd.f32 %v1590, 0.0
        %v1647 = vadd.f32 %v1599, 0.0
        %v1648 = vadd.f32 %v1608, 0.0
        %v1649 = vadd.f32 %v1617, 0.0
        %v1650 = vadd.f32 %v1626, 0.0
        %v1651 = vadd.f32 %v1635, 0.0
        %v1652 = vadd.f32 %v1644, 0.0
        %v1653 = vunpack.c.l.bf16 %v321
        %v1654 = vunpack.c.l.bf16 %v322
        %v1655 = vunpack.c.l.bf16 %v323
        %v1656 = vunpack.c.l.bf16 %v324
        %v1657 = vunpack.c.l.bf16 %v353
        %v1658 = vunpack.c.l.bf16 %v354
        %v1659 = vunpack.c.l.bf16 %v355
        %v1660 = vunpack.c.l.bf16 %v356
        %v1661 = vunpack.c.l.bf16 %v385
        %v1662 = vunpack.c.l.bf16 %v386
        %v1663 = vunpack.c.l.bf16 %v387
        %v1664 = vunpack.c.l.bf16 %v388
        %v1665 = vunpack.c.l.bf16 %v417
        %v1666 = vunpack.c.l.bf16 %v418
        %v1667 = vunpack.c.l.bf16 %v419
        %v1668 = vunpack.c.l.bf16 %v420
        %v1669 = vunpack.c.l.bf16 %v449
        %v1670 = vunpack.c.l.bf16 %v450
        %v1671 = vunpack.c.l.bf16 %v451
        %v1672 = vunpack.c.l.bf16 %v452
        %v1673 = vunpack.c.l.bf16 %v481
        %v1674 = vunpack.c.l.bf16 %v482
        %v1675 = vunpack.c.l.bf16 %v483
        %v1676 = vunpack.c.l.bf16 %v484
        %v1677 = vunpack.c.l.bf16 %v513
        %v1678 = vunpack.c.l.bf16 %v514
        %v1679 = vunpack.c.l.bf16 %v515
        %v1680 = vunpack.c.l.bf16 %v516
        %v1681 = vunpack.c.l.bf16 %v545
        %v1682 = vunpack.c.l.bf16 %v546
        %v1683 = vunpack.c.l.bf16 %v547
        %v1684 = vunpack.c.l.bf16 %v548
        %v1685 = vadd.f32 %v1653, %v1654
        %v1686 = vadd.f32 %v1685, %v1655
        %v1687 = vadd.f32 %v1686, %v1656
        %v1688 = vrot.slane %v1687, 4
        %v1689 = vadd.f32 %v1687, %v1688
        %v1690 = vrot.slane %v1689, 2
        %v1691 = vadd.f32 %v1689, %v1690
        %v1692 = vrot.slane %v1691, 1
        %v1693 = vadd.f32 %v1691, %v1692
        %v1694 = vadd.f32 %v1657, %v1658
        %v1695 = vadd.f32 %v1694, %v1659
        %v1696 = vadd.f32 %v1695, %v1660
        %v1697 = vrot.slane %v1696, 4
        %v1698 = vadd.f32 %v1696, %v1697
        %v1699 = vrot.slane %v1698, 2
        %v1700 = vadd.f32 %v1698, %v1699
        %v1701 = vrot.slane %v1700, 1
        %v1702 = vadd.f32 %v1700, %v1701
        %v1703 = vadd.f32 %v1661, %v1662
        %v1704 = vadd.f32 %v1703, %v1663
        %v1705 = vadd.f32 %v1704, %v1664
        %v1706 = vrot.slane %v1705, 4
        %v1707 = vadd.f32 %v1705, %v1706
        %v1708 = vrot.slane %v1707, 2
        %v1709 = vadd.f32 %v1707, %v1708
        %v1710 = vrot.slane %v1709, 1
        %v1711 = vadd.f32 %v1709, %v1710
        %v1712 = vadd.f32 %v1665, %v1666
        %v1713 = vadd.f32 %v1712, %v1667
        %v1714 = vadd.f32 %v1713, %v1668
        %v1715 = vrot.slane %v1714, 4
        %v1716 = vadd.f32 %v1714, %v1715
        %v1717 = vrot.slane %v1716, 2
        %v1718 = vadd.f32 %v1716, %v1717
        %v1719 = vrot.slane %v1718, 1
        %v1720 = vadd.f32 %v1718, %v1719
        %v1721 = vadd.f32 %v1669, %v1670
        %v1722 = vadd.f32 %v1721, %v1671
        %v1723 = vadd.f32 %v1722, %v1672
        %v1724 = vrot.slane %v1723, 4
        %v1725 = vadd.f32 %v1723, %v1724
        %v1726 = vrot.slane %v1725, 2
        %v1727 = vadd.f32 %v1725, %v1726
        %v1728 = vrot.slane %v1727, 1
        %v1729 = vadd.f32 %v1727, %v1728
        %v1730 = vadd.f32 %v1673, %v1674
        %v1731 = vadd.f32 %v1730, %v1675
        %v1732 = vadd.f32 %v1731, %v1676
        %v1733 = vrot.slane %v1732, 4
        %v1734 = vadd.f32 %v1732, %v1733
        %v1735 = vrot.slane %v1734, 2
        %v1736 = vadd.f32 %v1734, %v1735
        %v1737 = vrot.slane %v1736, 1
        %v1738 = vadd.f32 %v1736, %v1737
        %v1739 = vadd.f32 %v1677, %v1678
        %v1740 = vadd.f32 %v1739, %v1679
        %v1741 = vadd.f32 %v1740, %v1680
        %v1742 = vrot.slane %v1741, 4
        %v1743 = vadd.f32 %v1741, %v1742
        %v1744 = vrot.slane %v1743, 2
        %v1745 = vadd.f32 %v1743, %v1744
        %v1746 = vrot.slane %v1745, 1
        %v1747 = vadd.f32 %v1745, %v1746
        %v1748 = vadd.f32 %v1681, %v1682
        %v1749 = vadd.f32 %v1748, %v1683
        %v1750 = vadd.f32 %v1749, %v1684
        %v1751 = vrot.slane %v1750, 4
        %v1752 = vadd.f32 %v1750, %v1751
        %v1753 = vrot.slane %v1752, 2
        %v1754 = vadd.f32 %v1752, %v1753
        %v1755 = vrot.slane %v1754, 1
        %v1756 = vadd.f32 %v1754, %v1755
        %v1757 = vadd.f32 %v1645, %v1693
        %v1758 = vadd.f32 %v1646, %v1702
        %v1759 = vadd.f32 %v1647, %v1711
        %v1760 = vadd.f32 %v1648, %v1720
        %v1761 = vadd.f32 %v1649, %v1729
        %v1762 = vadd.f32 %v1650, %v1738
        %v1763 = vadd.f32 %v1651, %v1747
        %v1764 = vadd.f32 %v1652, %v1756
        %v1765 = vunpack.c.l.bf16 %v325
        %v1766 = vunpack.c.l.bf16 %v326
        %v1767 = vunpack.c.l.bf16 %v327
        %v1768 = vunpack.c.l.bf16 %v328
        %v1769 = vunpack.c.l.bf16 %v357
        %v1770 = vunpack.c.l.bf16 %v358
        %v1771 = vunpack.c.l.bf16 %v359
        %v1772 = vunpack.c.l.bf16 %v360
        %v1773 = vunpack.c.l.bf16 %v389
        %v1774 = vunpack.c.l.bf16 %v390
        %v1775 = vunpack.c.l.bf16 %v391
        %v1776 = vunpack.c.l.bf16 %v392
        %v1777 = vunpack.c.l.bf16 %v421
        %v1778 = vunpack.c.l.bf16 %v422
        %v1779 = vunpack.c.l.bf16 %v423
        %v1780 = vunpack.c.l.bf16 %v424
        %v1781 = vunpack.c.l.bf16 %v453
        %v1782 = vunpack.c.l.bf16 %v454
        %v1783 = vunpack.c.l.bf16 %v455
        %v1784 = vunpack.c.l.bf16 %v456
        %v1785 = vunpack.c.l.bf16 %v485
        %v1786 = vunpack.c.l.bf16 %v486
        %v1787 = vunpack.c.l.bf16 %v487
        %v1788 = vunpack.c.l.bf16 %v488
        %v1789 = vunpack.c.l.bf16 %v517
        %v1790 = vunpack.c.l.bf16 %v518
        %v1791 = vunpack.c.l.bf16 %v519
        %v1792 = vunpack.c.l.bf16 %v520
        %v1793 = vunpack.c.l.bf16 %v549
        %v1794 = vunpack.c.l.bf16 %v550
        %v1795 = vunpack.c.l.bf16 %v551
        %v1796 = vunpack.c.l.bf16 %v552
        %v1797 = vadd.f32 %v1765, %v1766
        %v1798 = vadd.f32 %v1797, %v1767
        %v1799 = vadd.f32 %v1798, %v1768
        %v1800 = vrot.slane %v1799, 4
        %v1801 = vadd.f32 %v1799, %v1800
        %v1802 = vrot.slane %v1801, 2
        %v1803 = vadd.f32 %v1801, %v1802
        %v1804 = vrot.slane %v1803, 1
        %v1805 = vadd.f32 %v1803, %v1804
        %v1806 = vadd.f32 %v1769, %v1770
        %v1807 = vadd.f32 %v1806, %v1771
        %v1808 = vadd.f32 %v1807, %v1772
        %v1809 = vrot.slane %v1808, 4
        %v1810 = vadd.f32 %v1808, %v1809
        %v1811 = vrot.slane %v1810, 2
        %v1812 = vadd.f32 %v1810, %v1811
        %v1813 = vrot.slane %v1812, 1
        %v1814 = vadd.f32 %v1812, %v1813
        %v1815 = vadd.f32 %v1773, %v1774
        %v1816 = vadd.f32 %v1815, %v1775
        %v1817 = vadd.f32 %v1816, %v1776
        %v1818 = vrot.slane %v1817, 4
        %v1819 = vadd.f32 %v1817, %v1818
        %v1820 = vrot.slane %v1819, 2
        %v1821 = vadd.f32 %v1819, %v1820
        %v1822 = vrot.slane %v1821, 1
        %v1823 = vadd.f32 %v1821, %v1822
        %v1824 = vadd.f32 %v1777, %v1778
        %v1825 = vadd.f32 %v1824, %v1779
        %v1826 = vadd.f32 %v1825, %v1780
        %v1827 = vrot.slane %v1826, 4
        %v1828 = vadd.f32 %v1826, %v1827
        %v1829 = vrot.slane %v1828, 2
        %v1830 = vadd.f32 %v1828, %v1829
        %v1831 = vrot.slane %v1830, 1
        %v1832 = vadd.f32 %v1830, %v1831
        %v1833 = vadd.f32 %v1781, %v1782
        %v1834 = vadd.f32 %v1833, %v1783
        %v1835 = vadd.f32 %v1834, %v1784
        %v1836 = vrot.slane %v1835, 4
        %v1837 = vadd.f32 %v1835, %v1836
        %v1838 = vrot.slane %v1837, 2
        %v1839 = vadd.f32 %v1837, %v1838
        %v1840 = vrot.slane %v1839, 1
        %v1841 = vadd.f32 %v1839, %v1840
        %v1842 = vadd.f32 %v1785, %v1786
        %v1843 = vadd.f32 %v1842, %v1787
        %v1844 = vadd.f32 %v1843, %v1788
        %v1845 = vrot.slane %v1844, 4
        %v1846 = vadd.f32 %v1844, %v1845
        %v1847 = vrot.slane %v1846, 2
        %v1848 = vadd.f32 %v1846, %v1847
        %v1849 = vrot.slane %v1848, 1
        %v1850 = vadd.f32 %v1848, %v1849
        %v1851 = vadd.f32 %v1789, %v1790
        %v1852 = vadd.f32 %v1851, %v1791
        %v1853 = vadd.f32 %v1852, %v1792
        %v1854 = vrot.slane %v1853, 4
        %v1855 = vadd.f32 %v1853, %v1854
        %v1856 = vrot.slane %v1855, 2
        %v1857 = vadd.f32 %v1855, %v1856
        %v1858 = vrot.slane %v1857, 1
        %v1859 = vadd.f32 %v1857, %v1858
        %v1860 = vadd.f32 %v1793, %v1794
        %v1861 = vadd.f32 %v1860, %v1795
        %v1862 = vadd.f32 %v1861, %v1796
        %v1863 = vrot.slane %v1862, 4
        %v1864 = vadd.f32 %v1862, %v1863
        %v1865 = vrot.slane %v1864, 2
        %v1866 = vadd.f32 %v1864, %v1865
        %v1867 = vrot.slane %v1866, 1
        %v1868 = vadd.f32 %v1866, %v1867
        %v1869 = vadd.f32 %v1757, %v1805
        %v1870 = vadd.f32 %v1758, %v1814
        %v1871 = vadd.f32 %v1759, %v1823
        %v1872 = vadd.f32 %v1760, %v1832
        %v1873 = vadd.f32 %v1761, %v1841
        %v1874 = vadd.f32 %v1762, %v1850
        %v1875 = vadd.f32 %v1763, %v1859
        %v1876 = vadd.f32 %v1764, %v1868
        %v1877 = vunpack.c.l.bf16 %v329
        %v1878 = vunpack.c.l.bf16 %v330
        %v1879 = vunpack.c.l.bf16 %v331
        %v1880 = vunpack.c.l.bf16 %v332
        %v1881 = vunpack.c.l.bf16 %v361
        %v1882 = vunpack.c.l.bf16 %v362
        %v1883 = vunpack.c.l.bf16 %v363
        %v1884 = vunpack.c.l.bf16 %v364
        %v1885 = vunpack.c.l.bf16 %v393
        %v1886 = vunpack.c.l.bf16 %v394
        %v1887 = vunpack.c.l.bf16 %v395
        %v1888 = vunpack.c.l.bf16 %v396
        %v1889 = vunpack.c.l.bf16 %v425
        %v1890 = vunpack.c.l.bf16 %v426
        %v1891 = vunpack.c.l.bf16 %v427
        %v1892 = vunpack.c.l.bf16 %v428
        %v1893 = vunpack.c.l.bf16 %v457
        %v1894 = vunpack.c.l.bf16 %v458
        %v1895 = vunpack.c.l.bf16 %v459
        %v1896 = vunpack.c.l.bf16 %v460
        %v1897 = vunpack.c.l.bf16 %v489
        %v1898 = vunpack.c.l.bf16 %v490
        %v1899 = vunpack.c.l.bf16 %v491
        %v1900 = vunpack.c.l.bf16 %v492
        %v1901 = vunpack.c.l.bf16 %v521
        %v1902 = vunpack.c.l.bf16 %v522
        %v1903 = vunpack.c.l.bf16 %v523
        %v1904 = vunpack.c.l.bf16 %v524
        %v1905 = vunpack.c.l.bf16 %v553
        %v1906 = vunpack.c.l.bf16 %v554
        %v1907 = vunpack.c.l.bf16 %v555
        %v1908 = vunpack.c.l.bf16 %v556
        %v1909 = vadd.f32 %v1877, %v1878
        %v1910 = vadd.f32 %v1909, %v1879
        %v1911 = vadd.f32 %v1910, %v1880
        %v1912 = vrot.slane %v1911, 4
        %v1913 = vadd.f32 %v1911, %v1912
        %v1914 = vrot.slane %v1913, 2
        %v1915 = vadd.f32 %v1913, %v1914
        %v1916 = vrot.slane %v1915, 1
        %v1917 = vadd.f32 %v1915, %v1916
        %v1918 = vadd.f32 %v1881, %v1882
        %v1919 = vadd.f32 %v1918, %v1883
        %v1920 = vadd.f32 %v1919, %v1884
        %v1921 = vrot.slane %v1920, 4
        %v1922 = vadd.f32 %v1920, %v1921
        %v1923 = vrot.slane %v1922, 2
        %v1924 = vadd.f32 %v1922, %v1923
        %v1925 = vrot.slane %v1924, 1
        %v1926 = vadd.f32 %v1924, %v1925
        %v1927 = vadd.f32 %v1885, %v1886
        %v1928 = vadd.f32 %v1927, %v1887
        %v1929 = vadd.f32 %v1928, %v1888
        %v1930 = vrot.slane %v1929, 4
        %v1931 = vadd.f32 %v1929, %v1930
        %v1932 = vrot.slane %v1931, 2
        %v1933 = vadd.f32 %v1931, %v1932
        %v1934 = vrot.slane %v1933, 1
        %v1935 = vadd.f32 %v1933, %v1934
        %v1936 = vadd.f32 %v1889, %v1890
        %v1937 = vadd.f32 %v1936, %v1891
        %v1938 = vadd.f32 %v1937, %v1892
        %v1939 = vrot.slane %v1938, 4
        %v1940 = vadd.f32 %v1938, %v1939
        %v1941 = vrot.slane %v1940, 2
        %v1942 = vadd.f32 %v1940, %v1941
        %v1943 = vrot.slane %v1942, 1
        %v1944 = vadd.f32 %v1942, %v1943
        %v1945 = vadd.f32 %v1893, %v1894
        %v1946 = vadd.f32 %v1945, %v1895
        %v1947 = vadd.f32 %v1946, %v1896
        %v1948 = vrot.slane %v1947, 4
        %v1949 = vadd.f32 %v1947, %v1948
        %v1950 = vrot.slane %v1949, 2
        %v1951 = vadd.f32 %v1949, %v1950
        %v1952 = vrot.slane %v1951, 1
        %v1953 = vadd.f32 %v1951, %v1952
        %v1954 = vadd.f32 %v1897, %v1898
        %v1955 = vadd.f32 %v1954, %v1899
        %v1956 = vadd.f32 %v1955, %v1900
        %v1957 = vrot.slane %v1956, 4
        %v1958 = vadd.f32 %v1956, %v1957
        %v1959 = vrot.slane %v1958, 2
        %v1960 = vadd.f32 %v1958, %v1959
        %v1961 = vrot.slane %v1960, 1
        %v1962 = vadd.f32 %v1960, %v1961
        %v1963 = vadd.f32 %v1901, %v1902
        %v1964 = vadd.f32 %v1963, %v1903
        %v1965 = vadd.f32 %v1964, %v1904
        %v1966 = vrot.slane %v1965, 4
        %v1967 = vadd.f32 %v1965, %v1966
        %v1968 = vrot.slane %v1967, 2
        %v1969 = vadd.f32 %v1967, %v1968
        %v1970 = vrot.slane %v1969, 1
        %v1971 = vadd.f32 %v1969, %v1970
        %v1972 = vadd.f32 %v1905, %v1906
        %v1973 = vadd.f32 %v1972, %v1907
        %v1974 = vadd.f32 %v1973, %v1908
        %v1975 = vrot.slane %v1974, 4
        %v1976 = vadd.f32 %v1974, %v1975
        %v1977 = vrot.slane %v1976, 2
        %v1978 = vadd.f32 %v1976, %v1977
        %v1979 = vrot.slane %v1978, 1
        %v1980 = vadd.f32 %v1978, %v1979
        %v1981 = vadd.f32 %v1869, %v1917
        %v1982 = vadd.f32 %v1870, %v1926
        %v1983 = vadd.f32 %v1871, %v1935
        %v1984 = vadd.f32 %v1872, %v1944
        %v1985 = vadd.f32 %v1873, %v1953
        %v1986 = vadd.f32 %v1874, %v1962
        %v1987 = vadd.f32 %v1875, %v1971
        %v1988 = vadd.f32 %v1876, %v1980
        %v1989 = vunpack.c.l.bf16 %v333
        %v1990 = vunpack.c.l.bf16 %v334
        %v1991 = vunpack.c.l.bf16 %v335
        %v1992 = vunpack.c.l.bf16 %v336
        %v1993 = vunpack.c.l.bf16 %v365
        %v1994 = vunpack.c.l.bf16 %v366
        %v1995 = vunpack.c.l.bf16 %v367
        %v1996 = vunpack.c.l.bf16 %v368
        %v1997 = vunpack.c.l.bf16 %v397
        %v1998 = vunpack.c.l.bf16 %v398
        %v1999 = vunpack.c.l.bf16 %v399
        %v2000 = vunpack.c.l.bf16 %v400
        %v2001 = vunpack.c.l.bf16 %v429
        %v2002 = vunpack.c.l.bf16 %v430
        %v2003 = vunpack.c.l.bf16 %v431
        %v2004 = vunpack.c.l.bf16 %v432
        %v2005 = vunpack.c.l.bf16 %v461
        %v2006 = vunpack.c.l.bf16 %v462
        %v2007 = vunpack.c.l.bf16 %v463
        %v2008 = vunpack.c.l.bf16 %v464
        %v2009 = vunpack.c.l.bf16 %v493
        %v2010 = vunpack.c.l.bf16 %v494
        %v2011 = vunpack.c.l.bf16 %v495
        %v2012 = vunpack.c.l.bf16 %v496
        %v2013 = vunpack.c.l.bf16 %v525
        %v2014 = vunpack.c.l.bf16 %v526
        %v2015 = vunpack.c.l.bf16 %v527
        %v2016 = vunpack.c.l.bf16 %v528
        %v2017 = vunpack.c.l.bf16 %v557
        %v2018 = vunpack.c.l.bf16 %v558
        %v2019 = vunpack.c.l.bf16 %v559
        %v2020 = vunpack.c.l.bf16 %v560
        %v2021 = vadd.f32 %v1989, %v1990
        %v2022 = vadd.f32 %v2021, %v1991
        %v2023 = vadd.f32 %v2022, %v1992
        %v2024 = vrot.slane %v2023, 4
        %v2025 = vadd.f32 %v2023, %v2024
        %v2026 = vrot.slane %v2025, 2
        %v2027 = vadd.f32 %v2025, %v2026
        %v2028 = vrot.slane %v2027, 1
        %v2029 = vadd.f32 %v2027, %v2028
        %v2030 = vadd.f32 %v1993, %v1994
        %v2031 = vadd.f32 %v2030, %v1995
        %v2032 = vadd.f32 %v2031, %v1996
        %v2033 = vrot.slane %v2032, 4
        %v2034 = vadd.f32 %v2032, %v2033
        %v2035 = vrot.slane %v2034, 2
        %v2036 = vadd.f32 %v2034, %v2035
        %v2037 = vrot.slane %v2036, 1
        %v2038 = vadd.f32 %v2036, %v2037
        %v2039 = vadd.f32 %v1997, %v1998
        %v2040 = vadd.f32 %v2039, %v1999
        %v2041 = vadd.f32 %v2040, %v2000
        %v2042 = vrot.slane %v2041, 4
        %v2043 = vadd.f32 %v2041, %v2042
        %v2044 = vrot.slane %v2043, 2
        %v2045 = vadd.f32 %v2043, %v2044
        %v2046 = vrot.slane %v2045, 1
        %v2047 = vadd.f32 %v2045, %v2046
        %v2048 = vadd.f32 %v2001, %v2002
        %v2049 = vadd.f32 %v2048, %v2003
        %v2050 = vadd.f32 %v2049, %v2004
        %v2051 = vrot.slane %v2050, 4
        %v2052 = vadd.f32 %v2050, %v2051
        %v2053 = vrot.slane %v2052, 2
        %v2054 = vadd.f32 %v2052, %v2053
        %v2055 = vrot.slane %v2054, 1
        %v2056 = vadd.f32 %v2054, %v2055
        %v2057 = vadd.f32 %v2005, %v2006
        %v2058 = vadd.f32 %v2057, %v2007
        %v2059 = vadd.f32 %v2058, %v2008
        %v2060 = vrot.slane %v2059, 4
        %v2061 = vadd.f32 %v2059, %v2060
        %v2062 = vrot.slane %v2061, 2
        %v2063 = vadd.f32 %v2061, %v2062
        %v2064 = vrot.slane %v2063, 1
        %v2065 = vadd.f32 %v2063, %v2064
        %v2066 = vadd.f32 %v2009, %v2010
        %v2067 = vadd.f32 %v2066, %v2011
        %v2068 = vadd.f32 %v2067, %v2012
        %v2069 = vrot.slane %v2068, 4
        %v2070 = vadd.f32 %v2068, %v2069
        %v2071 = vrot.slane %v2070, 2
        %v2072 = vadd.f32 %v2070, %v2071
        %v2073 = vrot.slane %v2072, 1
        %v2074 = vadd.f32 %v2072, %v2073
        %v2075 = vadd.f32 %v2013, %v2014
        %v2076 = vadd.f32 %v2075, %v2015
        %v2077 = vadd.f32 %v2076, %v2016
        %v2078 = vrot.slane %v2077, 4
        %v2079 = vadd.f32 %v2077, %v2078
        %v2080 = vrot.slane %v2079, 2
        %v2081 = vadd.f32 %v2079, %v2080
        %v2082 = vrot.slane %v2081, 1
        %v2083 = vadd.f32 %v2081, %v2082
        %v2084 = vadd.f32 %v2017, %v2018
        %v2085 = vadd.f32 %v2084, %v2019
        %v2086 = vadd.f32 %v2085, %v2020
        %v2087 = vrot.slane %v2086, 4
        %v2088 = vadd.f32 %v2086, %v2087
        %v2089 = vrot.slane %v2088, 2
        %v2090 = vadd.f32 %v2088, %v2089
        %v2091 = vrot.slane %v2090, 1
        %v2092 = vadd.f32 %v2090, %v2091
        %v2093 = vadd.f32 %v1981, %v2029
        %v2094 = vadd.f32 %v1982, %v2038
        %v2095 = vadd.f32 %v1983, %v2047
        %v2096 = vadd.f32 %v1984, %v2056
        %v2097 = vadd.f32 %v1985, %v2065
        %v2098 = vadd.f32 %v1986, %v2074
        %v2099 = vadd.f32 %v1987, %v2083
        %v2100 = vadd.f32 %v1988, %v2092
        %v2101 = vunpack.c.l.bf16 %v337
        %v2102 = vunpack.c.l.bf16 %v338
        %v2103 = vunpack.c.l.bf16 %v339
        %v2104 = vunpack.c.l.bf16 %v340
        %v2105 = vunpack.c.l.bf16 %v369
        %v2106 = vunpack.c.l.bf16 %v370
        %v2107 = vunpack.c.l.bf16 %v371
        %v2108 = vunpack.c.l.bf16 %v372
        %v2109 = vunpack.c.l.bf16 %v401
        %v2110 = vunpack.c.l.bf16 %v402
        %v2111 = vunpack.c.l.bf16 %v403
        %v2112 = vunpack.c.l.bf16 %v404
        %v2113 = vunpack.c.l.bf16 %v433
        %v2114 = vunpack.c.l.bf16 %v434
        %v2115 = vunpack.c.l.bf16 %v435
        %v2116 = vunpack.c.l.bf16 %v436
        %v2117 = vunpack.c.l.bf16 %v465
        %v2118 = vunpack.c.l.bf16 %v466
        %v2119 = vunpack.c.l.bf16 %v467
        %v2120 = vunpack.c.l.bf16 %v468
        %v2121 = vunpack.c.l.bf16 %v497
        %v2122 = vunpack.c.l.bf16 %v498
        %v2123 = vunpack.c.l.bf16 %v499
        %v2124 = vunpack.c.l.bf16 %v500
        %v2125 = vunpack.c.l.bf16 %v529
        %v2126 = vunpack.c.l.bf16 %v530
        %v2127 = vunpack.c.l.bf16 %v531
        %v2128 = vunpack.c.l.bf16 %v532
        %v2129 = vunpack.c.l.bf16 %v561
        %v2130 = vunpack.c.l.bf16 %v562
        %v2131 = vunpack.c.l.bf16 %v563
        %v2132 = vunpack.c.l.bf16 %v564
        %v2133 = vadd.f32 %v2101, %v2102
        %v2134 = vadd.f32 %v2133, %v2103
        %v2135 = vadd.f32 %v2134, %v2104
        %v2136 = vrot.slane %v2135, 4
        %v2137 = vadd.f32 %v2135, %v2136
        %v2138 = vrot.slane %v2137, 2
        %v2139 = vadd.f32 %v2137, %v2138
        %v2140 = vrot.slane %v2139, 1
        %v2141 = vadd.f32 %v2139, %v2140
        %v2142 = vadd.f32 %v2105, %v2106
        %v2143 = vadd.f32 %v2142, %v2107
        %v2144 = vadd.f32 %v2143, %v2108
        %v2145 = vrot.slane %v2144, 4
        %v2146 = vadd.f32 %v2144, %v2145
        %v2147 = vrot.slane %v2146, 2
        %v2148 = vadd.f32 %v2146, %v2147
        %v2149 = vrot.slane %v2148, 1
        %v2150 = vadd.f32 %v2148, %v2149
        %v2151 = vadd.f32 %v2109, %v2110
        %v2152 = vadd.f32 %v2151, %v2111
        %v2153 = vadd.f32 %v2152, %v2112
        %v2154 = vrot.slane %v2153, 4
        %v2155 = vadd.f32 %v2153, %v2154
        %v2156 = vrot.slane %v2155, 2
        %v2157 = vadd.f32 %v2155, %v2156
        %v2158 = vrot.slane %v2157, 1
        %v2159 = vadd.f32 %v2157, %v2158
        %v2160 = vadd.f32 %v2113, %v2114
        %v2161 = vadd.f32 %v2160, %v2115
        %v2162 = vadd.f32 %v2161, %v2116
        %v2163 = vrot.slane %v2162, 4
        %v2164 = vadd.f32 %v2162, %v2163
        %v2165 = vrot.slane %v2164, 2
        %v2166 = vadd.f32 %v2164, %v2165
        %v2167 = vrot.slane %v2166, 1
        %v2168 = vadd.f32 %v2166, %v2167
        %v2169 = vadd.f32 %v2117, %v2118
        %v2170 = vadd.f32 %v2169, %v2119
        %v2171 = vadd.f32 %v2170, %v2120
        %v2172 = vrot.slane %v2171, 4
        %v2173 = vadd.f32 %v2171, %v2172
        %v2174 = vrot.slane %v2173, 2
        %v2175 = vadd.f32 %v2173, %v2174
        %v2176 = vrot.slane %v2175, 1
        %v2177 = vadd.f32 %v2175, %v2176
        %v2178 = vadd.f32 %v2121, %v2122
        %v2179 = vadd.f32 %v2178, %v2123
        %v2180 = vadd.f32 %v2179, %v2124
        %v2181 = vrot.slane %v2180, 4
        %v2182 = vadd.f32 %v2180, %v2181
        %v2183 = vrot.slane %v2182, 2
        %v2184 = vadd.f32 %v2182, %v2183
        %v2185 = vrot.slane %v2184, 1
        %v2186 = vadd.f32 %v2184, %v2185
        %v2187 = vadd.f32 %v2125, %v2126
        %v2188 = vadd.f32 %v2187, %v2127
        %v2189 = vadd.f32 %v2188, %v2128
        %v2190 = vrot.slane %v2189, 4
        %v2191 = vadd.f32 %v2189, %v2190
        %v2192 = vrot.slane %v2191, 2
        %v2193 = vadd.f32 %v2191, %v2192
        %v2194 = vrot.slane %v2193, 1
        %v2195 = vadd.f32 %v2193, %v2194
        %v2196 = vadd.f32 %v2129, %v2130
        %v2197 = vadd.f32 %v2196, %v2131
        %v2198 = vadd.f32 %v2197, %v2132
        %v2199 = vrot.slane %v2198, 4
        %v2200 = vadd.f32 %v2198, %v2199
        %v2201 = vrot.slane %v2200, 2
        %v2202 = vadd.f32 %v2200, %v2201
        %v2203 = vrot.slane %v2202, 1
        %v2204 = vadd.f32 %v2202, %v2203
        %v2205 = vadd.f32 %v2093, %v2141
        %v2206 = vadd.f32 %v2094, %v2150
        %v2207 = vadd.f32 %v2095, %v2159
        %v2208 = vadd.f32 %v2096, %v2168
        %v2209 = vadd.f32 %v2097, %v2177
        %v2210 = vadd.f32 %v2098, %v2186
        %v2211 = vadd.f32 %v2099, %v2195
        %v2212 = vadd.f32 %v2100, %v2204
        %v2213 = vunpack.c.l.bf16 %v341
        %v2214 = vunpack.c.l.bf16 %v342
        %v2215 = vunpack.c.l.bf16 %v343
        %v2216 = vunpack.c.l.bf16 %v344
        %v2217 = vunpack.c.l.bf16 %v373
        %v2218 = vunpack.c.l.bf16 %v374
        %v2219 = vunpack.c.l.bf16 %v375
        %v2220 = vunpack.c.l.bf16 %v376
        %v2221 = vunpack.c.l.bf16 %v405
        %v2222 = vunpack.c.l.bf16 %v406
        %v2223 = vunpack.c.l.bf16 %v407
        %v2224 = vunpack.c.l.bf16 %v408
        %v2225 = vunpack.c.l.bf16 %v437
        %v2226 = vunpack.c.l.bf16 %v438
        %v2227 = vunpack.c.l.bf16 %v439
        %v2228 = vunpack.c.l.bf16 %v440
        %v2229 = vunpack.c.l.bf16 %v469
        %v2230 = vunpack.c.l.bf16 %v470
        %v2231 = vunpack.c.l.bf16 %v471
        %v2232 = vunpack.c.l.bf16 %v472
        %v2233 = vunpack.c.l.bf16 %v501
        %v2234 = vunpack.c.l.bf16 %v502
        %v2235 = vunpack.c.l.bf16 %v503
        %v2236 = vunpack.c.l.bf16 %v504
        %v2237 = vunpack.c.l.bf16 %v533
        %v2238 = vunpack.c.l.bf16 %v534
        %v2239 = vunpack.c.l.bf16 %v535
        %v2240 = vunpack.c.l.bf16 %v536
        %v2241 = vunpack.c.l.bf16 %v565
        %v2242 = vunpack.c.l.bf16 %v566
        %v2243 = vunpack.c.l.bf16 %v567
        %v2244 = vunpack.c.l.bf16 %v568
        %v2245 = vadd.f32 %v2213, %v2214
        %v2246 = vadd.f32 %v2245, %v2215
        %v2247 = vadd.f32 %v2246, %v2216
        %v2248 = vrot.slane %v2247, 4
        %v2249 = vadd.f32 %v2247, %v2248
        %v2250 = vrot.slane %v2249, 2
        %v2251 = vadd.f32 %v2249, %v2250
        %v2252 = vrot.slane %v2251, 1
        %v2253 = vadd.f32 %v2251, %v2252
        %v2254 = vadd.f32 %v2217, %v2218
        %v2255 = vadd.f32 %v2254, %v2219
        %v2256 = vadd.f32 %v2255, %v2220
        %v2257 = vrot.slane %v2256, 4
        %v2258 = vadd.f32 %v2256, %v2257
        %v2259 = vrot.slane %v2258, 2
        %v2260 = vadd.f32 %v2258, %v2259
        %v2261 = vrot.slane %v2260, 1
        %v2262 = vadd.f32 %v2260, %v2261
        %v2263 = vadd.f32 %v2221, %v2222
        %v2264 = vadd.f32 %v2263, %v2223
        %v2265 = vadd.f32 %v2264, %v2224
        %v2266 = vrot.slane %v2265, 4
        %v2267 = vadd.f32 %v2265, %v2266
        %v2268 = vrot.slane %v2267, 2
        %v2269 = vadd.f32 %v2267, %v2268
        %v2270 = vrot.slane %v2269, 1
        %v2271 = vadd.f32 %v2269, %v2270
        %v2272 = vadd.f32 %v2225, %v2226
        %v2273 = vadd.f32 %v2272, %v2227
        %v2274 = vadd.f32 %v2273, %v2228
        %v2275 = vrot.slane %v2274, 4
        %v2276 = vadd.f32 %v2274, %v2275
        %v2277 = vrot.slane %v2276, 2
        %v2278 = vadd.f32 %v2276, %v2277
        %v2279 = vrot.slane %v2278, 1
        %v2280 = vadd.f32 %v2278, %v2279
        %v2281 = vadd.f32 %v2229, %v2230
        %v2282 = vadd.f32 %v2281, %v2231
        %v2283 = vadd.f32 %v2282, %v2232
        %v2284 = vrot.slane %v2283, 4
        %v2285 = vadd.f32 %v2283, %v2284
        %v2286 = vrot.slane %v2285, 2
        %v2287 = vadd.f32 %v2285, %v2286
        %v2288 = vrot.slane %v2287, 1
        %v2289 = vadd.f32 %v2287, %v2288
        %v2290 = vadd.f32 %v2233, %v2234
        %v2291 = vadd.f32 %v2290, %v2235
        %v2292 = vadd.f32 %v2291, %v2236
        %v2293 = vrot.slane %v2292, 4
        %v2294 = vadd.f32 %v2292, %v2293
        %v2295 = vrot.slane %v2294, 2
        %v2296 = vadd.f32 %v2294, %v2295
        %v2297 = vrot.slane %v2296, 1
        %v2298 = vadd.f32 %v2296, %v2297
        %v2299 = vadd.f32 %v2237, %v2238
        %v2300 = vadd.f32 %v2299, %v2239
        %v2301 = vadd.f32 %v2300, %v2240
        %v2302 = vrot.slane %v2301, 4
        %v2303 = vadd.f32 %v2301, %v2302
        %v2304 = vrot.slane %v2303, 2
        %v2305 = vadd.f32 %v2303, %v2304
        %v2306 = vrot.slane %v2305, 1
        %v2307 = vadd.f32 %v2305, %v2306
        %v2308 = vadd.f32 %v2241, %v2242
        %v2309 = vadd.f32 %v2308, %v2243
        %v2310 = vadd.f32 %v2309, %v2244
        %v2311 = vrot.slane %v2310, 4
        %v2312 = vadd.f32 %v2310, %v2311
        %v2313 = vrot.slane %v2312, 2
        %v2314 = vadd.f32 %v2312, %v2313
        %v2315 = vrot.slane %v2314, 1
        %v2316 = vadd.f32 %v2314, %v2315
        %v2317 = vadd.f32 %v2205, %v2253
        %v2318 = vadd.f32 %v2206, %v2262
        %v2319 = vadd.f32 %v2207, %v2271
        %v2320 = vadd.f32 %v2208, %v2280
        %v2321 = vadd.f32 %v2209, %v2289
        %v2322 = vadd.f32 %v2210, %v2298
        %v2323 = vadd.f32 %v2211, %v2307
        %v2324 = vadd.f32 %v2212, %v2316
        %v2325 = vunpack.c.l.bf16 %v345
        %v2326 = vunpack.c.l.bf16 %v346
        %v2327 = vunpack.c.l.bf16 %v347
        %v2328 = vunpack.c.l.bf16 %v348
        %v2329 = vunpack.c.l.bf16 %v377
        %v2330 = vunpack.c.l.bf16 %v378
        %v2331 = vunpack.c.l.bf16 %v379
        %v2332 = vunpack.c.l.bf16 %v380
        %v2333 = vunpack.c.l.bf16 %v409
        %v2334 = vunpack.c.l.bf16 %v410
        %v2335 = vunpack.c.l.bf16 %v411
        %v2336 = vunpack.c.l.bf16 %v412
        %v2337 = vunpack.c.l.bf16 %v441
        %v2338 = vunpack.c.l.bf16 %v442
        %v2339 = vunpack.c.l.bf16 %v443
        %v2340 = vunpack.c.l.bf16 %v444
        %v2341 = vunpack.c.l.bf16 %v473
        %v2342 = vunpack.c.l.bf16 %v474
        %v2343 = vunpack.c.l.bf16 %v475
        %v2344 = vunpack.c.l.bf16 %v476
        %v2345 = vunpack.c.l.bf16 %v505
        %v2346 = vunpack.c.l.bf16 %v506
        %v2347 = vunpack.c.l.bf16 %v507
        %v2348 = vunpack.c.l.bf16 %v508
        %v2349 = vunpack.c.l.bf16 %v537
        %v2350 = vunpack.c.l.bf16 %v538
        %v2351 = vunpack.c.l.bf16 %v539
        %v2352 = vunpack.c.l.bf16 %v540
        %v2353 = vunpack.c.l.bf16 %v569
        %v2354 = vunpack.c.l.bf16 %v570
        %v2355 = vunpack.c.l.bf16 %v571
        %v2356 = vunpack.c.l.bf16 %v572
        %v2357 = vadd.f32 %v2325, %v2326
        %v2358 = vadd.f32 %v2357, %v2327
        %v2359 = vadd.f32 %v2358, %v2328
        %v2360 = vrot.slane %v2359, 4
        %v2361 = vadd.f32 %v2359, %v2360
        %v2362 = vrot.slane %v2361, 2
        %v2363 = vadd.f32 %v2361, %v2362
        %v2364 = vrot.slane %v2363, 1
        %v2365 = vadd.f32 %v2363, %v2364
        %v2366 = vadd.f32 %v2329, %v2330
        %v2367 = vadd.f32 %v2366, %v2331
        %v2368 = vadd.f32 %v2367, %v2332
        %v2369 = vrot.slane %v2368, 4
        %v2370 = vadd.f32 %v2368, %v2369
        %v2371 = vrot.slane %v2370, 2
        %v2372 = vadd.f32 %v2370, %v2371
        %v2373 = vrot.slane %v2372, 1
        %v2374 = vadd.f32 %v2372, %v2373
        %v2375 = vadd.f32 %v2333, %v2334
        %v2376 = vadd.f32 %v2375, %v2335
        %v2377 = vadd.f32 %v2376, %v2336
        %v2378 = vrot.slane %v2377, 4
        %v2379 = vadd.f32 %v2377, %v2378
        %v2380 = vrot.slane %v2379, 2
        %v2381 = vadd.f32 %v2379, %v2380
        %v2382 = vrot.slane %v2381, 1
        %v2383 = vadd.f32 %v2381, %v2382
        %v2384 = vadd.f32 %v2337, %v2338
        %v2385 = vadd.f32 %v2384, %v2339
        %v2386 = vadd.f32 %v2385, %v2340
        %v2387 = vrot.slane %v2386, 4
        %v2388 = vadd.f32 %v2386, %v2387
        %v2389 = vrot.slane %v2388, 2
        %v2390 = vadd.f32 %v2388, %v2389
        %v2391 = vrot.slane %v2390, 1
        %v2392 = vadd.f32 %v2390, %v2391
        %v2393 = vadd.f32 %v2341, %v2342
        %v2394 = vadd.f32 %v2393, %v2343
        %v2395 = vadd.f32 %v2394, %v2344
        %v2396 = vrot.slane %v2395, 4
        %v2397 = vadd.f32 %v2395, %v2396
        %v2398 = vrot.slane %v2397, 2
        %v2399 = vadd.f32 %v2397, %v2398
        %v2400 = vrot.slane %v2399, 1
        %v2401 = vadd.f32 %v2399, %v2400
        %v2402 = vadd.f32 %v2345, %v2346
        %v2403 = vadd.f32 %v2402, %v2347
        %v2404 = vadd.f32 %v2403, %v2348
        %v2405 = vrot.slane %v2404, 4
        %v2406 = vadd.f32 %v2404, %v2405
        %v2407 = vrot.slane %v2406, 2
        %v2408 = vadd.f32 %v2406, %v2407
        %v2409 = vrot.slane %v2408, 1
        %v2410 = vadd.f32 %v2408, %v2409
        %v2411 = vadd.f32 %v2349, %v2350
        %v2412 = vadd.f32 %v2411, %v2351
        %v2413 = vadd.f32 %v2412, %v2352
        %v2414 = vrot.slane %v2413, 4
        %v2415 = vadd.f32 %v2413, %v2414
        %v2416 = vrot.slane %v2415, 2
        %v2417 = vadd.f32 %v2415, %v2416
        %v2418 = vrot.slane %v2417, 1
        %v2419 = vadd.f32 %v2417, %v2418
        %v2420 = vadd.f32 %v2353, %v2354
        %v2421 = vadd.f32 %v2420, %v2355
        %v2422 = vadd.f32 %v2421, %v2356
        %v2423 = vrot.slane %v2422, 4
        %v2424 = vadd.f32 %v2422, %v2423
        %v2425 = vrot.slane %v2424, 2
        %v2426 = vadd.f32 %v2424, %v2425
        %v2427 = vrot.slane %v2426, 1
        %v2428 = vadd.f32 %v2426, %v2427
        %v2429 = vadd.f32 %v2317, %v2365
        %v2430 = vadd.f32 %v2318, %v2374
        %v2431 = vadd.f32 %v2319, %v2383
        %v2432 = vadd.f32 %v2320, %v2392
        %v2433 = vadd.f32 %v2321, %v2401
        %v2434 = vadd.f32 %v2322, %v2410
        %v2435 = vadd.f32 %v2323, %v2419
        %v2436 = vadd.f32 %v2324, %v2428
        %v2437 = vpack.c.bf16 %v2429, %v2429
        %v2438 = vpack.c.bf16 %v2430, %v2430
        %v2439 = vpack.c.bf16 %v2431, %v2431
        %v2440 = vpack.c.bf16 %v2432, %v2432
        %v2441 = vpack.c.bf16 %v2433, %v2433
        %v2442 = vpack.c.bf16 %v2434, %v2434
        %v2443 = vpack.c.bf16 %v2435, %v2435
        %v2444 = vpack.c.bf16 %v2436, %v2436
        %v2445 = vld [vmem:[#allocation5] sm:$0xf]
        %v2446 = vld [vmem:[#allocation5 + $0x4] sm:$0xf]
        %v2447 = vld [vmem:[#allocation5 + $0x8] sm:$0xf]
        %v2448 = vld [vmem:[#allocation5 + $0xc] sm:$0xf]
        %v2449 = vld [vmem:[#allocation5 + $0x10] sm:$0xf]
        %v2450 = vld [vmem:[#allocation5 + $0x14] sm:$0xf]
        %v2451 = vld [vmem:[#allocation5 + $0x18] sm:$0xf]
        %v2452 = vld [vmem:[#allocation5 + $0x1c] sm:$0xf]
        %v2453 = vld [vmem:[#allocation5 + $0x20] sm:$0xf]
        %v2454 = vld [vmem:[#allocation5 + $0x24] sm:$0xf]
        %v2455 = vld [vmem:[#allocation5 + $0x28] sm:$0xf]
        %v2456 = vld [vmem:[#allocation5 + $0x2c] sm:$0xf]
        %v2457 = vld [vmem:[#allocation5 + $0x30] sm:$0xf]
        %v2458 = vld [vmem:[#allocation5 + $0x34] sm:$0xf]
        %v2459 = vld [vmem:[#allocation5 + $0x38] sm:$0xf]
        %v2460 = vld [vmem:[#allocation5 + $0x3c] sm:$0xf]
        %v2461 = vld [vmem:[#allocation7] sm:$0xf]
        %v2462 = vld [vmem:[#allocation7 + $0x4] sm:$0xf]
        %v2463 = vld [vmem:[#allocation7 + $0x8] sm:$0xf]
        %v2464 = vld [vmem:[#allocation7 + $0xc] sm:$0xf]
        %v2465 = vld [vmem:[#allocation7 + $0x10] sm:$0xf]
        %v2466 = vld [vmem:[#allocation7 + $0x14] sm:$0xf]
        %v2467 = vld [vmem:[#allocation7 + $0x18] sm:$0xf]
        %v2468 = vld [vmem:[#allocation7 + $0x1c] sm:$0xf]
        %v2469 = vld [vmem:[#allocation7 + $0x20] sm:$0xf]
        %v2470 = vld [vmem:[#allocation7 + $0x24] sm:$0xf]
        %v2471 = vld [vmem:[#allocation7 + $0x28] sm:$0xf]
        %v2472 = vld [vmem:[#allocation7 + $0x2c] sm:$0xf]
        %v2473 = vld [vmem:[#allocation7 + $0x30] sm:$0xf]
        %v2474 = vld [vmem:[#allocation7 + $0x34] sm:$0xf]
        %v2475 = vld [vmem:[#allocation7 + $0x38] sm:$0xf]
        %v2476 = vld [vmem:[#allocation7 + $0x3c] sm:$0xf]
        %v2485 = vunpack.c.l.b16 %v1365
        %v2486 = vunpack.c.l.b16 %v1390
        %v2487 = vunpack.c.l.b16 %v1415
        %v2488 = vunpack.c.l.b16 %v1440
        %v2489 = vunpack.c.l.b16 %v1465
        %v2490 = vunpack.c.l.b16 %v1490
        %v2491 = vunpack.c.l.b16 %v1515
        %v2492 = vunpack.c.l.b16 %v1540
        %vm2493 = vcmask 1041409
        %v2494 = vsel %vm2493, %v2486, %v2485
        %vm2495 = vcmask 1042434
        %v2496 = vsel %vm2495, %v2487, %v2494
        %vm2497 = vcmask 1043459
        %v2498 = vsel %vm2497, %v2488, %v2496
        %vm2499 = vcmask 1044484
        %v2500 = vsel %vm2499, %v2489, %v2498
        %vm2501 = vcmask 1045509
        %v2502 = vsel %vm2501, %v2490, %v2500
        %vm2503 = vcmask 1046534
        %v2504 = vsel %vm2503, %v2491, %v2502
        %vm2505 = vcmask 1047559
        %v2506 = vsel %vm2505, %v2492, %v2504
        %v2507 = vpack.c.b16 %v2506, %v2506
        %v2525 = vunpack.c.l.b16 %v2461
        %v2526 = vunpack.c.l.b16 %v2462
        %v2527 = vunpack.c.l.b16 %v2463
        %v2528 = vunpack.c.l.b16 %v2464
        %v2529 = vunpack.c.l.b16 %v2465
        %v2530 = vunpack.c.l.b16 %v2466
        %v2531 = vunpack.c.l.b16 %v2467
        %v2532 = vunpack.c.l.b16 %v2468
        %v2533 = vunpack.c.l.b16 %v2469
        %v2534 = vunpack.c.l.b16 %v2470
        %v2535 = vunpack.c.l.b16 %v2471
        %v2536 = vunpack.c.l.b16 %v2472
        %v2537 = vunpack.c.l.b16 %v2473
        %v2538 = vunpack.c.l.b16 %v2474
        %v2539 = vunpack.c.l.b16 %v2475
        %v2540 = vunpack.c.l.b16 %v2476
        %v2541 = vpack.c.b16 %v2526, %v2525
        %v2542 = vpack.c.b16 %v2528, %v2527
        %v2543 = vpack.c.b16 %v2530, %v2529
        %v2544 = vpack.c.b16 %v2532, %v2531
        %v2545 = vpack.c.b16 %v2534, %v2533
        %v2546 = vpack.c.b16 %v2536, %v2535
        %v2547 = vpack.c.b16 %v2538, %v2537
        %v2548 = vpack.c.b16 %v2540, %v2539
        %2557 = vmatprep.subr.bf16.mxu0 0
        %2558 = vmatpush1.bf16.msra.mxu0 %v2548
        %2559 = vmatprep.subr.bf16.mxu0 0
        %2560 = vmatpush1.bf16.msra.mxu0 %v2547
        %2561 = vmatprep.subr.bf16.mxu0 0
        %2562 = vmatpush1.bf16.msra.mxu0 %v2546
        %2563 = vmatprep.subr.bf16.mxu0 0
        %2564 = vmatpush1.bf16.msra.mxu0 %v2545
        %2565 = vmatprep.subr.bf16.mxu0 0
        %2566 = vmatpush1.bf16.msra.mxu0 %v2544
        %2567 = vmatprep.subr.bf16.mxu0 0
        %2568 = vmatpush1.bf16.msra.mxu0 %v2543
        %2569 = vmatprep.subr.bf16.mxu0 0
        %2570 = vmatpush1.bf16.msra.mxu0 %v2542
        %2571 = vmatprep.subr.bf16.mxu0 0
        %2572 = vmatpush1.bf16.msra.mxu0 %v2541
        %2573 = vmatprep.subr.bf16.mxu0 0
        %2574 = vmatpush2.bf16.msra.mxu0 0
        %2575 = vmatprep.subr.bf16.mxu0 0
        %2576 = vmatpush2.bf16.msra.mxu0 0
        %2577 = vmatprep.subr.bf16.mxu0 0
        %2578 = vmatpush2.bf16.msra.mxu0 0
        %2579 = vmatprep.subr.bf16.mxu0 0
        %2580 = vmatpush2.bf16.msra.mxu0 0
        %2581 = vmatprep.subr.bf16.mxu0 0
        %2582 = vmatpush2.bf16.msra.mxu0 0
        %2583 = vmatprep.subr.bf16.mxu0 0
        %2584 = vmatpush2.bf16.msra.mxu0 0
        %2585 = vmatprep.subr.bf16.mxu0 0
        %2586 = vmatpush2.bf16.msra.mxu0 0
        %2587 = vmatprep.subr.bf16.mxu0 0
        %2588 = vmatpush2.bf16.msra.mxu0 0
        %2589 = vmatprep.mubr.bf16.mxu0 0
        %2590 = vmatmul.mubr.bf16.gmra.mxu0 %v2507
        %v2591 = vpop.f32.mrf.mxu0
        %v2592 = vadd.f32 0.0, %v2591
        %v2593 = vpop.f32.mrf.mxu0
        %v2594 = vpop.f32.mrf.mxu0
        %v2595 = vpop.f32.mrf.mxu0
        %2596 = vdwg.mxu0
        %v2605 = vunpack.c.l.b16 %v2437
        %v2606 = vunpack.c.l.b16 %v2438
        %v2607 = vunpack.c.l.b16 %v2439
        %v2608 = vunpack.c.l.b16 %v2440
        %v2609 = vunpack.c.l.b16 %v2441
        %v2610 = vunpack.c.l.b16 %v2442
        %v2611 = vunpack.c.l.b16 %v2443
        %v2612 = vunpack.c.l.b16 %v2444
        %v2613 = vsel %vm2493, %v2606, %v2605
        %v2614 = vsel %vm2495, %v2607, %v2613
        %v2615 = vsel %vm2497, %v2608, %v2614
        %v2616 = vsel %vm2499, %v2609, %v2615
        %v2617 = vsel %vm2501, %v2610, %v2616
        %v2618 = vsel %vm2503, %v2611, %v2617
        %v2619 = vsel %vm2505, %v2612, %v2618
        %v2620 = vpack.c.b16 %v2619, %v2619
        %v2638 = vunpack.c.l.b16 %v2445
        %v2639 = vunpack.c.l.b16 %v2446
        %v2640 = vunpack.c.l.b16 %v2447
        %v2641 = vunpack.c.l.b16 %v2448
        %v2642 = vunpack.c.l.b16 %v2449
        %v2643 = vunpack.c.l.b16 %v2450
        %v2644 = vunpack.c.l.b16 %v2451
        %v2645 = vunpack.c.l.b16 %v2452
        %v2646 = vunpack.c.l.b16 %v2453
        %v2647 = vunpack.c.l.b16 %v2454
        %v2648 = vunpack.c.l.b16 %v2455
        %v2649 = vunpack.c.l.b16 %v2456
        %v2650 = vunpack.c.l.b16 %v2457
        %v2651 = vunpack.c.l.b16 %v2458
        %v2652 = vunpack.c.l.b16 %v2459
        %v2653 = vunpack.c.l.b16 %v2460
        %v2654 = vpack.c.b16 %v2639, %v2638
        %v2655 = vpack.c.b16 %v2641, %v2640
        %v2656 = vpack.c.b16 %v2643, %v2642
        %v2657 = vpack.c.b16 %v2645, %v2644
        %v2658 = vpack.c.b16 %v2647, %v2646
        %v2659 = vpack.c.b16 %v2649, %v2648
        %v2660 = vpack.c.b16 %v2651, %v2650
        %v2661 = vpack.c.b16 %v2653, %v2652
        %2670 = vmatprep.subr.bf16.mxu0 0
        %2671 = vmatpush1.bf16.msra.mxu0 %v2661
        %2672 = vmatprep.subr.bf16.mxu0 0
        %2673 = vmatpush1.bf16.msra.mxu0 %v2660
        %2674 = vmatprep.subr.bf16.mxu0 0
        %2675 = vmatpush1.bf16.msra.mxu0 %v2659
        %2676 = vmatprep.subr.bf16.mxu0 0
        %2677 = vmatpush1.bf16.msra.mxu0 %v2658
        %2678 = vmatprep.subr.bf16.mxu0 0
        %2679 = vmatpush1.bf16.msra.mxu0 %v2657
        %2680 = vmatprep.subr.bf16.mxu0 0
        %2681 = vmatpush1.bf16.msra.mxu0 %v2656
        %2682 = vmatprep.subr.bf16.mxu0 0
        %2683 = vmatpush1.bf16.msra.mxu0 %v2655
        %2684 = vmatprep.subr.bf16.mxu0 0
        %2685 = vmatpush1.bf16.msra.mxu0 %v2654
        %2686 = vmatprep.subr.bf16.mxu0 0
        %2687 = vmatpush2.bf16.msra.mxu0 0
        %2688 = vmatprep.subr.bf16.mxu0 0
        %2689 = vmatpush2.bf16.msra.mxu0 0
        %2690 = vmatprep.subr.bf16.mxu0 0
        %2691 = vmatpush2.bf16.msra.mxu0 0
        %2692 = vmatprep.subr.bf16.mxu0 0
        %2693 = vmatpush2.bf16.msra.mxu0 0
        %2694 = vmatprep.subr.bf16.mxu0 0
        %2695 = vmatpush2.bf16.msra.mxu0 0
        %2696 = vmatprep.subr.bf16.mxu0 0
        %2697 = vmatpush2.bf16.msra.mxu0 0
        %2698 = vmatprep.subr.bf16.mxu0 0
        %2699 = vmatpush2.bf16.msra.mxu0 0
        %2700 = vmatprep.subr.bf16.mxu0 0
        %2701 = vmatpush2.bf16.msra.mxu0 0
        %2702 = vmatprep.mubr.bf16.mxu0 0
        %2703 = vmatmul.mubr.bf16.gmra.mxu0 %v2620
        %v2704 = vpop.f32.mrf.mxu0
        %v2705 = vadd.f32 %v2592, %v2704
        %v2706 = vpop.f32.mrf.mxu0
        %v2707 = vpop.f32.mrf.mxu0
        %v2708 = vpop.f32.mrf.mxu0
        %2709 = vdwg.mxu0
        %v2710 = vld [vmem:[%s3] sm:$0x1]
        %v2712 = vlaneseq
        %v2713 = vshrl.u32 %v2712, 7
        %v2714 = vsub.s32 0, %v2713
        %v2715 = vrot.slane %v2710, %v2714
        %v2717 = vadd.f32 %v2705, %v2715
        %v2718 = vmax.f32 %v2717, 0.0
        %v2719 = vpack.c.bf16 %v2718, %v2718
        %v2720 = vld [vmem:[#allocation8] sm:$0xf]
        %v2721 = vld [vmem:[#allocation8 + $0x4] sm:$0xf]
        %v2722 = vld [vmem:[#allocation8 + $0x8] sm:$0xf]
        %v2723 = vld [vmem:[#allocation8 + $0xc] sm:$0xf]
        %v2724 = vld [vmem:[#allocation8 + $0x10] sm:$0xf]
        %v2725 = vld [vmem:[#allocation8 + $0x14] sm:$0xf]
        %v2726 = vld [vmem:[#allocation8 + $0x18] sm:$0xf]
        %v2727 = vld [vmem:[#allocation8 + $0x1c] sm:$0xf]
        %v2728 = vld [vmem:[#allocation8 + $0x20] sm:$0xf]
        %v2729 = vld [vmem:[#allocation8 + $0x24] sm:$0xf]
        %v2730 = vld [vmem:[#allocation8 + $0x28] sm:$0xf]
        %v2731 = vld [vmem:[#allocation8 + $0x2c] sm:$0xf]
        %v2732 = vld [vmem:[#allocation8 + $0x30] sm:$0xf]
        %v2733 = vld [vmem:[#allocation8 + $0x34] sm:$0xf]
        %v2734 = vld [vmem:[#allocation8 + $0x38] sm:$0xf]
        %v2735 = vld [vmem:[#allocation8 + $0x3c] sm:$0xf]
        %v2736 = vld [vmem:[%s5] sm:$0x1]
        %v2738 = vlaneseq
        %v2739 = vshrl.u32 %v2738, 7
        %v2740 = vsub.s32 0, %v2739
        %v2741 = vrot.slane %v2736, %v2740
        %v2759 = vunpack.c.l.b16 %v2720
        %v2760 = vunpack.c.l.b16 %v2721
        %v2761 = vunpack.c.l.b16 %v2722
        %v2762 = vunpack.c.l.b16 %v2723
        %v2763 = vunpack.c.l.b16 %v2724
        %v2764 = vunpack.c.l.b16 %v2725
        %v2765 = vunpack.c.l.b16 %v2726
        %v2766 = vunpack.c.l.b16 %v2727
        %v2767 = vunpack.c.l.b16 %v2728
        %v2768 = vunpack.c.l.b16 %v2729
        %v2769 = vunpack.c.l.b16 %v2730
        %v2770 = vunpack.c.l.b16 %v2731
        %v2771 = vunpack.c.l.b16 %v2732
        %v2772 = vunpack.c.l.b16 %v2733
        %v2773 = vunpack.c.l.b16 %v2734
        %v2774 = vunpack.c.l.b16 %v2735
        %v2775 = vpack.c.b16 %v2760, %v2759
        %v2776 = vpack.c.b16 %v2762, %v2761
        %v2777 = vpack.c.b16 %v2764, %v2763
        %v2778 = vpack.c.b16 %v2766, %v2765
        %v2779 = vpack.c.b16 %v2768, %v2767
        %v2780 = vpack.c.b16 %v2770, %v2769
        %v2781 = vpack.c.b16 %v2772, %v2771
        %v2782 = vpack.c.b16 %v2774, %v2773
        %2791 = vmatprep.subr.bf16.mxu0 0
        %2792 = vmatpush1.bf16.msra.mxu0 %v2782
        %2793 = vmatprep.subr.bf16.mxu0 0
        %2794 = vmatpush1.bf16.msra.mxu0 %v2781
        %2795 = vmatprep.subr.bf16.mxu0 0
        %2796 = vmatpush1.bf16.msra.mxu0 %v2780
        %2797 = vmatprep.subr.bf16.mxu0 0
        %2798 = vmatpush1.bf16.msra.mxu0 %v2779
        %2799 = vmatprep.subr.bf16.mxu0 0
        %2800 = vmatpush1.bf16.msra.mxu0 %v2778
        %2801 = vmatprep.subr.bf16.mxu0 0
        %2802 = vmatpush1.bf16.msra.mxu0 %v2777
        %2803 = vmatprep.subr.bf16.mxu0 0
        %2804 = vmatpush1.bf16.msra.mxu0 %v2776
        %2805 = vmatprep.subr.bf16.mxu0 0
        %2806 = vmatpush1.bf16.msra.mxu0 %v2775
        %2807 = vmatprep.subr.bf16.mxu0 0
        %2808 = vmatpush2.bf16.msra.mxu0 0
        %2809 = vmatprep.subr.bf16.mxu0 0
        %2810 = vmatpush2.bf16.msra.mxu0 0
        %2811 = vmatprep.subr.bf16.mxu0 0
        %2812 = vmatpush2.bf16.msra.mxu0 0
        %2813 = vmatprep.subr.bf16.mxu0 0
        %2814 = vmatpush2.bf16.msra.mxu0 0
        %2815 = vmatprep.subr.bf16.mxu0 0
        %2816 = vmatpush2.bf16.msra.mxu0 0
        %2817 = vmatprep.subr.bf16.mxu0 0
        %2818 = vmatpush2.bf16.msra.mxu0 0
        %2819 = vmatprep.subr.bf16.mxu0 0
        %2820 = vmatpush2.bf16.msra.mxu0 0
        %2821 = vmatprep.subr.bf16.mxu0 0
        %2822 = vmatpush2.bf16.msra.mxu0 0
        %2823 = vmatprep.mubr.bf16.mxu0 0
        %2824 = vmatmul.mubr.bf16.gmra.mxu0 %v2719
        %v2825 = vpop.f32.mrf.mxu0
        %v2826 = vadd.f32 %v2741, %v2825
        %v2827 = vpop.f32.mrf.mxu0
        %v2828 = vpop.f32.mrf.mxu0
        %v2829 = vpop.f32.mrf.mxu0
        %2830 = vdwg.mxu0
        %2831 = vst [vmem:[%s314] sm:$0xff] %v2826
        %s2832 = sand.u32 %s164, 1
        %s2833 = scalar_lea.sflag [#allocation4], %s2832
        %s2834 = sand.u32 %s164, 1
        %s2835 = smul.addr %s2834, 8
        %s2836 = scalar_lea.vmem [#allocation10], %s2835
        // Predicated region
        $region61: #{tpu_custom_call.1} parent=43 // pred_check
          %p2837 = pneg %p174
        $region62: #{tpu_custom_call.1} parent=43 // pred_check_branch
          %2839 = sbr.rel (%p2837) target = $region64
        $region63: #{tpu_custom_call.1} parent=43 // pred_region
          %s2841 = ssub.s32 128, 128
          %2842 = vsyncadd %s2833, %s2841
          %s2843 = smul.addr %s25, 128
          %s2844 = scalar_lea.hbm %s6, %s2843
          %s2846 = sshll.u32 %s2836, 4
          %s2847 = int_to_ptr.vmem [resolvable:$true] %s2846
          %2849 = dma.vmem_to_hbm [thread:$0]  %s2847, 128, %s2844, %s2833
        $region64: #{tpu_custom_call.1} parent=43 // pred_fallthru
          _
      $region44: #{tpu_custom_call.1} parent=5 // pred_fallthru
        _
      %p2850 = scmp.le.s32.totalorder 2, %s20
      // Predicated region
      $region65: #{tpu_custom_call.1} parent=5 // pred_check
        %p2851 = pneg %p2850
      $region66: #{tpu_custom_call.1} parent=5 // pred_check_branch
        %2853 = sbr.rel (%p2851) target = $region68
      $region67: #{tpu_custom_call.1} parent=5 // pred_region
        %s2854 = ssub.s32 %s20, 2
        // Predicated region
        $region69: #{tpu_custom_call.1} parent=67 // pred_check
          %p2855 = pneg %p180
        $region70: #{tpu_custom_call.1} parent=67 // pred_check_branch
          %2857 = sbr.rel (%p2855) target = $region72
        $region71: #{tpu_custom_call.1} parent=67 // pred_region
          %s2858 = sand.u32 %s165, 1
          %s2859 = scalar_lea.sflag [#allocation4], %s2858
          %s2860 = sand.u32 %s165, 1
          %s2861 = smul.addr %s2860, 8
          %s2862 = scalar_lea.vmem [#allocation10], %s2861
          %2863 = dma.done %s2859, 128
        $region72: #{tpu_custom_call.1} parent=67 // pred_fallthru
          _
      $region68: #{tpu_custom_call.1} parent=5 // pred_fallthru
        _
    $region6: #{tpu_custom_call.1} parent=1 // loop_footer
      %s24 = sadd.s32 1, %s20
    $region7: #{tpu_custom_call.1} parent=1 // loop_footer_branch
      %19 = sbr.rel target = $region3
    $region8: #{tpu_custom_call.1} parent=1 // loop_exit
      _
    %2864 = vsyncpa [#allocation3], 1
    %s2865 = scalar_lea.sflag [#allocation3], 1
    %2866 = vsyncpa %s2865, 1
    %2867 = vsyncpa [#allocation6], 1
    %2868 = vsyncpa [#allocation9], 1
    %2869 = vsyncpa [#allocation4], 1
    %s2870 = scalar_lea.sflag [#allocation4], 1
    %2871 = vsyncpa %s2870, 1

// kernel: tpu_custom_call.1
$region0: #{tpu_custom_call.1}
  #allocation0 [shape = 'u32[]', space=smem, size = 0x4, offset = 0x4, fixed_abs, tag = 'smem constant byte address 0x4 - core index']
  #allocation1 [shape = 'u32[144,128]{1,0:T(1,128)}', space=vmem, size = 0x12000, scoped, tag = 'internal scratch']
  %s0 = inlined_call_operand.hbm [shape: bf16[16,256,128], index: 0, kind: input, shape index: {}]
  %s1 = inlined_call_operand.hbm [shape: bf16[128,128], index: 1, kind: input, shape index: {}]
  %s2 = inlined_call_operand.hbm [shape: bf16[128,128], index: 2, kind: input, shape index: {}]
  %s3 = inlined_call_operand.vmem [shape: f32[1,128], index: 3, kind: input, shape index: {}]
  %s4 = inlined_call_operand.hbm [shape: bf16[128,128], index: 4, kind: input, shape index: {}]
  %s5 = inlined_call_operand.vmem [shape: f32[1,128], index: 5, kind: input, shape index: {}]
  %s6 = inlined_call_operand.hbm [shape: f32[16,128], index: 6, kind: output, shape index: {}]
  %s7 = sld [smem:[#allocation0]]
  $region73: #{tpu_custom_call.1} parent=0
    _
  %s9 = ssub.s32 1, %s7
  %s10 = scalar_select 0, %s9, %s7
  $region1: #{tpu_custom_call.1} parent=0
    #allocation2 [shape = 'u8[1048576]{0}', space=vmem, size = 0x100000, scoped, tag = 'input window, operand 0']
    #allocation3 [shape = 's32[2]{0}', space=sflag, size = 0x8, scoped, tag = 'scoped memory for tpu_custom_call.1']
    #allocation4 [shape = 's32[2]{0}', space=sflag, size = 0x8, scoped, tag = 'scoped memory for tpu_custom_call.1']
    #allocation5 [shape = 'u8[32768]{0}', space=vmem, size = 0x8000, scoped, tag = 'input window, operand 1, single buffered']
    #allocation6 [shape = 's32[1]{0}', space=sflag, size = 0x4, scoped, tag = 'scoped memory for tpu_custom_call.1']
    #allocation7 [shape = 'u8[32768]{0}', space=vmem, size = 0x8000, scoped, tag = 'input window, operand 2, single buffered']
    #allocation8 [shape = 'u8[32768]{0}', space=vmem, size = 0x8000, scoped, tag = 'input window, operand 4, single buffered']
    #allocation9 [shape = 's32[1]{0}', space=sflag, size = 0x4, scoped, tag = 'scoped memory for tpu_custom_call.1']
    #allocation10 [shape = 'u8[8192]{0}', space=vmem, size = 0x2000, scoped, tag = 'output window, operand 0']
    %11 = vsyncpa [#allocation3], 0
    %s12 = scalar_lea.sflag [#allocation3], 1
    %13 = vsyncpa %s12, 0
    %14 = vsyncpa [#allocation6], 0
    %15 = vsyncpa [#allocation9], 0
    %16 = vsyncpa [#allocation4], 0
    %s17 = scalar_lea.sflag [#allocation4], 1
    %18 = vsyncpa %s17, 0
    loop: start=0, step=1, limit=4
    $region2: #{tpu_custom_call.1} parent=1 // loop_pre_header
      _
    $region3: #{tpu_custom_call.1} parent=1 // loop_header
      %s20 = sphi 0, %s24
      %p21 = scmp.ge.s32.totalorder %s20, 4
      %s30 = sphi 0, %s32
      %s33 = sphi 0, %s30
      %s34 = sphi 0, %s33
      %s50 = sphi 0, %s34
      %s54 = sphi 0, %s54
      %s56 = sphi 0, %s54
      %s57 = sphi 0, %s56
      %s71 = sphi 0, %s57
      %s75 = sphi 0, %s75
      %s77 = sphi 0, %s75
      %s78 = sphi 0, %s77
      %s92 = sphi 0, %s78
      %s96 = sphi 0, %s96
      %s98 = sphi 0, %s96
      %s99 = sphi 0, %s98
      %s113 = sphi 0, %s99
      %s117 = sphi 0, %s117
      %s119 = sphi 0, %s117
      %s120 = sphi 0, %s119
      %s134 = sphi 0, %s120
      %s138 = sphi 0, %s138
      %s140 = sphi 0, %s138
      %s141 = sphi 0, %s140
      %s155 = sphi 0, %s141
      %s161 = sphi 0, %s163
      %s164 = sphi 0, %s161
      %s165 = sphi 0, %s164
      %s181 = sphi 0, %s165
    $region4: #{tpu_custom_call.1} parent=1 // loop_header_branch
      %23 = sbr.rel (%p21) target = $region8
    $region5: #{tpu_custom_call.1} parent=1 // loop_body
      %s25 = ssub.s32 %s20, 1
      %s26 = ssub.s32 %s20, 2
      %s27 = sadd.s32 %s20, 1
      %s28 = ssub.s32 %s20, %s27
      %p29 = scmp.eq.s32.totalorder %s28, 0
      %s31 = sadd.s32 %s30, 1
      %s32 = scalar_select %p29, %s30, %s31
      %p35 = pneg %p29
      %p36 = scmp.eq.s32.totalorder %s20, 1
      %p37 = por %p35, %p36
      %p38 = scmp.ne.s32.totalorder %s30, %s33
      %p39 = scmp.eq.s32.totalorder %s20, 0
      %p40 = por %p38, %p39
      %p41 = scmp.ne.s32.totalorder %s30, %s33
      %p42 = scmp.eq.s32.totalorder %s25, 1
      %p43 = por %p41, %p42
      %p44 = scmp.ne.s32.totalorder %s33, %s34
      %p45 = scmp.eq.s32.totalorder %s25, 0
      %p46 = por %p44, %p45
      %p47 = scmp.ne.s32.totalorder %s33, %s34
      %p48 = scmp.eq.s32.totalorder %s26, 1
      %p49 = por %p47, %p48
      %p51 = scmp.ne.s32.totalorder %s34, %s50
      %p52 = scmp.eq.s32.totalorder %s26, 0
      %p53 = por %p51, %p52
      %s55 = sadd.s32 %s54, 1
      %p58 = scmp.eq.s32.totalorder %s20, 1
      %p59 = scmp.ne.s32.totalorder %s54, %s56
      %p60 = scmp.eq.s32.totalorder %s20, 0
      %p61 = por %p59, %p60
      %p62 = scmp.ne.s32.totalorder %s54, %s56
      %p63 = scmp.eq.s32.totalorder %s25, 1
      %p64 = por %p62, %p63
      %p65 = scmp.ne.s32.totalorder %s56, %s57
      %p66 = scmp.eq.s32.totalorder %s25, 0
      %p67 = por %p65, %p66
      %p68 = scmp.ne.s32.totalorder %s56, %s57
      %p69 = scmp.eq.s32.totalorder %s26, 1
      %p70 = por %p68, %p69
      %p72 = scmp.ne.s32.totalorder %s57, %s71
      %p73 = scmp.eq.s32.totalorder %s26, 0
      %p74 = por %p72, %p73
      %s76 = sadd.s32 %s75, 1
      %p79 = scmp.eq.s32.totalorder %s20, 1
      %p80 = scmp.ne.s32.totalorder %s75, %s77
      %p81 = scmp.eq.s32.totalorder %s20, 0
      %p82 = por %p80, %p81
      %p83 = scmp.ne.s32.totalorder %s75, %s77
      %p84 = scmp.eq.s32.totalorder %s25, 1
      %p85 = por %p83, %p84
      %p86 = scmp.ne.s32.totalorder %s77, %s78
      %p87 = scmp.eq.s32.totalorder %s25, 0
      %p88 = por %p86, %p87
      %p89 = scmp.ne.s32.totalorder %s77, %s78
      %p90 = scmp.eq.s32.totalorder %s26, 1
      %p91 = por %p89, %p90
      %p93 = scmp.ne.s32.totalorder %s78, %s92
      %p94 = scmp.eq.s32.totalorder %s26, 0
      %p95 = por %p93, %p94
      %s97 = sadd.s32 %s96, 1
      %p100 = scmp.eq.s32.totalorder %s20, 1
      %p101 = scmp.ne.s32.totalorder %s96, %s98
      %p102 = scmp.eq.s32.totalorder %s20, 0
      %p103 = por %p101, %p102
      %p104 = scmp.ne.s32.totalorder %s96, %s98
      %p105 = scmp.eq.s32.totalorder %s25, 1
      %p106 = por %p104, %p105
      %p107 = scmp.ne.s32.totalorder %s98, %s99
      %p108 = scmp.eq.s32.totalorder %s25, 0
      %p109 = por %p107, %p108
      %p110 = scmp.ne.s32.totalorder %s98, %s99
      %p111 = scmp.eq.s32.totalorder %s26, 1
      %p112 = por %p110, %p111
      %p114 = scmp.ne.s32.totalorder %s99, %s113
      %p115 = scmp.eq.s32.totalorder %s26, 0
      %p116 = por %p114, %p115
      %s118 = sadd.s32 %s117, 1
      %p121 = scmp.eq.s32.totalorder %s20, 1
      %p122 = scmp.ne.s32.totalorder %s117, %s119
      %p123 = scmp.eq.s32.totalorder %s20, 0
      %p124 = por %p122, %p123
      %p125 = scmp.ne.s32.totalorder %s117, %s119
      %p126 = scmp.eq.s32.totalorder %s25, 1
      %p127 = por %p125, %p126
      %p128 = scmp.ne.s32.totalorder %s119, %s120
      %p129 = scmp.eq.s32.totalorder %s25, 0
      %p130 = por %p128, %p129
      %p131 = scmp.ne.s32.totalorder %s119, %s120
      %p132 = scmp.eq.s32.totalorder %s26, 1
      %p133 = por %p131, %p132
      %p135 = scmp.ne.s32.totalorder %s120, %s134
      %p136 = scmp.eq.s32.totalorder %s26, 0
      %p137 = por %p135, %p136
      %s139 = sadd.s32 %s138, 1
      %p142 = scmp.eq.s32.totalorder %s20, 1
      %p143 = scmp.ne.s32.totalorder %s138, %s140
      %p144 = scmp.eq.s32.totalorder %s20, 0
      %p145 = por %p143, %p144
      %p146 = scmp.ne.s32.totalorder %s138, %s140
      %p147 = scmp.eq.s32.totalorder %s25, 1
      %p148 = por %p146, %p147
      %p149 = scmp.ne.s32.totalorder %s140, %s141
      %p150 = scmp.eq.s32.totalorder %s25, 0
      %p151 = por %p149, %p150
      %p152 = scmp.ne.s32.totalorder %s140, %s141
      %p153 = scmp.eq.s32.totalorder %s26, 1
      %p154 = por %p152, %p153
      %p156 = scmp.ne.s32.totalorder %s141, %s155
      %p157 = scmp.eq.s32.totalorder %s26, 0
      %p158 = por %p156, %p157
      %s159 = ssub.s32 %s20, %s27
      %p160 = scmp.eq.s32.totalorder %s159, 0
      %s162 = sadd.s32 %s161, 1
      %s163 = scalar_select %p160, %s161, %s162
      %p166 = pneg %p160
      %p167 = scmp.eq.s32.totalorder %s20, 1
      %p168 = por %p166, %p167
      %p169 = scmp.ne.s32.totalorder %s161, %s164
      %p170 = scmp.eq.s32.totalorder %s20, 0
      %p171 = por %p169, %p170
      %p172 = scmp.ne.s32.totalorder %s161, %s164
      %p173 = scmp.eq.s32.totalorder %s25, 1
      %p174 = por %p172, %p173
      %p175 = scmp.ne.s32.totalorder %s164, %s165
      %p176 = scmp.eq.s32.totalorder %s25, 0
      %p177 = por %p175, %p176
      %p178 = scmp.ne.s32.totalorder %s164, %s165
      %p179 = scmp.eq.s32.totalorder %s26, 1
      %p180 = por %p178, %p179
      %p182 = scmp.ne.s32.totalorder %s165, %s181
      %p183 = scmp.eq.s32.totalorder %s26, 0
      %p184 = por %p182, %p183
      %p185 = scmp.le.s32.totalorder 1, %s20
      %p186 = scmp.lt.s32.totalorder %s20, 3
      %p187 = pnand %p185, %p186
      %p188 = pneg %p187
      // Predicated region
      $region9: #{tpu_custom_call.1} parent=5 // pred_check
        _
      $region10: #{tpu_custom_call.1} parent=5 // pred_check_branch
        %190 = sbr.rel (%p187) target = $region12
      $region11: #{tpu_custom_call.1} parent=5 // pred_region
        %s191 = ssub.s32 %s20, 1
        // Predicated region
        $region13: #{tpu_custom_call.1} parent=11 // pred_check
          %p192 = pneg %p67
        $region14: #{tpu_custom_call.1} parent=11 // pred_check_branch
          %194 = sbr.rel (%p192) target = $region16
        $region15: #{tpu_custom_call.1} parent=11 // pred_region
          %s196 = ssub.s32 1024, 1024
          %197 = vsyncadd [#allocation6], %s196
          %s198 = sshll.u32 [#allocation5], 4
          %s199 = int_to_ptr.vmem [resolvable:$true] %s198
          %204 = dma.hbm_to_vmem [thread:$0]  %s1, 1024, %s199, [#allocation6], 64, 64, 4
        $region16: #{tpu_custom_call.1} parent=11 // pred_fallthru
          _
        // Predicated region
        $region17: #{tpu_custom_call.1} parent=11 // pred_check
          %p205 = pneg %p88
        $region18: #{tpu_custom_call.1} parent=11 // pred_check_branch
          %207 = sbr.rel (%p205) target = $region20
        $region19: #{tpu_custom_call.1} parent=11 // pred_region
          %s209 = ssub.s32 1024, 1024
          %210 = vsyncadd [#allocation6], %s209
          %s211 = sshll.u32 [#allocation7], 4
          %s212 = int_to_ptr.vmem [resolvable:$true] %s211
          %217 = dma.hbm_to_vmem [thread:$0]  %s2, 1024, %s212, [#allocation6], 64, 64, 4
        $region20: #{tpu_custom_call.1} parent=11 // pred_fallthru
          _
        // Predicated region
        $region21: #{tpu_custom_call.1} parent=11 // pred_check
          %p218 = pneg %p109
        $region22: #{tpu_custom_call.1} parent=11 // pred_check_branch
          %220 = sbr.rel (%p218) target = $region24
        $region23: #{tpu_custom_call.1} parent=11 // pred_region
          _
        $region24: #{tpu_custom_call.1} parent=11 // pred_fallthru
          _
        // Predicated region
        $region25: #{tpu_custom_call.1} parent=11 // pred_check
          %p221 = pneg %p130
        $region26: #{tpu_custom_call.1} parent=11 // pred_check_branch
          %223 = sbr.rel (%p221) target = $region28
        $region27: #{tpu_custom_call.1} parent=11 // pred_region
          %s225 = ssub.s32 1024, 1024
          %226 = vsyncadd [#allocation9], %s225
          %s227 = sshll.u32 [#allocation8], 4
          %s228 = int_to_ptr.vmem [resolvable:$true] %s227
          %233 = dma.hbm_to_vmem [thread:$0]  %s4, 1024, %s228, [#allocation9], 64, 64, 4
        $region28: #{tpu_custom_call.1} parent=11 // pred_fallthru
          _
        // Predicated region
        $region29: #{tpu_custom_call.1} parent=11 // pred_check
          %p234 = pneg %p151
        $region30: #{tpu_custom_call.1} parent=11 // pred_check_branch
          %236 = sbr.rel (%p234) target = $region32
        $region31: #{tpu_custom_call.1} parent=11 // pred_region
          _
        $region32: #{tpu_custom_call.1} parent=11 // pred_fallthru
          _
      $region12: #{tpu_custom_call.1} parent=5 // pred_fallthru
        _
      %p237 = scmp.lt.s32.totalorder %s20, 2
      // Predicated region
      $region33: #{tpu_custom_call.1} parent=5 // pred_check
        %p238 = pneg %p237
      $region34: #{tpu_custom_call.1} parent=5 // pred_check_branch
        %240 = sbr.rel (%p238) target = $region36
      $region35: #{tpu_custom_call.1} parent=5 // pred_region
        // Predicated region
        $region37: #{tpu_custom_call.1} parent=35 // pred_check
          %p241 = pneg %p40
        $region38: #{tpu_custom_call.1} parent=35 // pred_check_branch
          %243 = sbr.rel (%p241) target = $region40
        $region39: #{tpu_custom_call.1} parent=35 // pred_region
          %s244 = sand.u32 %s30, 1
          %s245 = scalar_lea.sflag [#allocation3], %s244
          %s246 = sand.u32 %s30, 1
          %s247 = smul.addr %s246, 1024
          %s248 = scalar_lea.vmem [#allocation2], %s247
          %s249 = smul.u32 8, %s20
          %s251 = ssub.s32 16384, 16384
          %252 = vsyncadd %s245, %s251
          %s253 = smul.addr %s249, 32
          %s254 = smul.addr %s253, 64
          %s255 = scalar_lea.hbm %s0, %s254
          %s256 = sshll.u32 %s248, 4
          %s257 = int_to_ptr.vmem [resolvable:$true] %s256
          %262 = dma.hbm_to_vmem [thread:$0]  %s255, 16384, %s257, %s245, 64, 64, 4
        $region40: #{tpu_custom_call.1} parent=35 // pred_fallthru
          _
      $region36: #{tpu_custom_call.1} parent=5 // pred_fallthru
        _
      %p263 = scmp.le.s32.totalorder 1, %s20
      %p264 = scmp.lt.s32.totalorder %s20, 3
      %p265 = pnand %p263, %p264
      %p266 = pneg %p265
      // Predicated region
      $region41: #{tpu_custom_call.1} parent=5 // pred_check
        _
      $region42: #{tpu_custom_call.1} parent=5 // pred_check_branch
        %268 = sbr.rel (%p265) target = $region44
      $region43: #{tpu_custom_call.1} parent=5 // pred_region
        %s269 = ssub.s32 %s20, 1
        %s270 = sand.u32 %s33, 1
        %s271 = scalar_lea.sflag [#allocation3], %s270
        %s272 = sand.u32 %s33, 1
        %s273 = smul.addr %s272, 1024
        %s274 = scalar_lea.vmem [#allocation2], %s273
        // Predicated region
        $region45: #{tpu_custom_call.1} parent=43 // pred_check
          %p275 = pneg %p46
        $region46: #{tpu_custom_call.1} parent=43 // pred_check_branch
          %277 = sbr.rel (%p275) target = $region48
        $region47: #{tpu_custom_call.1} parent=43 // pred_region
          %278 = dma.done %s271, 16384
        $region48: #{tpu_custom_call.1} parent=43 // pred_fallthru
          _
        // Predicated region
        $region49: #{tpu_custom_call.1} parent=43 // pred_check
          %p279 = pneg %p67
        $region50: #{tpu_custom_call.1} parent=43 // pred_check_branch
          %281 = sbr.rel (%p279) target = $region52
        $region51: #{tpu_custom_call.1} parent=43 // pred_region
          %282 = dma.done [#allocation6], 1024
        $region52: #{tpu_custom_call.1} parent=43 // pred_fallthru
          _
        // Predicated region
        $region53: #{tpu_custom_call.1} parent=43 // pred_check
          %p283 = pneg %p88
        $region54: #{tpu_custom_call.1} parent=43 // pred_check_branch
          %285 = sbr.rel (%p283) target = $region56
        $region55: #{tpu_custom_call.1} parent=43 // pred_region
          %286 = dma.done [#allocation6], 1024
        $region56: #{tpu_custom_call.1} parent=43 // pred_fallthru
          _
        // Predicated region
        $region57: #{tpu_custom_call.1} parent=43 // pred_check
          %p287 = pneg %p130
        $region58: #{tpu_custom_call.1} parent=43 // pred_check_branch
          %289 = sbr.rel (%p287) target = $region60
        $region59: #{tpu_custom_call.1} parent=43 // pred_region
          %290 = dma.done [#allocation9], 1024
        $region60: #{tpu_custom_call.1} parent=43 // pred_fallthru
          _
        %s291 = sand.u32 %s33, 1
        %s292 = scalar_lea.sflag [#allocation3], %s291
        %s293 = sand.u32 %s33, 1
        %s294 = smul.addr %s293, 1024
        %s295 = scalar_lea.vmem [#allocation2], %s294
        %p296 = pneg %p46
        %p297 = pneg %p43
        %p298 = pneg %p67
        %p299 = pneg %p64
        %p300 = pneg %p88
        %p301 = pneg %p85
        %p302 = pneg %p109
        %p303 = pneg %p106
        %p304 = pneg %p130
        %p305 = pneg %p127
        %p306 = pneg %p151
        %p307 = pneg %p148
        %p308 = pneg %p177
        %p309 = pneg %p174
        %s310 = sand.u32 %s164, 1
        %s311 = scalar_lea.sflag [#allocation4], %s310
        %s312 = sand.u32 %s164, 1
        %s313 = smul.addr %s312, 8
        %s314 = scalar_lea.vmem [#allocation10], %s313
        %s315 = smul.u32 8, %s25
        %v317 = vld [vmem:[%s274] sm:$0xf]
        %v318 = vld [vmem:[%s274 + $0x4] sm:$0xf]
        %v319 = vld [vmem:[%s274 + $0x8] sm:$0xf]
        %v320 = vld [vmem:[%s274 + $0xc] sm:$0xf]
        %v321 = vld [vmem:[%s274 + $0x10] sm:$0xf]
        %v322 = vld [vmem:[%s274 + $0x14] sm:$0xf]
        %v323 = vld [vmem:[%s274 + $0x18] sm:$0xf]
        %v324 = vld [vmem:[%s274 + $0x1c] sm:$0xf]
        %v325 = vld [vmem:[%s274 + $0x20] sm:$0xf]
        %v326 = vld [vmem:[%s274 + $0x24] sm:$0xf]
        %v327 = vld [vmem:[%s274 + $0x28] sm:$0xf]
        %v328 = vld [vmem:[%s274 + $0x2c] sm:$0xf]
        %v329 = vld [vmem:[%s274 + $0x30] sm:$0xf]
        %v330 = vld [vmem:[%s274 + $0x34] sm:$0xf]
        %v331 = vld [vmem:[%s274 + $0x38] sm:$0xf]
        %v332 = vld [vmem:[%s274 + $0x3c] sm:$0xf]
        %v333 = vld [vmem:[%s274 + $0x40] sm:$0xf]
        %v334 = vld [vmem:[%s274 + $0x44] sm:$0xf]
        %v335 = vld [vmem:[%s274 + $0x48] sm:$0xf]
        %v336 = vld [vmem:[%s274 + $0x4c] sm:$0xf]
        %v337 = vld [vmem:[%s274 + $0x50] sm:$0xf]
        %v338 = vld [vmem:[%s274 + $0x54] sm:$0xf]
        %v339 = vld [vmem:[%s274 + $0x58] sm:$0xf]
        %v340 = vld [vmem:[%s274 + $0x5c] sm:$0xf]
        %v341 = vld [vmem:[%s274 + $0x60] sm:$0xf]
        %v342 = vld [vmem:[%s274 + $0x64] sm:$0xf]
        %v343 = vld [vmem:[%s274 + $0x68] sm:$0xf]
        %v344 = vld [vmem:[%s274 + $0x6c] sm:$0xf]
        %v345 = vld [vmem:[%s274 + $0x70] sm:$0xf]
        %v346 = vld [vmem:[%s274 + $0x74] sm:$0xf]
        %v347 = vld [vmem:[%s274 + $0x78] sm:$0xf]
        %v348 = vld [vmem:[%s274 + $0x7c] sm:$0xf]
        %v349 = vld [vmem:[%s274 + $0x80] sm:$0xf]
        %v350 = vld [vmem:[%s274 + $0x84] sm:$0xf]
        %v351 = vld [vmem:[%s274 + $0x88] sm:$0xf]
        %v352 = vld [vmem:[%s274 + $0x8c] sm:$0xf]
        %v353 = vld [vmem:[%s274 + $0x90] sm:$0xf]
        %v354 = vld [vmem:[%s274 + $0x94] sm:$0xf]
        %v355 = vld [vmem:[%s274 + $0x98] sm:$0xf]
        %v356 = vld [vmem:[%s274 + $0x9c] sm:$0xf]
        %v357 = vld [vmem:[%s274 + $0xa0] sm:$0xf]
        %v358 = vld [vmem:[%s274 + $0xa4] sm:$0xf]
        %v359 = vld [vmem:[%s274 + $0xa8] sm:$0xf]
        %v360 = vld [vmem:[%s274 + $0xac] sm:$0xf]
        %v361 = vld [vmem:[%s274 + $0xb0] sm:$0xf]
        %v362 = vld [vmem:[%s274 + $0xb4] sm:$0xf]
        %v363 = vld [vmem:[%s274 + $0xb8] sm:$0xf]
        %v364 = vld [vmem:[%s274 + $0xbc] sm:$0xf]
        %v365 = vld [vmem:[%s274 + $0xc0] sm:$0xf]
        %v366 = vld [vmem:[%s274 + $0xc4] sm:$0xf]
        %v367 = vld [vmem:[%s274 + $0xc8] sm:$0xf]
        %v368 = vld [vmem:[%s274 + $0xcc] sm:$0xf]
        %v369 = vld [vmem:[%s274 + $0xd0] sm:$0xf]
        %v370 = vld [vmem:[%s274 + $0xd4] sm:$0xf]
        %v371 = vld [vmem:[%s274 + $0xd8] sm:$0xf]
        %v372 = vld [vmem:[%s274 + $0xdc] sm:$0xf]
        %v373 = vld [vmem:[%s274 + $0xe0] sm:$0xf]
        %v374 = vld [vmem:[%s274 + $0xe4] sm:$0xf]
        %v375 = vld [vmem:[%s274 + $0xe8] sm:$0xf]
        %v376 = vld [vmem:[%s274 + $0xec] sm:$0xf]
        %v377 = vld [vmem:[%s274 + $0xf0] sm:$0xf]
        %v378 = vld [vmem:[%s274 + $0xf4] sm:$0xf]
        %v379 = vld [vmem:[%s274 + $0xf8] sm:$0xf]
        %v380 = vld [vmem:[%s274 + $0xfc] sm:$0xf]
        %v381 = vld [vmem:[%s274 + $0x100] sm:$0xf]
        %v382 = vld [vmem:[%s274 + $0x104] sm:$0xf]
        %v383 = vld [vmem:[%s274 + $0x108] sm:$0xf]
        %v384 = vld [vmem:[%s274 + $0x10c] sm:$0xf]
        %v385 = vld [vmem:[%s274 + $0x110] sm:$0xf]
        %v386 = vld [vmem:[%s274 + $0x114] sm:$0xf]
        %v387 = vld [vmem:[%s274 + $0x118] sm:$0xf]
        %v388 = vld [vmem:[%s274 + $0x11c] sm:$0xf]
        %v389 = vld [vmem:[%s274 + $0x120] sm:$0xf]
        %v390 = vld [vmem:[%s274 + $0x124] sm:$0xf]
        %v391 = vld [vmem:[%s274 + $0x128] sm:$0xf]
        %v392 = vld [vmem:[%s274 + $0x12c] sm:$0xf]
        %v393 = vld [vmem:[%s274 + $0x130] sm:$0xf]
        %v394 = vld [vmem:[%s274 + $0x134] sm:$0xf]
        %v395 = vld [vmem:[%s274 + $0x138] sm:$0xf]
        %v396 = vld [vmem:[%s274 + $0x13c] sm:$0xf]
        %v397 = vld [vmem:[%s274 + $0x140] sm:$0xf]
        %v398 = vld [vmem:[%s274 + $0x144] sm:$0xf]
        %v399 = vld [vmem:[%s274 + $0x148] sm:$0xf]
        %v400 = vld [vmem:[%s274 + $0x14c] sm:$0xf]
        %v401 = vld [vmem:[%s274 + $0x150] sm:$0xf]
        %v402 = vld [vmem:[%s274 + $0x154] sm:$0xf]
        %v403 = vld [vmem:[%s274 + $0x158] sm:$0xf]
        %v404 = vld [vmem:[%s274 + $0x15c] sm:$0xf]
        %v405 = vld [vmem:[%s274 + $0x160] sm:$0xf]
        %v406 = vld [vmem:[%s274 + $0x164] sm:$0xf]
        %v407 = vld [vmem:[%s274 + $0x168] sm:$0xf]
        %v408 = vld [vmem:[%s274 + $0x16c] sm:$0xf]
        %v409 = vld [vmem:[%s274 + $0x170] sm:$0xf]
        %v410 = vld [vmem:[%s274 + $0x174] sm:$0xf]
        %v411 = vld [vmem:[%s274 + $0x178] sm:$0xf]
        %v412 = vld [vmem:[%s274 + $0x17c] sm:$0xf]
        %v413 = vld [vmem:[%s274 + $0x180] sm:$0xf]
        %v414 = vld [vmem:[%s274 + $0x184] sm:$0xf]
        %v415 = vld [vmem:[%s274 + $0x188] sm:$0xf]
        %v416 = vld [vmem:[%s274 + $0x18c] sm:$0xf]
        %v417 = vld [vmem:[%s274 + $0x190] sm:$0xf]
        %v418 = vld [vmem:[%s274 + $0x194] sm:$0xf]
        %v419 = vld [vmem:[%s274 + $0x198] sm:$0xf]
        %v420 = vld [vmem:[%s274 + $0x19c] sm:$0xf]
        %v421 = vld [vmem:[%s274 + $0x1a0] sm:$0xf]
        %v422 = vld [vmem:[%s274 + $0x1a4] sm:$0xf]
        %v423 = vld [vmem:[%s274 + $0x1a8] sm:$0xf]
        %v424 = vld [vmem:[%s274 + $0x1ac] sm:$0xf]
        %v425 = vld [vmem:[%s274 + $0x1b0] sm:$0xf]
        %v426 = vld [vmem:[%s274 + $0x1b4] sm:$0xf]
        %v427 = vld [vmem:[%s274 + $0x1b8] sm:$0xf]
        %v428 = vld [vmem:[%s274 + $0x1bc] sm:$0xf]
        %v429 = vld [vmem:[%s274 + $0x1c0] sm:$0xf]
        %v430 = vld [vmem:[%s274 + $0x1c4] sm:$0xf]
        %v431 = vld [vmem:[%s274 + $0x1c8] sm:$0xf]
        %v432 = vld [vmem:[%s274 + $0x1cc] sm:$0xf]
        %v433 = vld [vmem:[%s274 + $0x1d0] sm:$0xf]
        %v434 = vld [vmem:[%s274 + $0x1d4] sm:$0xf]
        %v435 = vld [vmem:[%s274 + $0x1d8] sm:$0xf]
        %v436 = vld [vmem:[%s274 + $0x1dc] sm:$0xf]
        %v437 = vld [vmem:[%s274 + $0x1e0] sm:$0xf]
        %v438 = vld [vmem:[%s274 + $0x1e4] sm:$0xf]
        %v439 = vld [vmem:[%s274 + $0x1e8] sm:$0xf]
        %v440 = vld [vmem:[%s274 + $0x1ec] sm:$0xf]
        %v441 = vld [vmem:[%s274 + $0x1f0] sm:$0xf]
        %v442 = vld [vmem:[%s274 + $0x1f4] sm:$0xf]
        %v443 = vld [vmem:[%s274 + $0x1f8] sm:$0xf]
        %v444 = vld [vmem:[%s274 + $0x1fc] sm:$0xf]
        %v445 = vld [vmem:[%s274 + $0x200] sm:$0xf]
        %v446 = vld [vmem:[%s274 + $0x204] sm:$0xf]
        %v447 = vld [vmem:[%s274 + $0x208] sm:$0xf]
        %v448 = vld [vmem:[%s274 + $0x20c] sm:$0xf]
        %v449 = vld [vmem:[%s274 + $0x210] sm:$0xf]
        %v450 = vld [vmem:[%s274 + $0x214] sm:$0xf]
        %v451 = vld [vmem:[%s274 + $0x218] sm:$0xf]
        %v452 = vld [vmem:[%s274 + $0x21c] sm:$0xf]
        %v453 = vld [vmem:[%s274 + $0x220] sm:$0xf]
        %v454 = vld [vmem:[%s274 + $0x224] sm:$0xf]
        %v455 = vld [vmem:[%s274 + $0x228] sm:$0xf]
        %v456 = vld [vmem:[%s274 + $0x22c] sm:$0xf]
        %v457 = vld [vmem:[%s274 + $0x230] sm:$0xf]
        %v458 = vld [vmem:[%s274 + $0x234] sm:$0xf]
        %v459 = vld [vmem:[%s274 + $0x238] sm:$0xf]
        %v460 = vld [vmem:[%s274 + $0x23c] sm:$0xf]
        %v461 = vld [vmem:[%s274 + $0x240] sm:$0xf]
        %v462 = vld [vmem:[%s274 + $0x244] sm:$0xf]
        %v463 = vld [vmem:[%s274 + $0x248] sm:$0xf]
        %v464 = vld [vmem:[%s274 + $0x24c] sm:$0xf]
        %v465 = vld [vmem:[%s274 + $0x250] sm:$0xf]
        %v466 = vld [vmem:[%s274 + $0x254] sm:$0xf]
        %v467 = vld [vmem:[%s274 + $0x258] sm:$0xf]
        %v468 = vld [vmem:[%s274 + $0x25c] sm:$0xf]
        %v469 = vld [vmem:[%s274 + $0x260] sm:$0xf]
        %v470 = vld [vmem:[%s274 + $0x264] sm:$0xf]
        %v471 = vld [vmem:[%s274 + $0x268] sm:$0xf]
        %v472 = vld [vmem:[%s274 + $0x26c] sm:$0xf]
        %v473 = vld [vmem:[%s274 + $0x270] sm:$0xf]
        %v474 = vld [vmem:[%s274 + $0x274] sm:$0xf]
        %v475 = vld [vmem:[%s274 + $0x278] sm:$0xf]
        %v476 = vld [vmem:[%s274 + $0x27c] sm:$0xf]
        %v477 = vld [vmem:[%s274 + $0x280] sm:$0xf]
        %v478 = vld [vmem:[%s274 + $0x284] sm:$0xf]
        %v479 = vld [vmem:[%s274 + $0x288] sm:$0xf]
        %v480 = vld [vmem:[%s274 + $0x28c] sm:$0xf]
        %v481 = vld [vmem:[%s274 + $0x290] sm:$0xf]
        %v482 = vld [vmem:[%s274 + $0x294] sm:$0xf]
        %v483 = vld [vmem:[%s274 + $0x298] sm:$0xf]
        %v484 = vld [vmem:[%s274 + $0x29c] sm:$0xf]
        %v485 = vld [vmem:[%s274 + $0x2a0] sm:$0xf]
        %v486 = vld [vmem:[%s274 + $0x2a4] sm:$0xf]
        %v487 = vld [vmem:[%s274 + $0x2a8] sm:$0xf]
        %v488 = vld [vmem:[%s274 + $0x2ac] sm:$0xf]
        %v489 = vld [vmem:[%s274 + $0x2b0] sm:$0xf]
        %v490 = vld [vmem:[%s274 + $0x2b4] sm:$0xf]
        %v491 = vld [vmem:[%s274 + $0x2b8] sm:$0xf]
        %v492 = vld [vmem:[%s274 + $0x2bc] sm:$0xf]
        %v493 = vld [vmem:[%s274 + $0x2c0] sm:$0xf]
        %v494 = vld [vmem:[%s274 + $0x2c4] sm:$0xf]
        %v495 = vld [vmem:[%s274 + $0x2c8] sm:$0xf]
        %v496 = vld [vmem:[%s274 + $0x2cc] sm:$0xf]
        %v497 = vld [vmem:[%s274 + $0x2d0] sm:$0xf]
        %v498 = vld [vmem:[%s274 + $0x2d4] sm:$0xf]
        %v499 = vld [vmem:[%s274 + $0x2d8] sm:$0xf]
        %v500 = vld [vmem:[%s274 + $0x2dc] sm:$0xf]
        %v501 = vld [vmem:[%s274 + $0x2e0] sm:$0xf]
        %v502 = vld [vmem:[%s274 + $0x2e4] sm:$0xf]
        %v503 = vld [vmem:[%s274 + $0x2e8] sm:$0xf]
        %v504 = vld [vmem:[%s274 + $0x2ec] sm:$0xf]
        %v505 = vld [vmem:[%s274 + $0x2f0] sm:$0xf]
        %v506 = vld [vmem:[%s274 + $0x2f4] sm:$0xf]
        %v507 = vld [vmem:[%s274 + $0x2f8] sm:$0xf]
        %v508 = vld [vmem:[%s274 + $0x2fc] sm:$0xf]
        %v509 = vld [vmem:[%s274 + $0x300] sm:$0xf]
        %v510 = vld [vmem:[%s274 + $0x304] sm:$0xf]
        %v511 = vld [vmem:[%s274 + $0x308] sm:$0xf]
        %v512 = vld [vmem:[%s274 + $0x30c] sm:$0xf]
        %v513 = vld [vmem:[%s274 + $0x310] sm:$0xf]
        %v514 = vld [vmem:[%s274 + $0x314] sm:$0xf]
        %v515 = vld [vmem:[%s274 + $0x318] sm:$0xf]
        %v516 = vld [vmem:[%s274 + $0x31c] sm:$0xf]
        %v517 = vld [vmem:[%s274 + $0x320] sm:$0xf]
        %v518 = vld [vmem:[%s274 + $0x324] sm:$0xf]
        %v519 = vld [vmem:[%s274 + $0x328] sm:$0xf]
        %v520 = vld [vmem:[%s274 + $0x32c] sm:$0xf]
        %v521 = vld [vmem:[%s274 + $0x330] sm:$0xf]
        %v522 = vld [vmem:[%s274 + $0x334] sm:$0xf]
        %v523 = vld [vmem:[%s274 + $0x338] sm:$0xf]
        %v524 = vld [vmem:[%s274 + $0x33c] sm:$0xf]
        %v525 = vld [vmem:[%s274 + $0x340] sm:$0xf]
        %v526 = vld [vmem:[%s274 + $0x344] sm:$0xf]
        %v527 = vld [vmem:[%s274 + $0x348] sm:$0xf]
        %v528 = vld [vmem:[%s274 + $0x34c] sm:$0xf]
        %v529 = vld [vmem:[%s274 + $0x350] sm:$0xf]
        %v530 = vld [vmem:[%s274 + $0x354] sm:$0xf]
        %v531 = vld [vmem:[%s274 + $0x358] sm:$0xf]
        %v532 = vld [vmem:[%s274 + $0x35c] sm:$0xf]
        %v533 = vld [vmem:[%s274 + $0x360] sm:$0xf]
        %v534 = vld [vmem:[%s274 + $0x364] sm:$0xf]
        %v535 = vld [vmem:[%s274 + $0x368] sm:$0xf]
        %v536 = vld [vmem:[%s274 + $0x36c] sm:$0xf]
        %v537 = vld [vmem:[%s274 + $0x370] sm:$0xf]
        %v538 = vld [vmem:[%s274 + $0x374] sm:$0xf]
        %v539 = vld [vmem:[%s274 + $0x378] sm:$0xf]
        %v540 = vld [vmem:[%s274 + $0x37c] sm:$0xf]
        %v541 = vld [vmem:[%s274 + $0x380] sm:$0xf]
        %v542 = vld [vmem:[%s274 + $0x384] sm:$0xf]
        %v543 = vld [vmem:[%s274 + $0x388] sm:$0xf]
        %v544 = vld [vmem:[%s274 + $0x38c] sm:$0xf]
        %v545 = vld [vmem:[%s274 + $0x390] sm:$0xf]
        %v546 = vld [vmem:[%s274 + $0x394] sm:$0xf]
        %v547 = vld [vmem:[%s274 + $0x398] sm:$0xf]
        %v548 = vld [vmem:[%s274 + $0x39c] sm:$0xf]
        %v549 = vld [vmem:[%s274 + $0x3a0] sm:$0xf]
        %v550 = vld [vmem:[%s274 + $0x3a4] sm:$0xf]
        %v551 = vld [vmem:[%s274 + $0x3a8] sm:$0xf]
        %v552 = vld [vmem:[%s274 + $0x3ac] sm:$0xf]
        %v553 = vld [vmem:[%s274 + $0x3b0] sm:$0xf]
        %v554 = vld [vmem:[%s274 + $0x3b4] sm:$0xf]
        %v555 = vld [vmem:[%s274 + $0x3b8] sm:$0xf]
        %v556 = vld [vmem:[%s274 + $0x3bc] sm:$0xf]
        %v557 = vld [vmem:[%s274 + $0x3c0] sm:$0xf]
        %v558 = vld [vmem:[%s274 + $0x3c4] sm:$0xf]
        %v559 = vld [vmem:[%s274 + $0x3c8] sm:$0xf]
        %v560 = vld [vmem:[%s274 + $0x3cc] sm:$0xf]
        %v561 = vld [vmem:[%s274 + $0x3d0] sm:$0xf]
        %v562 = vld [vmem:[%s274 + $0x3d4] sm:$0xf]
        %v563 = vld [vmem:[%s274 + $0x3d8] sm:$0xf]
        %v564 = vld [vmem:[%s274 + $0x3dc] sm:$0xf]
        %v565 = vld [vmem:[%s274 + $0x3e0] sm:$0xf]
        %v566 = vld [vmem:[%s274 + $0x3e4] sm:$0xf]
        %v567 = vld [vmem:[%s274 + $0x3e8] sm:$0xf]
        %v568 = vld [vmem:[%s274 + $0x3ec] sm:$0xf]
        %v569 = vld [vmem:[%s274 + $0x3f0] sm:$0xf]
        %v570 = vld [vmem:[%s274 + $0x3f4] sm:$0xf]
        %v571 = vld [vmem:[%s274 + $0x3f8] sm:$0xf]
        %v572 = vld [vmem:[%s274 + $0x3fc] sm:$0xf]
        %v829 = vunpack.c.l.b16 %v317
        %v830 = vunpack.c.l.b16 %v318
        %v831 = vunpack.c.l.b16 %v319
        %v832 = vunpack.c.l.b16 %v320
        %v833 = vunpack.c.l.b16 %v321
        %v834 = vunpack.c.l.b16 %v322
        %v835 = vunpack.c.l.b16 %v323
        %v836 = vunpack.c.l.b16 %v324
        %v837 = vunpack.c.l.b16 %v325
        %v838 = vunpack.c.l.b16 %v326
        %v839 = vunpack.c.l.b16 %v327
        %v840 = vunpack.c.l.b16 %v328
        %v841 = vunpack.c.l.b16 %v329
        %v842 = vunpack.c.l.b16 %v330
        %v843 = vunpack.c.l.b16 %v331
        %v844 = vunpack.c.l.b16 %v332
        %v845 = vunpack.c.l.b16 %v333
        %v846 = vunpack.c.l.b16 %v334
        %v847 = vunpack.c.l.b16 %v335
        %v848 = vunpack.c.l.b16 %v336
        %v849 = vunpack.c.l.b16 %v337
        %v850 = vunpack.c.l.b16 %v338
        %v851 = vunpack.c.l.b16 %v339
        %v852 = vunpack.c.l.b16 %v340
        %v853 = vunpack.c.l.b16 %v341
        %v854 = vunpack.c.l.b16 %v342
        %v855 = vunpack.c.l.b16 %v343
        %v856 = vunpack.c.l.b16 %v344
        %v857 = vunpack.c.l.b16 %v345
        %v858 = vunpack.c.l.b16 %v346
        %v859 = vunpack.c.l.b16 %v347
        %v860 = vunpack.c.l.b16 %v348
        %v861 = vunpack.c.l.b16 %v349
        %v862 = vunpack.c.l.b16 %v350
        %v863 = vunpack.c.l.b16 %v351
        %v864 = vunpack.c.l.b16 %v352
        %v865 = vunpack.c.l.b16 %v353
        %v866 = vunpack.c.l.b16 %v354
        %v867 = vunpack.c.l.b16 %v355
        %v868 = vunpack.c.l.b16 %v356
        %v869 = vunpack.c.l.b16 %v357
        %v870 = vunpack.c.l.b16 %v358
        %v871 = vunpack.c.l.b16 %v359
        %v872 = vunpack.c.l.b16 %v360
        %v873 = vunpack.c.l.b16 %v361
        %v874 = vunpack.c.l.b16 %v362
        %v875 = vunpack.c.l.b16 %v363
        %v876 = vunpack.c.l.b16 %v364
        %v877 = vunpack.c.l.b16 %v365
        %v878 = vunpack.c.l.b16 %v366
        %v879 = vunpack.c.l.b16 %v367
        %v880 = vunpack.c.l.b16 %v368
        %v881 = vunpack.c.l.b16 %v369
        %v882 = vunpack.c.l.b16 %v370
        %v883 = vunpack.c.l.b16 %v371
        %v884 = vunpack.c.l.b16 %v372
        %v885 = vunpack.c.l.b16 %v373
        %v886 = vunpack.c.l.b16 %v374
        %v887 = vunpack.c.l.b16 %v375
        %v888 = vunpack.c.l.b16 %v376
        %v889 = vunpack.c.l.b16 %v377
        %v890 = vunpack.c.l.b16 %v378
        %v891 = vunpack.c.l.b16 %v379
        %v892 = vunpack.c.l.b16 %v380
        %v893 = vunpack.c.l.b16 %v381
        %v894 = vunpack.c.l.b16 %v382
        %v895 = vunpack.c.l.b16 %v383
        %v896 = vunpack.c.l.b16 %v384
        %v897 = vunpack.c.l.b16 %v385
        %v898 = vunpack.c.l.b16 %v386
        %v899 = vunpack.c.l.b16 %v387
        %v900 = vunpack.c.l.b16 %v388
        %v901 = vunpack.c.l.b16 %v389
        %v902 = vunpack.c.l.b16 %v390
        %v903 = vunpack.c.l.b16 %v391
        %v904 = vunpack.c.l.b16 %v392
        %v905 = vunpack.c.l.b16 %v393
        %v906 = vunpack.c.l.b16 %v394
        %v907 = vunpack.c.l.b16 %v395
        %v908 = vunpack.c.l.b16 %v396
        %v909 = vunpack.c.l.b16 %v397
        %v910 = vunpack.c.l.b16 %v398
        %v911 = vunpack.c.l.b16 %v399
        %v912 = vunpack.c.l.b16 %v400
        %v913 = vunpack.c.l.b16 %v401
        %v914 = vunpack.c.l.b16 %v402
        %v915 = vunpack.c.l.b16 %v403
        %v916 = vunpack.c.l.b16 %v404
        %v917 = vunpack.c.l.b16 %v405
        %v918 = vunpack.c.l.b16 %v406
        %v919 = vunpack.c.l.b16 %v407
        %v920 = vunpack.c.l.b16 %v408
        %v921 = vunpack.c.l.b16 %v409
        %v922 = vunpack.c.l.b16 %v410
        %v923 = vunpack.c.l.b16 %v411
        %v924 = vunpack.c.l.b16 %v412
        %v925 = vunpack.c.l.b16 %v413
        %v926 = vunpack.c.l.b16 %v414
        %v927 = vunpack.c.l.b16 %v415
        %v928 = vunpack.c.l.b16 %v416
        %v929 = vunpack.c.l.b16 %v417
        %v930 = vunpack.c.l.b16 %v418
        %v931 = vunpack.c.l.b16 %v419
        %v932 = vunpack.c.l.b16 %v420
        %v933 = vunpack.c.l.b16 %v421
        %v934 = vunpack.c.l.b16 %v422
        %v935 = vunpack.c.l.b16 %v423
        %v936 = vunpack.c.l.b16 %v424
        %v937 = vunpack.c.l.b16 %v425
        %v938 = vunpack.c.l.b16 %v426
        %v939 = vunpack.c.l.b16 %v427
        %v940 = vunpack.c.l.b16 %v428
        %v941 = vunpack.c.l.b16 %v429
        %v942 = vunpack.c.l.b16 %v430
        %v943 = vunpack.c.l.b16 %v431
        %v944 = vunpack.c.l.b16 %v432
        %v945 = vunpack.c.l.b16 %v433
        %v946 = vunpack.c.l.b16 %v434
        %v947 = vunpack.c.l.b16 %v435
        %v948 = vunpack.c.l.b16 %v436
        %v949 = vunpack.c.l.b16 %v437
        %v950 = vunpack.c.l.b16 %v438
        %v951 = vunpack.c.l.b16 %v439
        %v952 = vunpack.c.l.b16 %v440
        %v953 = vunpack.c.l.b16 %v441
        %v954 = vunpack.c.l.b16 %v442
        %v955 = vunpack.c.l.b16 %v443
        %v956 = vunpack.c.l.b16 %v444
        %v957 = vunpack.c.l.b16 %v445
        %v958 = vunpack.c.l.b16 %v446
        %v959 = vunpack.c.l.b16 %v447
        %v960 = vunpack.c.l.b16 %v448
        %v961 = vunpack.c.l.b16 %v449
        %v962 = vunpack.c.l.b16 %v450
        %v963 = vunpack.c.l.b16 %v451
        %v964 = vunpack.c.l.b16 %v452
        %v965 = vunpack.c.l.b16 %v453
        %v966 = vunpack.c.l.b16 %v454
        %v967 = vunpack.c.l.b16 %v455
        %v968 = vunpack.c.l.b16 %v456
        %v969 = vunpack.c.l.b16 %v457
        %v970 = vunpack.c.l.b16 %v458
        %v971 = vunpack.c.l.b16 %v459
        %v972 = vunpack.c.l.b16 %v460
        %v973 = vunpack.c.l.b16 %v461
        %v974 = vunpack.c.l.b16 %v462
        %v975 = vunpack.c.l.b16 %v463
        %v976 = vunpack.c.l.b16 %v464
        %v977 = vunpack.c.l.b16 %v465
        %v978 = vunpack.c.l.b16 %v466
        %v979 = vunpack.c.l.b16 %v467
        %v980 = vunpack.c.l.b16 %v468
        %v981 = vunpack.c.l.b16 %v469
        %v982 = vunpack.c.l.b16 %v470
        %v983 = vunpack.c.l.b16 %v471
        %v984 = vunpack.c.l.b16 %v472
        %v985 = vunpack.c.l.b16 %v473
        %v986 = vunpack.c.l.b16 %v474
        %v987 = vunpack.c.l.b16 %v475
        %v988 = vunpack.c.l.b16 %v476
        %v989 = vunpack.c.l.b16 %v477
        %v990 = vunpack.c.l.b16 %v478
        %v991 = vunpack.c.l.b16 %v479
        %v992 = vunpack.c.l.b16 %v480
        %v993 = vunpack.c.l.b16 %v481
        %v994 = vunpack.c.l.b16 %v482
        %v995 = vunpack.c.l.b16 %v483
        %v996 = vunpack.c.l.b16 %v484
        %v997 = vunpack.c.l.b16 %v485
        %v998 = vunpack.c.l.b16 %v486
        %v999 = vunpack.c.l.b16 %v487
        %v1000 = vunpack.c.l.b16 %v488
        %v1001 = vunpack.c.l.b16 %v489
        %v1002 = vunpack.c.l.b16 %v490
        %v1003 = vunpack.c.l.b16 %v491
        %v1004 = vunpack.c.l.b16 %v492
        %v1005 = vunpack.c.l.b16 %v493
        %v1006 = vunpack.c.l.b16 %v494
        %v1007 = vunpack.c.l.b16 %v495
        %v1008 = vunpack.c.l.b16 %v496
        %v1009 = vunpack.c.l.b16 %v497
        %v1010 = vunpack.c.l.b16 %v498
        %v1011 = vunpack.c.l.b16 %v499
        %v1012 = vunpack.c.l.b16 %v500
        %v1013 = vunpack.c.l.b16 %v501
        %v1014 = vunpack.c.l.b16 %v502
        %v1015 = vunpack.c.l.b16 %v503
        %v1016 = vunpack.c.l.b16 %v504
        %v1017 = vunpack.c.l.b16 %v505
        %v1018 = vunpack.c.l.b16 %v506
        %v1019 = vunpack.c.l.b16 %v507
        %v1020 = vunpack.c.l.b16 %v508
        %v1021 = vunpack.c.l.b16 %v509
        %v1022 = vunpack.c.l.b16 %v510
        %v1023 = vunpack.c.l.b16 %v511
        %v1024 = vunpack.c.l.b16 %v512
        %v1025 = vunpack.c.l.b16 %v513
        %v1026 = vunpack.c.l.b16 %v514
        %v1027 = vunpack.c.l.b16 %v515
        %v1028 = vunpack.c.l.b16 %v516
        %v1029 = vunpack.c.l.b16 %v517
        %v1030 = vunpack.c.l.b16 %v518
        %v1031 = vunpack.c.l.b16 %v519
        %v1032 = vunpack.c.l.b16 %v520
        %v1033 = vunpack.c.l.b16 %v521
        %v1034 = vunpack.c.l.b16 %v522
        %v1035 = vunpack.c.l.b16 %v523
        %v1036 = vunpack.c.l.b16 %v524
        %v1037 = vunpack.c.l.b16 %v525
        %v1038 = vunpack.c.l.b16 %v526
        %v1039 = vunpack.c.l.b16 %v527
        %v1040 = vunpack.c.l.b16 %v528
        %v1041 = vunpack.c.l.b16 %v529
        %v1042 = vunpack.c.l.b16 %v530
        %v1043 = vunpack.c.l.b16 %v531
        %v1044 = vunpack.c.l.b16 %v532
        %v1045 = vunpack.c.l.b16 %v533
        %v1046 = vunpack.c.l.b16 %v534
        %v1047 = vunpack.c.l.b16 %v535
        %v1048 = vunpack.c.l.b16 %v536
        %v1049 = vunpack.c.l.b16 %v537
        %v1050 = vunpack.c.l.b16 %v538
        %v1051 = vunpack.c.l.b16 %v539
        %v1052 = vunpack.c.l.b16 %v540
        %v1053 = vunpack.c.l.b16 %v541
        %v1054 = vunpack.c.l.b16 %v542
        %v1055 = vunpack.c.l.b16 %v543
        %v1056 = vunpack.c.l.b16 %v544
        %v1057 = vunpack.c.l.b16 %v545
        %v1058 = vunpack.c.l.b16 %v546
        %v1059 = vunpack.c.l.b16 %v547
        %v1060 = vunpack.c.l.b16 %v548
        %v1061 = vunpack.c.l.b16 %v549
        %v1062 = vunpack.c.l.b16 %v550
        %v1063 = vunpack.c.l.b16 %v551
        %v1064 = vunpack.c.l.b16 %v552
        %v1065 = vunpack.c.l.b16 %v553
        %v1066 = vunpack.c.l.b16 %v554
        %v1067 = vunpack.c.l.b16 %v555
        %v1068 = vunpack.c.l.b16 %v556
        %v1069 = vunpack.c.l.b16 %v557
        %v1070 = vunpack.c.l.b16 %v558
        %v1071 = vunpack.c.l.b16 %v559
        %v1072 = vunpack.c.l.b16 %v560
        %v1073 = vunpack.c.l.b16 %v561
        %v1074 = vunpack.c.l.b16 %v562
        %v1075 = vunpack.c.l.b16 %v563
        %v1076 = vunpack.c.l.b16 %v564
        %v1077 = vunpack.c.l.b16 %v565
        %v1078 = vunpack.c.l.b16 %v566
        %v1079 = vunpack.c.l.b16 %v567
        %v1080 = vunpack.c.l.b16 %v568
        %v1081 = vunpack.c.l.b16 %v569
        %v1082 = vunpack.c.l.b16 %v570
        %v1083 = vunpack.c.l.b16 %v571
        %v1084 = vunpack.c.l.b16 %v572
        %v1085 = vpack.c.b16 %v830, %v829
        %v1086 = vpack.c.b16 %v832, %v831
        %v1087 = vpack.c.b16 %v834, %v833
        %v1088 = vpack.c.b16 %v836, %v835
        %v1089 = vpack.c.b16 %v838, %v837
        %v1090 = vpack.c.b16 %v840, %v839
        %v1091 = vpack.c.b16 %v842, %v841
        %v1092 = vpack.c.b16 %v844, %v843
        %v1093 = vpack.c.b16 %v846, %v845
        %v1094 = vpack.c.b16 %v848, %v847
        %v1095 = vpack.c.b16 %v850, %v849
        %v1096 = vpack.c.b16 %v852, %v851
        %v1097 = vpack.c.b16 %v854, %v853
        %v1098 = vpack.c.b16 %v856, %v855
        %v1099 = vpack.c.b16 %v858, %v857
        %v1100 = vpack.c.b16 %v860, %v859
        %v1101 = vpack.c.b16 %v862, %v861
        %v1102 = vpack.c.b16 %v864, %v863
        %v1103 = vpack.c.b16 %v866, %v865
        %v1104 = vpack.c.b16 %v868, %v867
        %v1105 = vpack.c.b16 %v870, %v869
        %v1106 = vpack.c.b16 %v872, %v871
        %v1107 = vpack.c.b16 %v874, %v873
        %v1108 = vpack.c.b16 %v876, %v875
        %v1109 = vpack.c.b16 %v878, %v877
        %v1110 = vpack.c.b16 %v880, %v879
        %v1111 = vpack.c.b16 %v882, %v881
        %v1112 = vpack.c.b16 %v884, %v883
        %v1113 = vpack.c.b16 %v886, %v885
        %v1114 = vpack.c.b16 %v888, %v887
        %v1115 = vpack.c.b16 %v890, %v889
        %v1116 = vpack.c.b16 %v892, %v891
        %v1117 = vpack.c.b16 %v894, %v893
        %v1118 = vpack.c.b16 %v896, %v895
        %v1119 = vpack.c.b16 %v898, %v897
        %v1120 = vpack.c.b16 %v900, %v899
        %v1121 = vpack.c.b16 %v902, %v901
        %v1122 = vpack.c.b16 %v904, %v903
        %v1123 = vpack.c.b16 %v906, %v905
        %v1124 = vpack.c.b16 %v908, %v907
        %v1125 = vpack.c.b16 %v910, %v909
        %v1126 = vpack.c.b16 %v912, %v911
        %v1127 = vpack.c.b16 %v914, %v913
        %v1128 = vpack.c.b16 %v916, %v915
        %v1129 = vpack.c.b16 %v918, %v917
        %v1130 = vpack.c.b16 %v920, %v919
        %v1131 = vpack.c.b16 %v922, %v921
        %v1132 = vpack.c.b16 %v924, %v923
        %v1133 = vpack.c.b16 %v926, %v925
        %v1134 = vpack.c.b16 %v928, %v927
        %v1135 = vpack.c.b16 %v930, %v929
        %v1136 = vpack.c.b16 %v932, %v931
        %v1137 = vpack.c.b16 %v934, %v933
        %v1138 = vpack.c.b16 %v936, %v935
        %v1139 = vpack.c.b16 %v938, %v937
        %v1140 = vpack.c.b16 %v940, %v939
        %v1141 = vpack.c.b16 %v942, %v941
        %v1142 = vpack.c.b16 %v944, %v943
        %v1143 = vpack.c.b16 %v946, %v945
        %v1144 = vpack.c.b16 %v948, %v947
        %v1145 = vpack.c.b16 %v950, %v949
        %v1146 = vpack.c.b16 %v952, %v951
        %v1147 = vpack.c.b16 %v954, %v953
        %v1148 = vpack.c.b16 %v956, %v955
        %v1149 = vpack.c.b16 %v958, %v957
        %v1150 = vpack.c.b16 %v960, %v959
        %v1151 = vpack.c.b16 %v962, %v961
        %v1152 = vpack.c.b16 %v964, %v963
        %v1153 = vpack.c.b16 %v966, %v965
        %v1154 = vpack.c.b16 %v968, %v967
        %v1155 = vpack.c.b16 %v970, %v969
        %v1156 = vpack.c.b16 %v972, %v971
        %v1157 = vpack.c.b16 %v974, %v973
        %v1158 = vpack.c.b16 %v976, %v975
        %v1159 = vpack.c.b16 %v978, %v977
        %v1160 = vpack.c.b16 %v980, %v979
        %v1161 = vpack.c.b16 %v982, %v981
        %v1162 = vpack.c.b16 %v984, %v983
        %v1163 = vpack.c.b16 %v986, %v985
        %v1164 = vpack.c.b16 %v988, %v987
        %v1165 = vpack.c.b16 %v990, %v989
        %v1166 = vpack.c.b16 %v992, %v991
        %v1167 = vpack.c.b16 %v994, %v993
        %v1168 = vpack.c.b16 %v996, %v995
        %v1169 = vpack.c.b16 %v998, %v997
        %v1170 = vpack.c.b16 %v1000, %v999
        %v1171 = vpack.c.b16 %v1002, %v1001
        %v1172 = vpack.c.b16 %v1004, %v1003
        %v1173 = vpack.c.b16 %v1006, %v1005
        %v1174 = vpack.c.b16 %v1008, %v1007
        %v1175 = vpack.c.b16 %v1010, %v1009
        %v1176 = vpack.c.b16 %v1012, %v1011
        %v1177 = vpack.c.b16 %v1014, %v1013
        %v1178 = vpack.c.b16 %v1016, %v1015
        %v1179 = vpack.c.b16 %v1018, %v1017
        %v1180 = vpack.c.b16 %v1020, %v1019
        %v1181 = vpack.c.b16 %v1022, %v1021
        %v1182 = vpack.c.b16 %v1024, %v1023
        %v1183 = vpack.c.b16 %v1026, %v1025
        %v1184 = vpack.c.b16 %v1028, %v1027
        %v1185 = vpack.c.b16 %v1030, %v1029
        %v1186 = vpack.c.b16 %v1032, %v1031
        %v1187 = vpack.c.b16 %v1034, %v1033
        %v1188 = vpack.c.b16 %v1036, %v1035
        %v1189 = vpack.c.b16 %v1038, %v1037
        %v1190 = vpack.c.b16 %v1040, %v1039
        %v1191 = vpack.c.b16 %v1042, %v1041
        %v1192 = vpack.c.b16 %v1044, %v1043
        %v1193 = vpack.c.b16 %v1046, %v1045
        %v1194 = vpack.c.b16 %v1048, %v1047
        %v1195 = vpack.c.b16 %v1050, %v1049
        %v1196 = vpack.c.b16 %v1052, %v1051
        %v1197 = vpack.c.b16 %v1054, %v1053
        %v1198 = vpack.c.b16 %v1056, %v1055
        %v1199 = vpack.c.b16 %v1058, %v1057
        %v1200 = vpack.c.b16 %v1060, %v1059
        %v1201 = vpack.c.b16 %v1062, %v1061
        %v1202 = vpack.c.b16 %v1064, %v1063
        %v1203 = vpack.c.b16 %v1066, %v1065
        %v1204 = vpack.c.b16 %v1068, %v1067
        %v1205 = vpack.c.b16 %v1070, %v1069
        %v1206 = vpack.c.b16 %v1072, %v1071
        %v1207 = vpack.c.b16 %v1074, %v1073
        %v1208 = vpack.c.b16 %v1076, %v1075
        %v1209 = vpack.c.b16 %v1078, %v1077
        %v1210 = vpack.c.b16 %v1080, %v1079
        %v1211 = vpack.c.b16 %v1082, %v1081
        %v1212 = vpack.c.b16 %v1084, %v1083
        %v1341 = vmax.bf16 %v1085, %v1086
        %v1342 = vmax.bf16 %v1341, %v1087
        %v1343 = vmax.bf16 %v1342, %v1088
        %v1344 = vmax.bf16 %v1343, %v1089
        %v1345 = vmax.bf16 %v1344, %v1090
        %v1346 = vmax.bf16 %v1345, %v1091
        %v1347 = vmax.bf16 %v1346, %v1092
        %v1348 = vmax.bf16 %v1347, %v1093
        %v1349 = vmax.bf16 %v1348, %v1094
        %v1350 = vmax.bf16 %v1349, %v1095
        %v1351 = vmax.bf16 %v1350, %v1096
        %v1352 = vmax.bf16 %v1351, %v1097
        %v1353 = vmax.bf16 %v1352, %v1098
        %v1354 = vmax.bf16 %v1353, %v1099
        %v1355 = vmax.bf16 %v1354, %v1100
        %v1356 = vunpack.i.l.bf16 %v1355
        %v1357 = vunpack.i.h.bf16 %v1355
        %v1358 = vmax.f32 %v1356, %v1357
        %v1359 = vrot.slane %v1358, 4
        %v1360 = vmax.f32 %v1358, %v1359
        %v1361 = vrot.slane %v1360, 2
        %v1362 = vmax.f32 %v1360, %v1361
        %v1363 = vrot.slane %v1362, 1
        %v1364 = vmax.f32 %v1362, %v1363
        %v1365 = vpack.i.bf16 %v1364, %v1364
        %v1366 = vmax.bf16 %v1101, %v1102
        %v1367 = vmax.bf16 %v1366, %v1103
        %v1368 = vmax.bf16 %v1367, %v1104
        %v1369 = vmax.bf16 %v1368, %v1105
        %v1370 = vmax.bf16 %v1369, %v1106
        %v1371 = vmax.bf16 %v1370, %v1107
        %v1372 = vmax.bf16 %v1371, %v1108
        %v1373 = vmax.bf16 %v1372, %v1109
        %v1374 = vmax.bf16 %v1373, %v1110
        %v1375 = vmax.bf16 %v1374, %v1111
        %v1376 = vmax.bf16 %v1375, %v1112
        %v1377 = vmax.bf16 %v1376, %v1113
        %v1378 = vmax.bf16 %v1377, %v1114
        %v1379 = vmax.bf16 %v1378, %v1115
        %v1380 = vmax.bf16 %v1379, %v1116
        %v1381 = vunpack.i.l.bf16 %v1380
        %v1382 = vunpack.i.h.bf16 %v1380
        %v1383 = vmax.f32 %v1381, %v1382
        %v1384 = vrot.slane %v1383, 4
        %v1385 = vmax.f32 %v1383, %v1384
        %v1386 = vrot.slane %v1385, 2
        %v1387 = vmax.f32 %v1385, %v1386
        %v1388 = vrot.slane %v1387, 1
        %v1389 = vmax.f32 %v1387, %v1388
        %v1390 = vpack.i.bf16 %v1389, %v1389
        %v1391 = vmax.bf16 %v1117, %v1118
        %v1392 = vmax.bf16 %v1391, %v1119
        %v1393 = vmax.bf16 %v1392, %v1120
        %v1394 = vmax.bf16 %v1393, %v1121
        %v1395 = vmax.bf16 %v1394, %v1122
        %v1396 = vmax.bf16 %v1395, %v1123
        %v1397 = vmax.bf16 %v1396, %v1124
        %v1398 = vmax.bf16 %v1397, %v1125
        %v1399 = vmax.bf16 %v1398, %v1126
        %v1400 = vmax.bf16 %v1399, %v1127
        %v1401 = vmax.bf16 %v1400, %v1128
        %v1402 = vmax.bf16 %v1401, %v1129
        %v1403 = vmax.bf16 %v1402, %v1130
        %v1404 = vmax.bf16 %v1403, %v1131
        %v1405 = vmax.bf16 %v1404, %v1132
        %v1406 = vunpack.i.l.bf16 %v1405
        %v1407 = vunpack.i.h.bf16 %v1405
        %v1408 = vmax.f32 %v1406, %v1407
        %v1409 = vrot.slane %v1408, 4
        %v1410 = vmax.f32 %v1408, %v1409
        %v1411 = vrot.slane %v1410, 2
        %v1412 = vmax.f32 %v1410, %v1411
        %v1413 = vrot.slane %v1412, 1
        %v1414 = vmax.f32 %v1412, %v1413
        %v1415 = vpack.i.bf16 %v1414, %v1414
        %v1416 = vmax.bf16 %v1133, %v1134
        %v1417 = vmax.bf16 %v1416, %v1135
        %v1418 = vmax.bf16 %v1417, %v1136
        %v1419 = vmax.bf16 %v1418, %v1137
        %v1420 = vmax.bf16 %v1419, %v1138
        %v1421 = vmax.bf16 %v1420, %v1139
        %v1422 = vmax.bf16 %v1421, %v1140
        %v1423 = vmax.bf16 %v1422, %v1141
        %v1424 = vmax.bf16 %v1423, %v1142
        %v1425 = vmax.bf16 %v1424, %v1143
        %v1426 = vmax.bf16 %v1425, %v1144
        %v1427 = vmax.bf16 %v1426, %v1145
        %v1428 = vmax.bf16 %v1427, %v1146
        %v1429 = vmax.bf16 %v1428, %v1147
        %v1430 = vmax.bf16 %v1429, %v1148
        %v1431 = vunpack.i.l.bf16 %v1430
        %v1432 = vunpack.i.h.bf16 %v1430
        %v1433 = vmax.f32 %v1431, %v1432
        %v1434 = vrot.slane %v1433, 4
        %v1435 = vmax.f32 %v1433, %v1434
        %v1436 = vrot.slane %v1435, 2
        %v1437 = vmax.f32 %v1435, %v1436
        %v1438 = vrot.slane %v1437, 1
        %v1439 = vmax.f32 %v1437, %v1438
        %v1440 = vpack.i.bf16 %v1439, %v1439
        %v1441 = vmax.bf16 %v1149, %v1150
        %v1442 = vmax.bf16 %v1441, %v1151
        %v1443 = vmax.bf16 %v1442, %v1152
        %v1444 = vmax.bf16 %v1443, %v1153
        %v1445 = vmax.bf16 %v1444, %v1154
        %v1446 = vmax.bf16 %v1445, %v1155
        %v1447 = vmax.bf16 %v1446, %v1156
        %v1448 = vmax.bf16 %v1447, %v1157
        %v1449 = vmax.bf16 %v1448, %v1158
        %v1450 = vmax.bf16 %v1449, %v1159
        %v1451 = vmax.bf16 %v1450, %v1160
        %v1452 = vmax.bf16 %v1451, %v1161
        %v1453 = vmax.bf16 %v1452, %v1162
        %v1454 = vmax.bf16 %v1453, %v1163
        %v1455 = vmax.bf16 %v1454, %v1164
        %v1456 = vunpack.i.l.bf16 %v1455
        %v1457 = vunpack.i.h.bf16 %v1455
        %v1458 = vmax.f32 %v1456, %v1457
        %v1459 = vrot.slane %v1458, 4
        %v1460 = vmax.f32 %v1458, %v1459
        %v1461 = vrot.slane %v1460, 2
        %v1462 = vmax.f32 %v1460, %v1461
        %v1463 = vrot.slane %v1462, 1
        %v1464 = vmax.f32 %v1462, %v1463
        %v1465 = vpack.i.bf16 %v1464, %v1464
        %v1466 = vmax.bf16 %v1165, %v1166
        %v1467 = vmax.bf16 %v1466, %v1167
        %v1468 = vmax.bf16 %v1467, %v1168
        %v1469 = vmax.bf16 %v1468, %v1169
        %v1470 = vmax.bf16 %v1469, %v1170
        %v1471 = vmax.bf16 %v1470, %v1171
        %v1472 = vmax.bf16 %v1471, %v1172
        %v1473 = vmax.bf16 %v1472, %v1173
        %v1474 = vmax.bf16 %v1473, %v1174
        %v1475 = vmax.bf16 %v1474, %v1175
        %v1476 = vmax.bf16 %v1475, %v1176
        %v1477 = vmax.bf16 %v1476, %v1177
        %v1478 = vmax.bf16 %v1477, %v1178
        %v1479 = vmax.bf16 %v1478, %v1179
        %v1480 = vmax.bf16 %v1479, %v1180
        %v1481 = vunpack.i.l.bf16 %v1480
        %v1482 = vunpack.i.h.bf16 %v1480
        %v1483 = vmax.f32 %v1481, %v1482
        %v1484 = vrot.slane %v1483, 4
        %v1485 = vmax.f32 %v1483, %v1484
        %v1486 = vrot.slane %v1485, 2
        %v1487 = vmax.f32 %v1485, %v1486
        %v1488 = vrot.slane %v1487, 1
        %v1489 = vmax.f32 %v1487, %v1488
        %v1490 = vpack.i.bf16 %v1489, %v1489
        %v1491 = vmax.bf16 %v1181, %v1182
        %v1492 = vmax.bf16 %v1491, %v1183
        %v1493 = vmax.bf16 %v1492, %v1184
        %v1494 = vmax.bf16 %v1493, %v1185
        %v1495 = vmax.bf16 %v1494, %v1186
        %v1496 = vmax.bf16 %v1495, %v1187
        %v1497 = vmax.bf16 %v1496, %v1188
        %v1498 = vmax.bf16 %v1497, %v1189
        %v1499 = vmax.bf16 %v1498, %v1190
        %v1500 = vmax.bf16 %v1499, %v1191
        %v1501 = vmax.bf16 %v1500, %v1192
        %v1502 = vmax.bf16 %v1501, %v1193
        %v1503 = vmax.bf16 %v1502, %v1194
        %v1504 = vmax.bf16 %v1503, %v1195
        %v1505 = vmax.bf16 %v1504, %v1196
        %v1506 = vunpack.i.l.bf16 %v1505
        %v1507 = vunpack.i.h.bf16 %v1505
        %v1508 = vmax.f32 %v1506, %v1507
        %v1509 = vrot.slane %v1508, 4
        %v1510 = vmax.f32 %v1508, %v1509
        %v1511 = vrot.slane %v1510, 2
        %v1512 = vmax.f32 %v1510, %v1511
        %v1513 = vrot.slane %v1512, 1
        %v1514 = vmax.f32 %v1512, %v1513
        %v1515 = vpack.i.bf16 %v1514, %v1514
        %v1516 = vmax.bf16 %v1197, %v1198
        %v1517 = vmax.bf16 %v1516, %v1199
        %v1518 = vmax.bf16 %v1517, %v1200
        %v1519 = vmax.bf16 %v1518, %v1201
        %v1520 = vmax.bf16 %v1519, %v1202
        %v1521 = vmax.bf16 %v1520, %v1203
        %v1522 = vmax.bf16 %v1521, %v1204
        %v1523 = vmax.bf16 %v1522, %v1205
        %v1524 = vmax.bf16 %v1523, %v1206
        %v1525 = vmax.bf16 %v1524, %v1207
        %v1526 = vmax.bf16 %v1525, %v1208
        %v1527 = vmax.bf16 %v1526, %v1209
        %v1528 = vmax.bf16 %v1527, %v1210
        %v1529 = vmax.bf16 %v1528, %v1211
        %v1530 = vmax.bf16 %v1529, %v1212
        %v1531 = vunpack.i.l.bf16 %v1530
        %v1532 = vunpack.i.h.bf16 %v1530
        %v1533 = vmax.f32 %v1531, %v1532
        %v1534 = vrot.slane %v1533, 4
        %v1535 = vmax.f32 %v1533, %v1534
        %v1536 = vrot.slane %v1535, 2
        %v1537 = vmax.f32 %v1535, %v1536
        %v1538 = vrot.slane %v1537, 1
        %v1539 = vmax.f32 %v1537, %v1538
        %v1540 = vpack.i.bf16 %v1539, %v1539
        %v1541 = vunpack.c.l.bf16 %v317
        %v1542 = vunpack.c.l.bf16 %v318
        %v1543 = vunpack.c.l.bf16 %v319
        %v1544 = vunpack.c.l.bf16 %v320
        %v1545 = vunpack.c.l.bf16 %v349
        %v1546 = vunpack.c.l.bf16 %v350
        %v1547 = vunpack.c.l.bf16 %v351
        %v1548 = vunpack.c.l.bf16 %v352
        %v1549 = vunpack.c.l.bf16 %v381
        %v1550 = vunpack.c.l.bf16 %v382
        %v1551 = vunpack.c.l.bf16 %v383
        %v1552 = vunpack.c.l.bf16 %v384
        %v1553 = vunpack.c.l.bf16 %v413
        %v1554 = vunpack.c.l.bf16 %v414
        %v1555 = vunpack.c.l.bf16 %v415
        %v1556 = vunpack.c.l.bf16 %v416
        %v1557 = vunpack.c.l.bf16 %v445
        %v1558 = vunpack.c.l.bf16 %v446
        %v1559 = vunpack.c.l.bf16 %v447
        %v1560 = vunpack.c.l.bf16 %v448
        %v1561 = vunpack.c.l.bf16 %v477
        %v1562 = vunpack.c.l.bf16 %v478
        %v1563 = vunpack.c.l.bf16 %v479
        %v1564 = vunpack.c.l.bf16 %v480
        %v1565 = vunpack.c.l.bf16 %v509
        %v1566 = vunpack.c.l.bf16 %v510
        %v1567 = vunpack.c.l.bf16 %v511
        %v1568 = vunpack.c.l.bf16 %v512
        %v1569 = vunpack.c.l.bf16 %v541
        %v1570 = vunpack.c.l.bf16 %v542
        %v1571 = vunpack.c.l.bf16 %v543
        %v1572 = vunpack.c.l.bf16 %v544
        %v1573 = vadd.f32 %v1541, %v1542
        %v1574 = vadd.f32 %v1573, %v1543
        %v1575 = vadd.f32 %v1574, %v1544
        %v1576 = vrot.slane %v1575, 4
        %v1577 = vadd.f32 %v1575, %v1576
        %v1578 = vrot.slane %v1577, 2
        %v1579 = vadd.f32 %v1577, %v1578
        %v1580 = vrot.slane %v1579, 1
        %v1581 = vadd.f32 %v1579, %v1580
        %v1582 = vadd.f32 %v1545, %v1546
        %v1583 = vadd.f32 %v1582, %v1547
        %v1584 = vadd.f32 %v1583, %v1548
        %v1585 = vrot.slane %v1584, 4
        %v1586 = vadd.f32 %v1584, %v1585
        %v1587 = vrot.slane %v1586, 2
        %v1588 = vadd.f32 %v1586, %v1587
        %v1589 = vrot.slane %v1588, 1
        %v1590 = vadd.f32 %v1588, %v1589
        %v1591 = vadd.f32 %v1549, %v1550
        %v1592 = vadd.f32 %v1591, %v1551
        %v1593 = vadd.f32 %v1592, %v1552
        %v1594 = vrot.slane %v1593, 4
        %v1595 = vadd.f32 %v1593, %v1594
        %v1596 = vrot.slane %v1595, 2
        %v1597 = vadd.f32 %v1595, %v1596
        %v1598 = vrot.slane %v1597, 1
        %v1599 = vadd.f32 %v1597, %v1598
        %v1600 = vadd.f32 %v1553, %v1554
        %v1601 = vadd.f32 %v1600, %v1555
        %v1602 = vadd.f32 %v1601, %v1556
        %v1603 = vrot.slane %v1602, 4
        %v1604 = vadd.f32 %v1602, %v1603
        %v1605 = vrot.slane %v1604, 2
        %v1606 = vadd.f32 %v1604, %v1605
        %v1607 = vrot.slane %v1606, 1
        %v1608 = vadd.f32 %v1606, %v1607
        %v1609 = vadd.f32 %v1557, %v1558
        %v1610 = vadd.f32 %v1609, %v1559
        %v1611 = vadd.f32 %v1610, %v1560
        %v1612 = vrot.slane %v1611, 4
        %v1613 = vadd.f32 %v1611, %v1612
        %v1614 = vrot.slane %v1613, 2
        %v1615 = vadd.f32 %v1613, %v1614
        %v1616 = vrot.slane %v1615, 1
        %v1617 = vadd.f32 %v1615, %v1616
        %v1618 = vadd.f32 %v1561, %v1562
        %v1619 = vadd.f32 %v1618, %v1563
        %v1620 = vadd.f32 %v1619, %v1564
        %v1621 = vrot.slane %v1620, 4
        %v1622 = vadd.f32 %v1620, %v1621
        %v1623 = vrot.slane %v1622, 2
        %v1624 = vadd.f32 %v1622, %v1623
        %v1625 = vrot.slane %v1624, 1
        %v1626 = vadd.f32 %v1624, %v1625
        %v1627 = vadd.f32 %v1565, %v1566
        %v1628 = vadd.f32 %v1627, %v1567
        %v1629 = vadd.f32 %v1628, %v1568
        %v1630 = vrot.slane %v1629, 4
        %v1631 = vadd.f32 %v1629, %v1630
        %v1632 = vrot.slane %v1631, 2
        %v1633 = vadd.f32 %v1631, %v1632
        %v1634 = vrot.slane %v1633, 1
        %v1635 = vadd.f32 %v1633, %v1634
        %v1636 = vadd.f32 %v1569, %v1570
        %v1637 = vadd.f32 %v1636, %v1571
        %v1638 = vadd.f32 %v1637, %v1572
        %v1639 = vrot.slane %v1638, 4
        %v1640 = vadd.f32 %v1638, %v1639
        %v1641 = vrot.slane %v1640, 2
        %v1642 = vadd.f32 %v1640, %v1641
        %v1643 = vrot.slane %v1642, 1
        %v1644 = vadd.f32 %v1642, %v1643
        %v1645 = vadd.f32 %v1581, 0.0
        %v1646 = vadd.f32 %v1590, 0.0
        %v1647 = vadd.f32 %v1599, 0.0
        %v1648 = vadd.f32 %v1608, 0.0
        %v1649 = vadd.f32 %v1617, 0.0
        %v1650 = vadd.f32 %v1626, 0.0
        %v1651 = vadd.f32 %v1635, 0.0
        %v1652 = vadd.f32 %v1644, 0.0
        %v1653 = vunpack.c.l.bf16 %v321
        %v1654 = vunpack.c.l.bf16 %v322
        %v1655 = vunpack.c.l.bf16 %v323
        %v1656 = vunpack.c.l.bf16 %v324
        %v1657 = vunpack.c.l.bf16 %v353
        %v1658 = vunpack.c.l.bf16 %v354
        %v1659 = vunpack.c.l.bf16 %v355
        %v1660 = vunpack.c.l.bf16 %v356
        %v1661 = vunpack.c.l.bf16 %v385
        %v1662 = vunpack.c.l.bf16 %v386
        %v1663 = vunpack.c.l.bf16 %v387
        %v1664 = vunpack.c.l.bf16 %v388
        %v1665 = vunpack.c.l.bf16 %v417
        %v1666 = vunpack.c.l.bf16 %v418
        %v1667 = vunpack.c.l.bf16 %v419
        %v1668 = vunpack.c.l.bf16 %v420
        %v1669 = vunpack.c.l.bf16 %v449
        %v1670 = vunpack.c.l.bf16 %v450
        %v1671 = vunpack.c.l.bf16 %v451
        %v1672 = vunpack.c.l.bf16 %v452
        %v1673 = vunpack.c.l.bf16 %v481
        %v1674 = vunpack.c.l.bf16 %v482
        %v1675 = vunpack.c.l.bf16 %v483
        %v1676 = vunpack.c.l.bf16 %v484
        %v1677 = vunpack.c.l.bf16 %v513
        %v1678 = vunpack.c.l.bf16 %v514
        %v1679 = vunpack.c.l.bf16 %v515
        %v1680 = vunpack.c.l.bf16 %v516
        %v1681 = vunpack.c.l.bf16 %v545
        %v1682 = vunpack.c.l.bf16 %v546
        %v1683 = vunpack.c.l.bf16 %v547
        %v1684 = vunpack.c.l.bf16 %v548
        %v1685 = vadd.f32 %v1653, %v1654
        %v1686 = vadd.f32 %v1685, %v1655
        %v1687 = vadd.f32 %v1686, %v1656
        %v1688 = vrot.slane %v1687, 4
        %v1689 = vadd.f32 %v1687, %v1688
        %v1690 = vrot.slane %v1689, 2
        %v1691 = vadd.f32 %v1689, %v1690
        %v1692 = vrot.slane %v1691, 1
        %v1693 = vadd.f32 %v1691, %v1692
        %v1694 = vadd.f32 %v1657, %v1658
        %v1695 = vadd.f32 %v1694, %v1659
        %v1696 = vadd.f32 %v1695, %v1660
        %v1697 = vrot.slane %v1696, 4
        %v1698 = vadd.f32 %v1696, %v1697
        %v1699 = vrot.slane %v1698, 2
        %v1700 = vadd.f32 %v1698, %v1699
        %v1701 = vrot.slane %v1700, 1
        %v1702 = vadd.f32 %v1700, %v1701
        %v1703 = vadd.f32 %v1661, %v1662
        %v1704 = vadd.f32 %v1703, %v1663
        %v1705 = vadd.f32 %v1704, %v1664
        %v1706 = vrot.slane %v1705, 4
        %v1707 = vadd.f32 %v1705, %v1706
        %v1708 = vrot.slane %v1707, 2
        %v1709 = vadd.f32 %v1707, %v1708
        %v1710 = vrot.slane %v1709, 1
        %v1711 = vadd.f32 %v1709, %v1710
        %v1712 = vadd.f32 %v1665, %v1666
        %v1713 = vadd.f32 %v1712, %v1667
        %v1714 = vadd.f32 %v1713, %v1668
        %v1715 = vrot.slane %v1714, 4
        %v1716 = vadd.f32 %v1714, %v1715
        %v1717 = vrot.slane %v1716, 2
        %v1718 = vadd.f32 %v1716, %v1717
        %v1719 = vrot.slane %v1718, 1
        %v1720 = vadd.f32 %v1718, %v1719
        %v1721 = vadd.f32 %v1669, %v1670
        %v1722 = vadd.f32 %v1721, %v1671
        %v1723 = vadd.f32 %v1722, %v1672
        %v1724 = vrot.slane %v1723, 4
        %v1725 = vadd.f32 %v1723, %v1724
        %v1726 = vrot.slane %v1725, 2
        %v1727 = vadd.f32 %v1725, %v1726
        %v1728 = vrot.slane %v1727, 1
        %v1729 = vadd.f32 %v1727, %v1728
        %v1730 = vadd.f32 %v1673, %v1674
        %v1731 = vadd.f32 %v1730, %v1675
        %v1732 = vadd.f32 %v1731, %v1676
        %v1733 = vrot.slane %v1732, 4
        %v1734 = vadd.f32 %v1732, %v1733
        %v1735 = vrot.slane %v1734, 2
        %v1736 = vadd.f32 %v1734, %v1735
        %v1737 = vrot.slane %v1736, 1
        %v1738 = vadd.f32 %v1736, %v1737
        %v1739 = vadd.f32 %v1677, %v1678
        %v1740 = vadd.f32 %v1739, %v1679
        %v1741 = vadd.f32 %v1740, %v1680
        %v1742 = vrot.slane %v1741, 4
        %v1743 = vadd.f32 %v1741, %v1742
        %v1744 = vrot.slane %v1743, 2
        %v1745 = vadd.f32 %v1743, %v1744
        %v1746 = vrot.slane %v1745, 1
        %v1747 = vadd.f32 %v1745, %v1746
        %v1748 = vadd.f32 %v1681, %v1682
        %v1749 = vadd.f32 %v1748, %v1683
        %v1750 = vadd.f32 %v1749, %v1684
        %v1751 = vrot.slane %v1750, 4
        %v1752 = vadd.f32 %v1750, %v1751
        %v1753 = vrot.slane %v1752, 2
        %v1754 = vadd.f32 %v1752, %v1753
        %v1755 = vrot.slane %v1754, 1
        %v1756 = vadd.f32 %v1754, %v1755
        %v1757 = vadd.f32 %v1645, %v1693
        %v1758 = vadd.f32 %v1646, %v1702
        %v1759 = vadd.f32 %v1647, %v1711
        %v1760 = vadd.f32 %v1648, %v1720
        %v1761 = vadd.f32 %v1649, %v1729
        %v1762 = vadd.f32 %v1650, %v1738
        %v1763 = vadd.f32 %v1651, %v1747
        %v1764 = vadd.f32 %v1652, %v1756
        %v1765 = vunpack.c.l.bf16 %v325
        %v1766 = vunpack.c.l.bf16 %v326
        %v1767 = vunpack.c.l.bf16 %v327
        %v1768 = vunpack.c.l.bf16 %v328
        %v1769 = vunpack.c.l.bf16 %v357
        %v1770 = vunpack.c.l.bf16 %v358
        %v1771 = vunpack.c.l.bf16 %v359
        %v1772 = vunpack.c.l.bf16 %v360
        %v1773 = vunpack.c.l.bf16 %v389
        %v1774 = vunpack.c.l.bf16 %v390
        %v1775 = vunpack.c.l.bf16 %v391
        %v1776 = vunpack.c.l.bf16 %v392
        %v1777 = vunpack.c.l.bf16 %v421
        %v1778 = vunpack.c.l.bf16 %v422
        %v1779 = vunpack.c.l.bf16 %v423
        %v1780 = vunpack.c.l.bf16 %v424
        %v1781 = vunpack.c.l.bf16 %v453
        %v1782 = vunpack.c.l.bf16 %v454
        %v1783 = vunpack.c.l.bf16 %v455
        %v1784 = vunpack.c.l.bf16 %v456
        %v1785 = vunpack.c.l.bf16 %v485
        %v1786 = vunpack.c.l.bf16 %v486
        %v1787 = vunpack.c.l.bf16 %v487
        %v1788 = vunpack.c.l.bf16 %v488
        %v1789 = vunpack.c.l.bf16 %v517
        %v1790 = vunpack.c.l.bf16 %v518
        %v1791 = vunpack.c.l.bf16 %v519
        %v1792 = vunpack.c.l.bf16 %v520
        %v1793 = vunpack.c.l.bf16 %v549
        %v1794 = vunpack.c.l.bf16 %v550
        %v1795 = vunpack.c.l.bf16 %v551
        %v1796 = vunpack.c.l.bf16 %v552
        %v1797 = vadd.f32 %v1765, %v1766
        %v1798 = vadd.f32 %v1797, %v1767
        %v1799 = vadd.f32 %v1798, %v1768
        %v1800 = vrot.slane %v1799, 4
        %v1801 = vadd.f32 %v1799, %v1800
        %v1802 = vrot.slane %v1801, 2
        %v1803 = vadd.f32 %v1801, %v1802
        %v1804 = vrot.slane %v1803, 1
        %v1805 = vadd.f32 %v1803, %v1804
        %v1806 = vadd.f32 %v1769, %v1770
        %v1807 = vadd.f32 %v1806, %v1771
        %v1808 = vadd.f32 %v1807, %v1772
        %v1809 = vrot.slane %v1808, 4
        %v1810 = vadd.f32 %v1808, %v1809
        %v1811 = vrot.slane %v1810, 2
        %v1812 = vadd.f32 %v1810, %v1811
        %v1813 = vrot.slane %v1812, 1
        %v1814 = vadd.f32 %v1812, %v1813
        %v1815 = vadd.f32 %v1773, %v1774
        %v1816 = vadd.f32 %v1815, %v1775
        %v1817 = vadd.f32 %v1816, %v1776
        %v1818 = vrot.slane %v1817, 4
        %v1819 = vadd.f32 %v1817, %v1818
        %v1820 = vrot.slane %v1819, 2
        %v1821 = vadd.f32 %v1819, %v1820
        %v1822 = vrot.slane %v1821, 1
        %v1823 = vadd.f32 %v1821, %v1822
        %v1824 = vadd.f32 %v1777, %v1778
        %v1825 = vadd.f32 %v1824, %v1779
        %v1826 = vadd.f32 %v1825, %v1780
        %v1827 = vrot.slane %v1826, 4
        %v1828 = vadd.f32 %v1826, %v1827
        %v1829 = vrot.slane %v1828, 2
        %v1830 = vadd.f32 %v1828, %v1829
        %v1831 = vrot.slane %v1830, 1
        %v1832 = vadd.f32 %v1830, %v1831
        %v1833 = vadd.f32 %v1781, %v1782
        %v1834 = vadd.f32 %v1833, %v1783
        %v1835 = vadd.f32 %v1834, %v1784
        %v1836 = vrot.slane %v1835, 4
        %v1837 = vadd.f32 %v1835, %v1836
        %v1838 = vrot.slane %v1837, 2
        %v1839 = vadd.f32 %v1837, %v1838
        %v1840 = vrot.slane %v1839, 1
        %v1841 = vadd.f32 %v1839, %v1840
        %v1842 = vadd.f32 %v1785, %v1786
        %v1843 = vadd.f32 %v1842, %v1787
        %v1844 = vadd.f32 %v1843, %v1788
        %v1845 = vrot.slane %v1844, 4
        %v1846 = vadd.f32 %v1844, %v1845
        %v1847 = vrot.slane %v1846, 2
        %v1848 = vadd.f32 %v1846, %v1847
        %v1849 = vrot.slane %v1848, 1
        %v1850 = vadd.f32 %v1848, %v1849
        %v1851 = vadd.f32 %v1789, %v1790
        %v1852 = vadd.f32 %v1851, %v1791
        %v1853 = vadd.f32 %v1852, %v1792
        %v1854 = vrot.slane %v1853, 4
        %v1855 = vadd.f32 %v1853, %v1854
        %v1856 = vrot.slane %v1855, 2
        %v1857 = vadd.f32 %v1855, %v1856
        %v1858 = vrot.slane %v1857, 1
        %v1859 = vadd.f32 %v1857, %v1858
        %v1860 = vadd.f32 %v1793, %v1794
        %v1861 = vadd.f32 %v1860, %v1795
        %v1862 = vadd.f32 %v1861, %v1796
        %v1863 = vrot.slane %v1862, 4
        %v1864 = vadd.f32 %v1862, %v1863
        %v1865 = vrot.slane %v1864, 2
        %v1866 = vadd.f32 %v1864, %v1865
        %v1867 = vrot.slane %v1866, 1
        %v1868 = vadd.f32 %v1866, %v1867
        %v1869 = vadd.f32 %v1757, %v1805
        %v1870 = vadd.f32 %v1758, %v1814
        %v1871 = vadd.f32 %v1759, %v1823
        %v1872 = vadd.f32 %v1760, %v1832
        %v1873 = vadd.f32 %v1761, %v1841
        %v1874 = vadd.f32 %v1762, %v1850
        %v1875 = vadd.f32 %v1763, %v1859
        %v1876 = vadd.f32 %v1764, %v1868
        %v1877 = vunpack.c.l.bf16 %v329
        %v1878 = vunpack.c.l.bf16 %v330
        %v1879 = vunpack.c.l.bf16 %v331
        %v1880 = vunpack.c.l.bf16 %v332
        %v1881 = vunpack.c.l.bf16 %v361
        %v1882 = vunpack.c.l.bf16 %v362
        %v1883 = vunpack.c.l.bf16 %v363
        %v1884 = vunpack.c.l.bf16 %v364
        %v1885 = vunpack.c.l.bf16 %v393
        %v1886 = vunpack.c.l.bf16 %v394
        %v1887 = vunpack.c.l.bf16 %v395
        %v1888 = vunpack.c.l.bf16 %v396
        %v1889 = vunpack.c.l.bf16 %v425
        %v1890 = vunpack.c.l.bf16 %v426
        %v1891 = vunpack.c.l.bf16 %v427
        %v1892 = vunpack.c.l.bf16 %v428
        %v1893 = vunpack.c.l.bf16 %v457
        %v1894 = vunpack.c.l.bf16 %v458
        %v1895 = vunpack.c.l.bf16 %v459
        %v1896 = vunpack.c.l.bf16 %v460
        %v1897 = vunpack.c.l.bf16 %v489
        %v1898 = vunpack.c.l.bf16 %v490
        %v1899 = vunpack.c.l.bf16 %v491
        %v1900 = vunpack.c.l.bf16 %v492
        %v1901 = vunpack.c.l.bf16 %v521
        %v1902 = vunpack.c.l.bf16 %v522
        %v1903 = vunpack.c.l.bf16 %v523
        %v1904 = vunpack.c.l.bf16 %v524
        %v1905 = vunpack.c.l.bf16 %v553
        %v1906 = vunpack.c.l.bf16 %v554
        %v1907 = vunpack.c.l.bf16 %v555
        %v1908 = vunpack.c.l.bf16 %v556
        %v1909 = vadd.f32 %v1877, %v1878
        %v1910 = vadd.f32 %v1909, %v1879
        %v1911 = vadd.f32 %v1910, %v1880
        %v1912 = vrot.slane %v1911, 4
        %v1913 = vadd.f32 %v1911, %v1912
        %v1914 = vrot.slane %v1913, 2
        %v1915 = vadd.f32 %v1913, %v1914
        %v1916 = vrot.slane %v1915, 1
        %v1917 = vadd.f32 %v1915, %v1916
        %v1918 = vadd.f32 %v1881, %v1882
        %v1919 = vadd.f32 %v1918, %v1883
        %v1920 = vadd.f32 %v1919, %v1884
        %v1921 = vrot.slane %v1920, 4
        %v1922 = vadd.f32 %v1920, %v1921
        %v1923 = vrot.slane %v1922, 2
        %v1924 = vadd.f32 %v1922, %v1923
        %v1925 = vrot.slane %v1924, 1
        %v1926 = vadd.f32 %v1924, %v1925
        %v1927 = vadd.f32 %v1885, %v1886
        %v1928 = vadd.f32 %v1927, %v1887
        %v1929 = vadd.f32 %v1928, %v1888
        %v1930 = vrot.slane %v1929, 4
        %v1931 = vadd.f32 %v1929, %v1930
        %v1932 = vrot.slane %v1931, 2
        %v1933 = vadd.f32 %v1931, %v1932
        %v1934 = vrot.slane %v1933, 1
        %v1935 = vadd.f32 %v1933, %v1934
        %v1936 = vadd.f32 %v1889, %v1890
        %v1937 = vadd.f32 %v1936, %v1891
        %v1938 = vadd.f32 %v1937, %v1892
        %v1939 = vrot.slane %v1938, 4
        %v1940 = vadd.f32 %v1938, %v1939
        %v1941 = vrot.slane %v1940, 2
        %v1942 = vadd.f32 %v1940, %v1941
        %v1943 = vrot.slane %v1942, 1
        %v1944 = vadd.f32 %v1942, %v1943
        %v1945 = vadd.f32 %v1893, %v1894
        %v1946 = vadd.f32 %v1945, %v1895
        %v1947 = vadd.f32 %v1946, %v1896
        %v1948 = vrot.slane %v1947, 4
        %v1949 = vadd.f32 %v1947, %v1948
        %v1950 = vrot.slane %v1949, 2
        %v1951 = vadd.f32 %v1949, %v1950
        %v1952 = vrot.slane %v1951, 1
        %v1953 = vadd.f32 %v1951, %v1952
        %v1954 = vadd.f32 %v1897, %v1898
        %v1955 = vadd.f32 %v1954, %v1899
        %v1956 = vadd.f32 %v1955, %v1900
        %v1957 = vrot.slane %v1956, 4
        %v1958 = vadd.f32 %v1956, %v1957
        %v1959 = vrot.slane %v1958, 2
        %v1960 = vadd.f32 %v1958, %v1959
        %v1961 = vrot.slane %v1960, 1
        %v1962 = vadd.f32 %v1960, %v1961
        %v1963 = vadd.f32 %v1901, %v1902
        %v1964 = vadd.f32 %v1963, %v1903
        %v1965 = vadd.f32 %v1964, %v1904
        %v1966 = vrot.slane %v1965, 4
        %v1967 = vadd.f32 %v1965, %v1966
        %v1968 = vrot.slane %v1967, 2
        %v1969 = vadd.f32 %v1967, %v1968
        %v1970 = vrot.slane %v1969, 1
        %v1971 = vadd.f32 %v1969, %v1970
        %v1972 = vadd.f32 %v1905, %v1906
        %v1973 = vadd.f32 %v1972, %v1907
        %v1974 = vadd.f32 %v1973, %v1908
        %v1975 = vrot.slane %v1974, 4
        %v1976 = vadd.f32 %v1974, %v1975
        %v1977 = vrot.slane %v1976, 2
        %v1978 = vadd.f32 %v1976, %v1977
        %v1979 = vrot.slane %v1978, 1
        %v1980 = vadd.f32 %v1978, %v1979
        %v1981 = vadd.f32 %v1869, %v1917
        %v1982 = vadd.f32 %v1870, %v1926
        %v1983 = vadd.f32 %v1871, %v1935
        %v1984 = vadd.f32 %v1872, %v1944
        %v1985 = vadd.f32 %v1873, %v1953
        %v1986 = vadd.f32 %v1874, %v1962
        %v1987 = vadd.f32 %v1875, %v1971
        %v1988 = vadd.f32 %v1876, %v1980
        %v1989 = vunpack.c.l.bf16 %v333
        %v1990 = vunpack.c.l.bf16 %v334
        %v1991 = vunpack.c.l.bf16 %v335
        %v1992 = vunpack.c.l.bf16 %v336
        %v1993 = vunpack.c.l.bf16 %v365
        %v1994 = vunpack.c.l.bf16 %v366
        %v1995 = vunpack.c.l.bf16 %v367
        %v1996 = vunpack.c.l.bf16 %v368
        %v1997 = vunpack.c.l.bf16 %v397
        %v1998 = vunpack.c.l.bf16 %v398
        %v1999 = vunpack.c.l.bf16 %v399
        %v2000 = vunpack.c.l.bf16 %v400
        %v2001 = vunpack.c.l.bf16 %v429
        %v2002 = vunpack.c.l.bf16 %v430
        %v2003 = vunpack.c.l.bf16 %v431
        %v2004 = vunpack.c.l.bf16 %v432
        %v2005 = vunpack.c.l.bf16 %v461
        %v2006 = vunpack.c.l.bf16 %v462
        %v2007 = vunpack.c.l.bf16 %v463
        %v2008 = vunpack.c.l.bf16 %v464
        %v2009 = vunpack.c.l.bf16 %v493
        %v2010 = vunpack.c.l.bf16 %v494
        %v2011 = vunpack.c.l.bf16 %v495
        %v2012 = vunpack.c.l.bf16 %v496
        %v2013 = vunpack.c.l.bf16 %v525
        %v2014 = vunpack.c.l.bf16 %v526
        %v2015 = vunpack.c.l.bf16 %v527
        %v2016 = vunpack.c.l.bf16 %v528
        %v2017 = vunpack.c.l.bf16 %v557
        %v2018 = vunpack.c.l.bf16 %v558
        %v2019 = vunpack.c.l.bf16 %v559
        %v2020 = vunpack.c.l.bf16 %v560
        %v2021 = vadd.f32 %v1989, %v1990
        %v2022 = vadd.f32 %v2021, %v1991
        %v2023 = vadd.f32 %v2022, %v1992
        %v2024 = vrot.slane %v2023, 4
        %v2025 = vadd.f32 %v2023, %v2024
        %v2026 = vrot.slane %v2025, 2
        %v2027 = vadd.f32 %v2025, %v2026
        %v2028 = vrot.slane %v2027, 1
        %v2029 = vadd.f32 %v2027, %v2028
        %v2030 = vadd.f32 %v1993, %v1994
        %v2031 = vadd.f32 %v2030, %v1995
        %v2032 = vadd.f32 %v2031, %v1996
        %v2033 = vrot.slane %v2032, 4
        %v2034 = vadd.f32 %v2032, %v2033
        %v2035 = vrot.slane %v2034, 2
        %v2036 = vadd.f32 %v2034, %v2035
        %v2037 = vrot.slane %v2036, 1
        %v2038 = vadd.f32 %v2036, %v2037
        %v2039 = vadd.f32 %v1997, %v1998
        %v2040 = vadd.f32 %v2039, %v1999
        %v2041 = vadd.f32 %v2040, %v2000
        %v2042 = vrot.slane %v2041, 4
        %v2043 = vadd.f32 %v2041, %v2042
        %v2044 = vrot.slane %v2043, 2
        %v2045 = vadd.f32 %v2043, %v2044
        %v2046 = vrot.slane %v2045, 1
        %v2047 = vadd.f32 %v2045, %v2046
        %v2048 = vadd.f32 %v2001, %v2002
        %v2049 = vadd.f32 %v2048, %v2003
        %v2050 = vadd.f32 %v2049, %v2004
        %v2051 = vrot.slane %v2050, 4
        %v2052 = vadd.f32 %v2050, %v2051
        %v2053 = vrot.slane %v2052, 2
        %v2054 = vadd.f32 %v2052, %v2053
        %v2055 = vrot.slane %v2054, 1
        %v2056 = vadd.f32 %v2054, %v2055
        %v2057 = vadd.f32 %v2005, %v2006
        %v2058 = vadd.f32 %v2057, %v2007
        %v2059 = vadd.f32 %v2058, %v2008
        %v2060 = vrot.slane %v2059, 4
        %v2061 = vadd.f32 %v2059, %v2060
        %v2062 = vrot.slane %v2061, 2
        %v2063 = vadd.f32 %v2061, %v2062
        %v2064 = vrot.slane %v2063, 1
        %v2065 = vadd.f32 %v2063, %v2064
        %v2066 = vadd.f32 %v2009, %v2010
        %v2067 = vadd.f32 %v2066, %v2011
        %v2068 = vadd.f32 %v2067, %v2012
        %v2069 = vrot.slane %v2068, 4
        %v2070 = vadd.f32 %v2068, %v2069
        %v2071 = vrot.slane %v2070, 2
        %v2072 = vadd.f32 %v2070, %v2071
        %v2073 = vrot.slane %v2072, 1
        %v2074 = vadd.f32 %v2072, %v2073
        %v2075 = vadd.f32 %v2013, %v2014
        %v2076 = vadd.f32 %v2075, %v2015
        %v2077 = vadd.f32 %v2076, %v2016
        %v2078 = vrot.slane %v2077, 4
        %v2079 = vadd.f32 %v2077, %v2078
        %v2080 = vrot.slane %v2079, 2
        %v2081 = vadd.f32 %v2079, %v2080
        %v2082 = vrot.slane %v2081, 1
        %v2083 = vadd.f32 %v2081, %v2082
        %v2084 = vadd.f32 %v2017, %v2018
        %v2085 = vadd.f32 %v2084, %v2019
        %v2086 = vadd.f32 %v2085, %v2020
        %v2087 = vrot.slane %v2086, 4
        %v2088 = vadd.f32 %v2086, %v2087
        %v2089 = vrot.slane %v2088, 2
        %v2090 = vadd.f32 %v2088, %v2089
        %v2091 = vrot.slane %v2090, 1
        %v2092 = vadd.f32 %v2090, %v2091
        %v2093 = vadd.f32 %v1981, %v2029
        %v2094 = vadd.f32 %v1982, %v2038
        %v2095 = vadd.f32 %v1983, %v2047
        %v2096 = vadd.f32 %v1984, %v2056
        %v2097 = vadd.f32 %v1985, %v2065
        %v2098 = vadd.f32 %v1986, %v2074
        %v2099 = vadd.f32 %v1987, %v2083
        %v2100 = vadd.f32 %v1988, %v2092
        %v2101 = vunpack.c.l.bf16 %v337
        %v2102 = vunpack.c.l.bf16 %v338
        %v2103 = vunpack.c.l.bf16 %v339
        %v2104 = vunpack.c.l.bf16 %v340
        %v2105 = vunpack.c.l.bf16 %v369
        %v2106 = vunpack.c.l.bf16 %v370
        %v2107 = vunpack.c.l.bf16 %v371
        %v2108 = vunpack.c.l.bf16 %v372
        %v2109 = vunpack.c.l.bf16 %v401
        %v2110 = vunpack.c.l.bf16 %v402
        %v2111 = vunpack.c.l.bf16 %v403
        %v2112 = vunpack.c.l.bf16 %v404
        %v2113 = vunpack.c.l.bf16 %v433
        %v2114 = vunpack.c.l.bf16 %v434
        %v2115 = vunpack.c.l.bf16 %v435
        %v2116 = vunpack.c.l.bf16 %v436
        %v2117 = vunpack.c.l.bf16 %v465
        %v2118 = vunpack.c.l.bf16 %v466
        %v2119 = vunpack.c.l.bf16 %v467
        %v2120 = vunpack.c.l.bf16 %v468
        %v2121 = vunpack.c.l.bf16 %v497
        %v2122 = vunpack.c.l.bf16 %v498
        %v2123 = vunpack.c.l.bf16 %v499
        %v2124 = vunpack.c.l.bf16 %v500
        %v2125 = vunpack.c.l.bf16 %v529
        %v2126 = vunpack.c.l.bf16 %v530
        %v2127 = vunpack.c.l.bf16 %v531
        %v2128 = vunpack.c.l.bf16 %v532
        %v2129 = vunpack.c.l.bf16 %v561
        %v2130 = vunpack.c.l.bf16 %v562
        %v2131 = vunpack.c.l.bf16 %v563
        %v2132 = vunpack.c.l.bf16 %v564
        %v2133 = vadd.f32 %v2101, %v2102
        %v2134 = vadd.f32 %v2133, %v2103
        %v2135 = vadd.f32 %v2134, %v2104
        %v2136 = vrot.slane %v2135, 4
        %v2137 = vadd.f32 %v2135, %v2136
        %v2138 = vrot.slane %v2137, 2
        %v2139 = vadd.f32 %v2137, %v2138
        %v2140 = vrot.slane %v2139, 1
        %v2141 = vadd.f32 %v2139, %v2140
        %v2142 = vadd.f32 %v2105, %v2106
        %v2143 = vadd.f32 %v2142, %v2107
        %v2144 = vadd.f32 %v2143, %v2108
        %v2145 = vrot.slane %v2144, 4
        %v2146 = vadd.f32 %v2144, %v2145
        %v2147 = vrot.slane %v2146, 2
        %v2148 = vadd.f32 %v2146, %v2147
        %v2149 = vrot.slane %v2148, 1
        %v2150 = vadd.f32 %v2148, %v2149
        %v2151 = vadd.f32 %v2109, %v2110
        %v2152 = vadd.f32 %v2151, %v2111
        %v2153 = vadd.f32 %v2152, %v2112
        %v2154 = vrot.slane %v2153, 4
        %v2155 = vadd.f32 %v2153, %v2154
        %v2156 = vrot.slane %v2155, 2
        %v2157 = vadd.f32 %v2155, %v2156
        %v2158 = vrot.slane %v2157, 1
        %v2159 = vadd.f32 %v2157, %v2158
        %v2160 = vadd.f32 %v2113, %v2114
        %v2161 = vadd.f32 %v2160, %v2115
        %v2162 = vadd.f32 %v2161, %v2116
        %v2163 = vrot.slane %v2162, 4
        %v2164 = vadd.f32 %v2162, %v2163
        %v2165 = vrot.slane %v2164, 2
        %v2166 = vadd.f32 %v2164, %v2165
        %v2167 = vrot.slane %v2166, 1
        %v2168 = vadd.f32 %v2166, %v2167
        %v2169 = vadd.f32 %v2117, %v2118
        %v2170 = vadd.f32 %v2169, %v2119
        %v2171 = vadd.f32 %v2170, %v2120
        %v2172 = vrot.slane %v2171, 4
        %v2173 = vadd.f32 %v2171, %v2172
        %v2174 = vrot.slane %v2173, 2
        %v2175 = vadd.f32 %v2173, %v2174
        %v2176 = vrot.slane %v2175, 1
        %v2177 = vadd.f32 %v2175, %v2176
        %v2178 = vadd.f32 %v2121, %v2122
        %v2179 = vadd.f32 %v2178, %v2123
        %v2180 = vadd.f32 %v2179, %v2124
        %v2181 = vrot.slane %v2180, 4
        %v2182 = vadd.f32 %v2180, %v2181
        %v2183 = vrot.slane %v2182, 2
        %v2184 = vadd.f32 %v2182, %v2183
        %v2185 = vrot.slane %v2184, 1
        %v2186 = vadd.f32 %v2184, %v2185
        %v2187 = vadd.f32 %v2125, %v2126
        %v2188 = vadd.f32 %v2187, %v2127
        %v2189 = vadd.f32 %v2188, %v2128
        %v2190 = vrot.slane %v2189, 4
        %v2191 = vadd.f32 %v2189, %v2190
        %v2192 = vrot.slane %v2191, 2
        %v2193 = vadd.f32 %v2191, %v2192
        %v2194 = vrot.slane %v2193, 1
        %v2195 = vadd.f32 %v2193, %v2194
        %v2196 = vadd.f32 %v2129, %v2130
        %v2197 = vadd.f32 %v2196, %v2131
        %v2198 = vadd.f32 %v2197, %v2132
        %v2199 = vrot.slane %v2198, 4
        %v2200 = vadd.f32 %v2198, %v2199
        %v2201 = vrot.slane %v2200, 2
        %v2202 = vadd.f32 %v2200, %v2201
        %v2203 = vrot.slane %v2202, 1
        %v2204 = vadd.f32 %v2202, %v2203
        %v2205 = vadd.f32 %v2093, %v2141
        %v2206 = vadd.f32 %v2094, %v2150
        %v2207 = vadd.f32 %v2095, %v2159
        %v2208 = vadd.f32 %v2096, %v2168
        %v2209 = vadd.f32 %v2097, %v2177
        %v2210 = vadd.f32 %v2098, %v2186
        %v2211 = vadd.f32 %v2099, %v2195
        %v2212 = vadd.f32 %v2100, %v2204
        %v2213 = vunpack.c.l.bf16 %v341
        %v2214 = vunpack.c.l.bf16 %v342
        %v2215 = vunpack.c.l.bf16 %v343
        %v2216 = vunpack.c.l.bf16 %v344
        %v2217 = vunpack.c.l.bf16 %v373
        %v2218 = vunpack.c.l.bf16 %v374
        %v2219 = vunpack.c.l.bf16 %v375
        %v2220 = vunpack.c.l.bf16 %v376
        %v2221 = vunpack.c.l.bf16 %v405
        %v2222 = vunpack.c.l.bf16 %v406
        %v2223 = vunpack.c.l.bf16 %v407
        %v2224 = vunpack.c.l.bf16 %v408
        %v2225 = vunpack.c.l.bf16 %v437
        %v2226 = vunpack.c.l.bf16 %v438
        %v2227 = vunpack.c.l.bf16 %v439
        %v2228 = vunpack.c.l.bf16 %v440
        %v2229 = vunpack.c.l.bf16 %v469
        %v2230 = vunpack.c.l.bf16 %v470
        %v2231 = vunpack.c.l.bf16 %v471
        %v2232 = vunpack.c.l.bf16 %v472
        %v2233 = vunpack.c.l.bf16 %v501
        %v2234 = vunpack.c.l.bf16 %v502
        %v2235 = vunpack.c.l.bf16 %v503
        %v2236 = vunpack.c.l.bf16 %v504
        %v2237 = vunpack.c.l.bf16 %v533
        %v2238 = vunpack.c.l.bf16 %v534
        %v2239 = vunpack.c.l.bf16 %v535
        %v2240 = vunpack.c.l.bf16 %v536
        %v2241 = vunpack.c.l.bf16 %v565
        %v2242 = vunpack.c.l.bf16 %v566
        %v2243 = vunpack.c.l.bf16 %v567
        %v2244 = vunpack.c.l.bf16 %v568
        %v2245 = vadd.f32 %v2213, %v2214
        %v2246 = vadd.f32 %v2245, %v2215
        %v2247 = vadd.f32 %v2246, %v2216
        %v2248 = vrot.slane %v2247, 4
        %v2249 = vadd.f32 %v2247, %v2248
        %v2250 = vrot.slane %v2249, 2
        %v2251 = vadd.f32 %v2249, %v2250
        %v2252 = vrot.slane %v2251, 1
        %v2253 = vadd.f32 %v2251, %v2252
        %v2254 = vadd.f32 %v2217, %v2218
        %v2255 = vadd.f32 %v2254, %v2219
        %v2256 = vadd.f32 %v2255, %v2220
        %v2257 = vrot.slane %v2256, 4
        %v2258 = vadd.f32 %v2256, %v2257
        %v2259 = vrot.slane %v2258, 2
        %v2260 = vadd.f32 %v2258, %v2259
        %v2261 = vrot.slane %v2260, 1
        %v2262 = vadd.f32 %v2260, %v2261
        %v2263 = vadd.f32 %v2221, %v2222
        %v2264 = vadd.f32 %v2263, %v2223
        %v2265 = vadd.f32 %v2264, %v2224
        %v2266 = vrot.slane %v2265, 4
        %v2267 = vadd.f32 %v2265, %v2266
        %v2268 = vrot.slane %v2267, 2
        %v2269 = vadd.f32 %v2267, %v2268
        %v2270 = vrot.slane %v2269, 1
        %v2271 = vadd.f32 %v2269, %v2270
        %v2272 = vadd.f32 %v2225, %v2226
        %v2273 = vadd.f32 %v2272, %v2227
        %v2274 = vadd.f32 %v2273, %v2228
        %v2275 = vrot.slane %v2274, 4
        %v2276 = vadd.f32 %v2274, %v2275
        %v2277 = vrot.slane %v2276, 2
        %v2278 = vadd.f32 %v2276, %v2277
        %v2279 = vrot.slane %v2278, 1
        %v2280 = vadd.f32 %v2278, %v2279
        %v2281 = vadd.f32 %v2229, %v2230
        %v2282 = vadd.f32 %v2281, %v2231
        %v2283 = vadd.f32 %v2282, %v2232
        %v2284 = vrot.slane %v2283, 4
        %v2285 = vadd.f32 %v2283, %v2284
        %v2286 = vrot.slane %v2285, 2
        %v2287 = vadd.f32 %v2285, %v2286
        %v2288 = vrot.slane %v2287, 1
        %v2289 = vadd.f32 %v2287, %v2288
        %v2290 = vadd.f32 %v2233, %v2234
        %v2291 = vadd.f32 %v2290, %v2235
        %v2292 = vadd.f32 %v2291, %v2236
        %v2293 = vrot.slane %v2292, 4
        %v2294 = vadd.f32 %v2292, %v2293
        %v2295 = vrot.slane %v2294, 2
        %v2296 = vadd.f32 %v2294, %v2295
        %v2297 = vrot.slane %v2296, 1
        %v2298 = vadd.f32 %v2296, %v2297
        %v2299 = vadd.f32 %v2237, %v2238
        %v2300 = vadd.f32 %v2299, %v2239
        %v2301 = vadd.f32 %v2300, %v2240
        %v2302 = vrot.slane %v2301, 4
        %v2303 = vadd.f32 %v2301, %v2302
        %v2304 = vrot.slane %v2303, 2
        %v2305 = vadd.f32 %v2303, %v2304
        %v2306 = vrot.slane %v2305, 1
        %v2307 = vadd.f32 %v2305, %v2306
        %v2308 = vadd.f32 %v2241, %v2242
        %v2309 = vadd.f32 %v2308, %v2243
        %v2310 = vadd.f32 %v2309, %v2244
        %v2311 = vrot.slane %v2310, 4
        %v2312 = vadd.f32 %v2310, %v2311
        %v2313 = vrot.slane %v2312, 2
        %v2314 = vadd.f32 %v2312, %v2313
        %v2315 = vrot.slane %v2314, 1
        %v2316 = vadd.f32 %v2314, %v2315
        %v2317 = vadd.f32 %v2205, %v2253
        %v2318 = vadd.f32 %v2206, %v2262
        %v2319 = vadd.f32 %v2207, %v2271
        %v2320 = vadd.f32 %v2208, %v2280
        %v2321 = vadd.f32 %v2209, %v2289
        %v2322 = vadd.f32 %v2210, %v2298
        %v2323 = vadd.f32 %v2211, %v2307
        %v2324 = vadd.f32 %v2212, %v2316
        %v2325 = vunpack.c.l.bf16 %v345
        %v2326 = vunpack.c.l.bf16 %v346
        %v2327 = vunpack.c.l.bf16 %v347
        %v2328 = vunpack.c.l.bf16 %v348
        %v2329 = vunpack.c.l.bf16 %v377
        %v2330 = vunpack.c.l.bf16 %v378
        %v2331 = vunpack.c.l.bf16 %v379
        %v2332 = vunpack.c.l.bf16 %v380
        %v2333 = vunpack.c.l.bf16 %v409
        %v2334 = vunpack.c.l.bf16 %v410
        %v2335 = vunpack.c.l.bf16 %v411
        %v2336 = vunpack.c.l.bf16 %v412
        %v2337 = vunpack.c.l.bf16 %v441
        %v2338 = vunpack.c.l.bf16 %v442
        %v2339 = vunpack.c.l.bf16 %v443
        %v2340 = vunpack.c.l.bf16 %v444
        %v2341 = vunpack.c.l.bf16 %v473
        %v2342 = vunpack.c.l.bf16 %v474
        %v2343 = vunpack.c.l.bf16 %v475
        %v2344 = vunpack.c.l.bf16 %v476
        %v2345 = vunpack.c.l.bf16 %v505
        %v2346 = vunpack.c.l.bf16 %v506
        %v2347 = vunpack.c.l.bf16 %v507
        %v2348 = vunpack.c.l.bf16 %v508
        %v2349 = vunpack.c.l.bf16 %v537
        %v2350 = vunpack.c.l.bf16 %v538
        %v2351 = vunpack.c.l.bf16 %v539
        %v2352 = vunpack.c.l.bf16 %v540
        %v2353 = vunpack.c.l.bf16 %v569
        %v2354 = vunpack.c.l.bf16 %v570
        %v2355 = vunpack.c.l.bf16 %v571
        %v2356 = vunpack.c.l.bf16 %v572
        %v2357 = vadd.f32 %v2325, %v2326
        %v2358 = vadd.f32 %v2357, %v2327
        %v2359 = vadd.f32 %v2358, %v2328
        %v2360 = vrot.slane %v2359, 4
        %v2361 = vadd.f32 %v2359, %v2360
        %v2362 = vrot.slane %v2361, 2
        %v2363 = vadd.f32 %v2361, %v2362
        %v2364 = vrot.slane %v2363, 1
        %v2365 = vadd.f32 %v2363, %v2364
        %v2366 = vadd.f32 %v2329, %v2330
        %v2367 = vadd.f32 %v2366, %v2331
        %v2368 = vadd.f32 %v2367, %v2332
        %v2369 = vrot.slane %v2368, 4
        %v2370 = vadd.f32 %v2368, %v2369
        %v2371 = vrot.slane %v2370, 2
        %v2372 = vadd.f32 %v2370, %v2371
        %v2373 = vrot.slane %v2372, 1
        %v2374 = vadd.f32 %v2372, %v2373
        %v2375 = vadd.f32 %v2333, %v2334
        %v2376 = vadd.f32 %v2375, %v2335
        %v2377 = vadd.f32 %v2376, %v2336
        %v2378 = vrot.slane %v2377, 4
        %v2379 = vadd.f32 %v2377, %v2378
        %v2380 = vrot.slane %v2379, 2
        %v2381 = vadd.f32 %v2379, %v2380
        %v2382 = vrot.slane %v2381, 1
        %v2383 = vadd.f32 %v2381, %v2382
        %v2384 = vadd.f32 %v2337, %v2338
        %v2385 = vadd.f32 %v2384, %v2339
        %v2386 = vadd.f32 %v2385, %v2340
        %v2387 = vrot.slane %v2386, 4
        %v2388 = vadd.f32 %v2386, %v2387
        %v2389 = vrot.slane %v2388, 2
        %v2390 = vadd.f32 %v2388, %v2389
        %v2391 = vrot.slane %v2390, 1
        %v2392 = vadd.f32 %v2390, %v2391
        %v2393 = vadd.f32 %v2341, %v2342
        %v2394 = vadd.f32 %v2393, %v2343
        %v2395 = vadd.f32 %v2394, %v2344
        %v2396 = vrot.slane %v2395, 4
        %v2397 = vadd.f32 %v2395, %v2396
        %v2398 = vrot.slane %v2397, 2
        %v2399 = vadd.f32 %v2397, %v2398
        %v2400 = vrot.slane %v2399, 1
        %v2401 = vadd.f32 %v2399, %v2400
        %v2402 = vadd.f32 %v2345, %v2346
        %v2403 = vadd.f32 %v2402, %v2347
        %v2404 = vadd.f32 %v2403, %v2348
        %v2405 = vrot.slane %v2404, 4
        %v2406 = vadd.f32 %v2404, %v2405
        %v2407 = vrot.slane %v2406, 2
        %v2408 = vadd.f32 %v2406, %v2407
        %v2409 = vrot.slane %v2408, 1
        %v2410 = vadd.f32 %v2408, %v2409
        %v2411 = vadd.f32 %v2349, %v2350
        %v2412 = vadd.f32 %v2411, %v2351
        %v2413 = vadd.f32 %v2412, %v2352
        %v2414 = vrot.slane %v2413, 4
        %v2415 = vadd.f32 %v2413, %v2414
        %v2416 = vrot.slane %v2415, 2
        %v2417 = vadd.f32 %v2415, %v2416
        %v2418 = vrot.slane %v2417, 1
        %v2419 = vadd.f32 %v2417, %v2418
        %v2420 = vadd.f32 %v2353, %v2354
        %v2421 = vadd.f32 %v2420, %v2355
        %v2422 = vadd.f32 %v2421, %v2356
        %v2423 = vrot.slane %v2422, 4
        %v2424 = vadd.f32 %v2422, %v2423
        %v2425 = vrot.slane %v2424, 2
        %v2426 = vadd.f32 %v2424, %v2425
        %v2427 = vrot.slane %v2426, 1
        %v2428 = vadd.f32 %v2426, %v2427
        %v2429 = vadd.f32 %v2317, %v2365
        %v2430 = vadd.f32 %v2318, %v2374
        %v2431 = vadd.f32 %v2319, %v2383
        %v2432 = vadd.f32 %v2320, %v2392
        %v2433 = vadd.f32 %v2321, %v2401
        %v2434 = vadd.f32 %v2322, %v2410
        %v2435 = vadd.f32 %v2323, %v2419
        %v2436 = vadd.f32 %v2324, %v2428
        %v2437 = vpack.c.bf16 %v2429, %v2429
        %v2438 = vpack.c.bf16 %v2430, %v2430
        %v2439 = vpack.c.bf16 %v2431, %v2431
        %v2440 = vpack.c.bf16 %v2432, %v2432
        %v2441 = vpack.c.bf16 %v2433, %v2433
        %v2442 = vpack.c.bf16 %v2434, %v2434
        %v2443 = vpack.c.bf16 %v2435, %v2435
        %v2444 = vpack.c.bf16 %v2436, %v2436
        %v2445 = vld [vmem:[#allocation5] sm:$0xf]
        %v2446 = vld [vmem:[#allocation5 + $0x4] sm:$0xf]
        %v2447 = vld [vmem:[#allocation5 + $0x8] sm:$0xf]
        %v2448 = vld [vmem:[#allocation5 + $0xc] sm:$0xf]
        %v2449 = vld [vmem:[#allocation5 + $0x10] sm:$0xf]
        %v2450 = vld [vmem:[#allocation5 + $0x14] sm:$0xf]
        %v2451 = vld [vmem:[#allocation5 + $0x18] sm:$0xf]
        %v2452 = vld [vmem:[#allocation5 + $0x1c] sm:$0xf]
        %v2453 = vld [vmem:[#allocation5 + $0x20] sm:$0xf]
        %v2454 = vld [vmem:[#allocation5 + $0x24] sm:$0xf]
        %v2455 = vld [vmem:[#allocation5 + $0x28] sm:$0xf]
        %v2456 = vld [vmem:[#allocation5 + $0x2c] sm:$0xf]
        %v2457 = vld [vmem:[#allocation5 + $0x30] sm:$0xf]
        %v2458 = vld [vmem:[#allocation5 + $0x34] sm:$0xf]
        %v2459 = vld [vmem:[#allocation5 + $0x38] sm:$0xf]
        %v2460 = vld [vmem:[#allocation5 + $0x3c] sm:$0xf]
        %v2461 = vld [vmem:[#allocation7] sm:$0xf]
        %v2462 = vld [vmem:[#allocation7 + $0x4] sm:$0xf]
        %v2463 = vld [vmem:[#allocation7 + $0x8] sm:$0xf]
        %v2464 = vld [vmem:[#allocation7 + $0xc] sm:$0xf]
        %v2465 = vld [vmem:[#allocation7 + $0x10] sm:$0xf]
        %v2466 = vld [vmem:[#allocation7 + $0x14] sm:$0xf]
        %v2467 = vld [vmem:[#allocation7 + $0x18] sm:$0xf]
        %v2468 = vld [vmem:[#allocation7 + $0x1c] sm:$0xf]
        %v2469 = vld [vmem:[#allocation7 + $0x20] sm:$0xf]
        %v2470 = vld [vmem:[#allocation7 + $0x24] sm:$0xf]
        %v2471 = vld [vmem:[#allocation7 + $0x28] sm:$0xf]
        %v2472 = vld [vmem:[#allocation7 + $0x2c] sm:$0xf]
        %v2473 = vld [vmem:[#allocation7 + $0x30] sm:$0xf]
        %v2474 = vld [vmem:[#allocation7 + $0x34] sm:$0xf]
        %v2475 = vld [vmem:[#allocation7 + $0x38] sm:$0xf]
        %v2476 = vld [vmem:[#allocation7 + $0x3c] sm:$0xf]
        %v2485 = vunpack.c.l.b16 %v1365
        %v2486 = vunpack.c.l.b16 %v1390
        %v2487 = vunpack.c.l.b16 %v1415
        %v2488 = vunpack.c.l.b16 %v1440
        %v2489 = vunpack.c.l.b16 %v1465
        %v2490 = vunpack.c.l.b16 %v1490
        %v2491 = vunpack.c.l.b16 %v1515
        %v2492 = vunpack.c.l.b16 %v1540
        %vm2493 = vcmask 1041409
        %v2494 = vsel %vm2493, %v2486, %v2485
        %vm2495 = vcmask 1042434
        %v2496 = vsel %vm2495, %v2487, %v2494
        %vm2497 = vcmask 1043459
        %v2498 = vsel %vm2497, %v2488, %v2496
        %vm2499 = vcmask 1044484
        %v2500 = vsel %vm2499, %v2489, %v2498
        %vm2501 = vcmask 1045509
        %v2502 = vsel %vm2501, %v2490, %v2500
        %vm2503 = vcmask 1046534
        %v2504 = vsel %vm2503, %v2491, %v2502
        %vm2505 = vcmask 1047559
        %v2506 = vsel %vm2505, %v2492, %v2504
        %v2507 = vpack.c.b16 %v2506, %v2506
        %v2525 = vunpack.c.l.b16 %v2461
        %v2526 = vunpack.c.l.b16 %v2462
        %v2527 = vunpack.c.l.b16 %v2463
        %v2528 = vunpack.c.l.b16 %v2464
        %v2529 = vunpack.c.l.b16 %v2465
        %v2530 = vunpack.c.l.b16 %v2466
        %v2531 = vunpack.c.l.b16 %v2467
        %v2532 = vunpack.c.l.b16 %v2468
        %v2533 = vunpack.c.l.b16 %v2469
        %v2534 = vunpack.c.l.b16 %v2470
        %v2535 = vunpack.c.l.b16 %v2471
        %v2536 = vunpack.c.l.b16 %v2472
        %v2537 = vunpack.c.l.b16 %v2473
        %v2538 = vunpack.c.l.b16 %v2474
        %v2539 = vunpack.c.l.b16 %v2475
        %v2540 = vunpack.c.l.b16 %v2476
        %v2541 = vpack.c.b16 %v2526, %v2525
        %v2542 = vpack.c.b16 %v2528, %v2527
        %v2543 = vpack.c.b16 %v2530, %v2529
        %v2544 = vpack.c.b16 %v2532, %v2531
        %v2545 = vpack.c.b16 %v2534, %v2533
        %v2546 = vpack.c.b16 %v2536, %v2535
        %v2547 = vpack.c.b16 %v2538, %v2537
        %v2548 = vpack.c.b16 %v2540, %v2539
        %2557 = vmatprep.subr.bf16.mxu0 0
        %2558 = vmatpush1.bf16.msra.mxu0 %v2548
        %2559 = vmatprep.subr.bf16.mxu0 0
        %2560 = vmatpush1.bf16.msra.mxu0 %v2547
        %2561 = vmatprep.subr.bf16.mxu0 0
        %2562 = vmatpush1.bf16.msra.mxu0 %v2546
        %2563 = vmatprep.subr.bf16.mxu0 0
        %2564 = vmatpush1.bf16.msra.mxu0 %v2545
        %2565 = vmatprep.subr.bf16.mxu0 0
        %2566 = vmatpush1.bf16.msra.mxu0 %v2544
        %2567 = vmatprep.subr.bf16.mxu0 0
        %2568 = vmatpush1.bf16.msra.mxu0 %v2543
        %2569 = vmatprep.subr.bf16.mxu0 0
        %2570 = vmatpush1.bf16.msra.mxu0 %v2542
        %2571 = vmatprep.subr.bf16.mxu0 0
        %2572 = vmatpush1.bf16.msra.mxu0 %v2541
        %2573 = vmatprep.subr.bf16.mxu0 0
        %2574 = vmatpush2.bf16.msra.mxu0 0
        %2575 = vmatprep.subr.bf16.mxu0 0
        %2576 = vmatpush2.bf16.msra.mxu0 0
        %2577 = vmatprep.subr.bf16.mxu0 0
        %2578 = vmatpush2.bf16.msra.mxu0 0
        %2579 = vmatprep.subr.bf16.mxu0 0
        %2580 = vmatpush2.bf16.msra.mxu0 0
        %2581 = vmatprep.subr.bf16.mxu0 0
        %2582 = vmatpush2.bf16.msra.mxu0 0
        %2583 = vmatprep.subr.bf16.mxu0 0
        %2584 = vmatpush2.bf16.msra.mxu0 0
        %2585 = vmatprep.subr.bf16.mxu0 0
        %2586 = vmatpush2.bf16.msra.mxu0 0
        %2587 = vmatprep.subr.bf16.mxu0 0
        %2588 = vmatpush2.bf16.msra.mxu0 0
        %2589 = vmatprep.mubr.bf16.mxu0 0
        %2590 = vmatmul.mubr.bf16.gmra.mxu0 %v2507
        %v2591 = vpop.f32.mrf.mxu0
        %v2592 = vadd.f32 0.0, %v2591
        %v2593 = vpop.f32.mrf.mxu0
        %v2594 = vpop.f32.mrf.mxu0
        %v2595 = vpop.f32.mrf.mxu0
        %2596 = vdwg.mxu0
        %v2605 = vunpack.c.l.b16 %v2437
        %v2606 = vunpack.c.l.b16 %v2438
        %v2607 = vunpack.c.l.b16 %v2439
        %v2608 = vunpack.c.l.b16 %v2440
        %v2609 = vunpack.c.l.b16 %v2441
        %v2610 = vunpack.c.l.b16 %v2442
        %v2611 = vunpack.c.l.b16 %v2443
        %v2612 = vunpack.c.l.b16 %v2444
        %v2613 = vsel %vm2493, %v2606, %v2605
        %v2614 = vsel %vm2495, %v2607, %v2613
        %v2615 = vsel %vm2497, %v2608, %v2614
        %v2616 = vsel %vm2499, %v2609, %v2615
        %v2617 = vsel %vm2501, %v2610, %v2616
        %v2618 = vsel %vm2503, %v2611, %v2617
        %v2619 = vsel %vm2505, %v2612, %v2618
        %v2620 = vpack.c.b16 %v2619, %v2619
        %v2638 = vunpack.c.l.b16 %v2445
        %v2639 = vunpack.c.l.b16 %v2446
        %v2640 = vunpack.c.l.b16 %v2447
        %v2641 = vunpack.c.l.b16 %v2448
        %v2642 = vunpack.c.l.b16 %v2449
        %v2643 = vunpack.c.l.b16 %v2450
        %v2644 = vunpack.c.l.b16 %v2451
        %v2645 = vunpack.c.l.b16 %v2452
        %v2646 = vunpack.c.l.b16 %v2453
        %v2647 = vunpack.c.l.b16 %v2454
        %v2648 = vunpack.c.l.b16 %v2455
        %v2649 = vunpack.c.l.b16 %v2456
        %v2650 = vunpack.c.l.b16 %v2457
        %v2651 = vunpack.c.l.b16 %v2458
        %v2652 = vunpack.c.l.b16 %v2459
        %v2653 = vunpack.c.l.b16 %v2460
        %v2654 = vpack.c.b16 %v2639, %v2638
        %v2655 = vpack.c.b16 %v2641, %v2640
        %v2656 = vpack.c.b16 %v2643, %v2642
        %v2657 = vpack.c.b16 %v2645, %v2644
        %v2658 = vpack.c.b16 %v2647, %v2646
        %v2659 = vpack.c.b16 %v2649, %v2648
        %v2660 = vpack.c.b16 %v2651, %v2650
        %v2661 = vpack.c.b16 %v2653, %v2652
        %2670 = vmatprep.subr.bf16.mxu0 0
        %2671 = vmatpush1.bf16.msra.mxu0 %v2661
        %2672 = vmatprep.subr.bf16.mxu0 0
        %2673 = vmatpush1.bf16.msra.mxu0 %v2660
        %2674 = vmatprep.subr.bf16.mxu0 0
        %2675 = vmatpush1.bf16.msra.mxu0 %v2659
        %2676 = vmatprep.subr.bf16.mxu0 0
        %2677 = vmatpush1.bf16.msra.mxu0 %v2658
        %2678 = vmatprep.subr.bf16.mxu0 0
        %2679 = vmatpush1.bf16.msra.mxu0 %v2657
        %2680 = vmatprep.subr.bf16.mxu0 0
        %2681 = vmatpush1.bf16.msra.mxu0 %v2656
        %2682 = vmatprep.subr.bf16.mxu0 0
        %2683 = vmatpush1.bf16.msra.mxu0 %v2655
        %2684 = vmatprep.subr.bf16.mxu0 0
        %2685 = vmatpush1.bf16.msra.mxu0 %v2654
        %2686 = vmatprep.subr.bf16.mxu0 0
        %2687 = vmatpush2.bf16.msra.mxu0 0
        %2688 = vmatprep.subr.bf16.mxu0 0
        %2689 = vmatpush2.bf16.msra.mxu0 0
        %2690 = vmatprep.subr.bf16.mxu0 0
        %2691 = vmatpush2.bf16.msra.mxu0 0
        %2692 = vmatprep.subr.bf16.mxu0 0
        %2693 = vmatpush2.bf16.msra.mxu0 0
        %2694 = vmatprep.subr.bf16.mxu0 0
        %2695 = vmatpush2.bf16.msra.mxu0 0
        %2696 = vmatprep.subr.bf16.mxu0 0
        %2697 = vmatpush2.bf16.msra.mxu0 0
        %2698 = vmatprep.subr.bf16.mxu0 0
        %2699 = vmatpush2.bf16.msra.mxu0 0
        %2700 = vmatprep.subr.bf16.mxu0 0
        %2701 = vmatpush2.bf16.msra.mxu0 0
        %2702 = vmatprep.mubr.bf16.mxu0 0
        %2703 = vmatmul.mubr.bf16.gmra.mxu0 %v2620
        %v2704 = vpop.f32.mrf.mxu0
        %v2705 = vadd.f32 %v2592, %v2704
        %v2706 = vpop.f32.mrf.mxu0
        %v2707 = vpop.f32.mrf.mxu0
        %v2708 = vpop.f32.mrf.mxu0
        %2709 = vdwg.mxu0
        %v2710 = vld [vmem:[%s3] sm:$0x1]
        %v2712 = vlaneseq
        %v2713 = vshrl.u32 %v2712, 7
        %v2714 = vsub.s32 0, %v2713
        %v2715 = vrot.slane %v2710, %v2714
        %v2717 = vadd.f32 %v2705, %v2715
        %v2718 = vmax.f32 %v2717, 0.0
        %v2719 = vpack.c.bf16 %v2718, %v2718
        %v2720 = vld [vmem:[#allocation8] sm:$0xf]
        %v2721 = vld [vmem:[#allocation8 + $0x4] sm:$0xf]
        %v2722 = vld [vmem:[#allocation8 + $0x8] sm:$0xf]
        %v2723 = vld [vmem:[#allocation8 + $0xc] sm:$0xf]
        %v2724 = vld [vmem:[#allocation8 + $0x10] sm:$0xf]
        %v2725 = vld [vmem:[#allocation8 + $0x14] sm:$0xf]
        %v2726 = vld [vmem:[#allocation8 + $0x18] sm:$0xf]
        %v2727 = vld [vmem:[#allocation8 + $0x1c] sm:$0xf]
        %v2728 = vld [vmem:[#allocation8 + $0x20] sm:$0xf]
        %v2729 = vld [vmem:[#allocation8 + $0x24] sm:$0xf]
        %v2730 = vld [vmem:[#allocation8 + $0x28] sm:$0xf]
        %v2731 = vld [vmem:[#allocation8 + $0x2c] sm:$0xf]
        %v2732 = vld [vmem:[#allocation8 + $0x30] sm:$0xf]
        %v2733 = vld [vmem:[#allocation8 + $0x34] sm:$0xf]
        %v2734 = vld [vmem:[#allocation8 + $0x38] sm:$0xf]
        %v2735 = vld [vmem:[#allocation8 + $0x3c] sm:$0xf]
        %v2736 = vld [vmem:[%s5] sm:$0x1]
        %v2738 = vlaneseq
        %v2739 = vshrl.u32 %v2738, 7
        %v2740 = vsub.s32 0, %v2739
        %v2741 = vrot.slane %v2736, %v2740
        %v2759 = vunpack.c.l.b16 %v2720
        %v2760 = vunpack.c.l.b16 %v2721
        %v2761 = vunpack.c.l.b16 %v2722
        %v2762 = vunpack.c.l.b16 %v2723
        %v2763 = vunpack.c.l.b16 %v2724
        %v2764 = vunpack.c.l.b16 %v2725
        %v2765 = vunpack.c.l.b16 %v2726
        %v2766 = vunpack.c.l.b16 %v2727
        %v2767 = vunpack.c.l.b16 %v2728
        %v2768 = vunpack.c.l.b16 %v2729
        %v2769 = vunpack.c.l.b16 %v2730
        %v2770 = vunpack.c.l.b16 %v2731
        %v2771 = vunpack.c.l.b16 %v2732
        %v2772 = vunpack.c.l.b16 %v2733
        %v2773 = vunpack.c.l.b16 %v2734
        %v2774 = vunpack.c.l.b16 %v2735
        %v2775 = vpack.c.b16 %v2760, %v2759
        %v2776 = vpack.c.b16 %v2762, %v2761
        %v2777 = vpack.c.b16 %v2764, %v2763
        %v2778 = vpack.c.b16 %v2766, %v2765
        %v2779 = vpack.c.b16 %v2768, %v2767
        %v2780 = vpack.c.b16 %v2770, %v2769
        %v2781 = vpack.c.b16 %v2772, %v2771
        %v2782 = vpack.c.b16 %v2774, %v2773
        %2791 = vmatprep.subr.bf16.mxu0 0
        %2792 = vmatpush1.bf16.msra.mxu0 %v2782
        %2793 = vmatprep.subr.bf16.mxu0 0
        %2794 = vmatpush1.bf16.msra.mxu0 %v2781
        %2795 = vmatprep.subr.bf16.mxu0 0
        %2796 = vmatpush1.bf16.msra.mxu0 %v2780
        %2797 = vmatprep.subr.bf16.mxu0 0
        %2798 = vmatpush1.bf16.msra.mxu0 %v2779
        %2799 = vmatprep.subr.bf16.mxu0 0
        %2800 = vmatpush1.bf16.msra.mxu0 %v2778
        %2801 = vmatprep.subr.bf16.mxu0 0
        %2802 = vmatpush1.bf16.msra.mxu0 %v2777
        %2803 = vmatprep.subr.bf16.mxu0 0
        %2804 = vmatpush1.bf16.msra.mxu0 %v2776
        %2805 = vmatprep.subr.bf16.mxu0 0
        %2806 = vmatpush1.bf16.msra.mxu0 %v2775
        %2807 = vmatprep.subr.bf16.mxu0 0
        %2808 = vmatpush2.bf16.msra.mxu0 0
        %2809 = vmatprep.subr.bf16.mxu0 0
        %2810 = vmatpush2.bf16.msra.mxu0 0
        %2811 = vmatprep.subr.bf16.mxu0 0
        %2812 = vmatpush2.bf16.msra.mxu0 0
        %2813 = vmatprep.subr.bf16.mxu0 0
        %2814 = vmatpush2.bf16.msra.mxu0 0
        %2815 = vmatprep.subr.bf16.mxu0 0
        %2816 = vmatpush2.bf16.msra.mxu0 0
        %2817 = vmatprep.subr.bf16.mxu0 0
        %2818 = vmatpush2.bf16.msra.mxu0 0
        %2819 = vmatprep.subr.bf16.mxu0 0
        %2820 = vmatpush2.bf16.msra.mxu0 0
        %2821 = vmatprep.subr.bf16.mxu0 0
        %2822 = vmatpush2.bf16.msra.mxu0 0
        %2823 = vmatprep.mubr.bf16.mxu0 0
        %2824 = vmatmul.mubr.bf16.gmra.mxu0 %v2719
        %v2825 = vpop.f32.mrf.mxu0
        %v2826 = vadd.f32 %v2741, %v2825
        %v2827 = vpop.f32.mrf.mxu0
        %v2828 = vpop.f32.mrf.mxu0
        %v2829 = vpop.f32.mrf.mxu0
        %2830 = vdwg.mxu0
        %2831 = vst [vmem:[%s314] sm:$0xff] %v2826
        %s2832 = sand.u32 %s164, 1
        %s2833 = scalar_lea.sflag [#allocation4], %s2832
        %s2834 = sand.u32 %s164, 1
        %s2835 = smul.addr %s2834, 8
        %s2836 = scalar_lea.vmem [#allocation10], %s2835
        // Predicated region
        $region61: #{tpu_custom_call.1} parent=43 // pred_check
          %p2837 = pneg %p174
        $region62: #{tpu_custom_call.1} parent=43 // pred_check_branch
          %2839 = sbr.rel (%p2837) target = $region64
        $region63: #{tpu_custom_call.1} parent=43 // pred_region
          %s2841 = ssub.s32 128, 128
          %2842 = vsyncadd %s2833, %s2841
          %s2843 = smul.addr %s25, 128
          %s2844 = scalar_lea.hbm %s6, %s2843
          %s2846 = sshll.u32 %s2836, 4
          %s2847 = int_to_ptr.vmem [resolvable:$true] %s2846
          %2849 = dma.vmem_to_hbm [thread:$0]  %s2847, 128, %s2844, %s2833
        $region64: #{tpu_custom_call.1} parent=43 // pred_fallthru
          _
      $region44: #{tpu_custom_call.1} parent=5 // pred_fallthru
        _
      %p2850 = scmp.le.s32.totalorder 2, %s20
      // Predicated region
      $region65: #{tpu_custom_call.1} parent=5 // pred_check
        %p2851 = pneg %p2850
      $region66: #{tpu_custom_call.1} parent=5 // pred_check_branch
        %2853 = sbr.rel (%p2851) target = $region68
      $region67: #{tpu_custom_call.1} parent=5 // pred_region
        %s2854 = ssub.s32 %s20, 2
        // Predicated region
        $region69: #{tpu_custom_call.1} parent=67 // pred_check
          %p2855 = pneg %p180
        $region70: #{tpu_custom_call.1} parent=67 // pred_check_branch
          %2857 = sbr.rel (%p2855) target = $region72
        $region71: #{tpu_custom_call.1} parent=67 // pred_region
          %s2858 = sand.u32 %s165, 1
          %s2859 = scalar_lea.sflag [#allocation4], %s2858
          %s2860 = sand.u32 %s165, 1
          %s2861 = smul.addr %s2860, 8
          %s2862 = scalar_lea.vmem [#allocation10], %s2861
          %2863 = dma.done %s2859, 128
        $region72: #{tpu_custom_call.1} parent=67 // pred_fallthru
          _
      $region68: #{tpu_custom_call.1} parent=5 // pred_fallthru
        _
    $region6: #{tpu_custom_call.1} parent=1 // loop_footer
      %s24 = sadd.s32 1, %s20
    $region7: #{tpu_custom_call.1} parent=1 // loop_footer_branch
      %19 = sbr.rel target = $region3
    $region8: #{tpu_custom_call.1} parent=1 // loop_exit
      _
    %2864 = vsyncpa [#allocation3], 1
    %s2865 = scalar_lea.sflag [#allocation3], 1
    %2866 = vsyncpa %s2865, 1
    %2867 = vsyncpa [#allocation6], 1
    %2868 = vsyncpa [#allocation9], 1
    %2869 = vsyncpa [#allocation4], 1
    %s2870 = scalar_lea.sflag [#allocation4], 1
    %2871 = vsyncpa %s2870, 1

</llo_original>
